<compile_context>
chip_gen: v7x
topology: tpu7x:2x2x1
jax: 0.10.0
libtpu: 0.0.40
codegen_flags: <defaults>
</compile_context>

<pallas_src>
import math

import jax
import jax.numpy as jnp
from jax.experimental import pallas as pl
from jax.experimental.pallas import tpu as pltpu  # noqa: F401  (TPU backend assumed)

D_MODEL = 32
N_HEADS = 4
D_K = D_MODEL // N_HEADS
D_FF = 64
EPS = 1e-6

LANE = 128
# Column offsets of each weight group inside the (D_MODEL, 6*LANE) weight slab.
# Every group starts on a 128-lane boundary so in-kernel slices are lane-tile aligned.
W_SA_QKV = 0 * LANE   # width 3*D_MODEL = 96   self-attn fused Wq|Wk|Wv
W_CA_Q   = 1 * LANE   # width D_MODEL          cross-attn Wq
W_CA_KV  = 2 * LANE   # width 2*D_MODEL = 64   cross-attn fused Wk|Wv
W_SA_O   = 3 * LANE   # width D_MODEL          self-attn Wo
W_CA_O   = 4 * LANE   # width D_MODEL          cross-attn Wo
W_FF_1   = 5 * LANE   # width D_FF = 64        FFN first linear
W_SLAB_COLS = 6 * LANE

# Row indices inside the (16, 128) bias / LayerNorm slab (data left-aligned per row).
V_SA_BQKV = 0   # 96 wide
V_CA_BQ   = 1   # 32
V_CA_BKV  = 2   # 64
V_SA_BO   = 3   # 32
V_CA_BO   = 4   # 32
V_FF_B1   = 5   # 64
V_FF_B2   = 6   # 32
V_LN1_A, V_LN1_B = 7, 8
V_LN2_A, V_LN2_B = 9, 10
V_LN3_A, V_LN3_B = 11, 12
VEC_ROWS = 16   # padded to a multiple of 8 sublanes


# ---------------------------------------------------------------------------
# In-kernel math
# ---------------------------------------------------------------------------
def _layernorm(x, alpha, bias):
    # torch LayerNormalization: alpha * (x - mean) / (std + eps) + bias,
    # std is torch.std (unbiased, divide by N-1). One exact reciprocal per row,
    # then a broadcast multiply (divide hoisted off the (rows, D) tensor).
    n = x.shape[-1]
    mean = jnp.mean(x, axis=-1, keepdims=True)
    var = jnp.sum((x - mean) ** 2, axis=-1, keepdims=True) * (1.0 / (n - 1))
    inv = pl.reciprocal(jnp.sqrt(var) + EPS, approx=False)
    return alpha * (x - mean) * inv + bias


def _attention(q2, k2, v2, neg_mask, wo, bo, b, s_q, s_k):
    """q2: (B*s_q, D); k2/v2: (B*s_k, D); neg_mask: (B, s_q, s_k) bool (True = masked)."""
    q3 = q2.reshape(b, s_q, D_MODEL)
    k3 = k2.reshape(b, s_k, D_MODEL)
    v3 = v2.reshape(b, s_k, D_MODEL)
    scale = 1.0 / math.sqrt(D_K)
    heads = []
    for h in range(N_HEADS):
        sl = slice(h * D_K, (h + 1) * D_K)
        s = jnp.einsum("bqd,bkd->bqk", q3[..., sl], k3[..., sl],
                       preferred_element_type=jnp.float32) * scale
        s = jnp.where(neg_mask, -1e9, s)
        s = s - jnp.max(s, axis=-1, keepdims=True)
        p = jnp.exp(s)
        attn = p * pl.reciprocal(jnp.sum(p, axis=-1, keepdims=True), approx=True)
        heads.append(jnp.einsum("bqk,bkd->bqd", attn, v3[..., sl],
                                preferred_element_type=jnp.float32))
    # concat(heads) -> one (B*S, D) @ (D, D) output projection.
    cat = jnp.concatenate(heads, axis=-1).reshape(b * s_q, D_MODEL)
    return jnp.dot(cat, wo, preferred_element_type=jnp.float32) + bo


# ---------------------------------------------------------------------------
# Pallas kernel: single invocation (no grid), whole batch resident in VMEM.
# ---------------------------------------------------------------------------
def decoder_block_kernel(x_ref, enc_ref, tgt_mask_ref, src_mask_ref,
                         w_ref, ffw2_ref, vec_ref, out_ref):
    B, S, D = x_ref.shape
    S_src = enc_ref.shape[1]

    x = x_ref[...].reshape(B * S, D)
    enc = enc_ref[...].reshape(B * S_src, D)
    tgt_neg = tgt_mask_ref[...] == 0.0   # hoisted out of the head loops
    src_neg = src_mask_ref[...] == 0.0

    def w(col, width):
        return w_ref[:, col:col + width]

    def vrow(row, width):
        return vec_ref[row:row + 1, 0:width]

    # ---- residual 1: self-attention on pre-normed x (dropout = identity) ----
    xn = _layernorm(x, vrow(V_LN1_A, D), vrow(V_LN1_B, D))
    qkv = (jnp.dot(xn, w(W_SA_QKV, 3 * D), preferred_element_type=jnp.float32)
           + vrow(V_SA_BQKV, 3 * D))
    x = x + _attention(qkv[:, 0:D], qkv[:, D:2 * D], qkv[:, 2 * D:3 * D],
                       tgt_neg, w(W_SA_O, D), vrow(V_SA_BO, D), B, S, S)

    # ---- residual 2: cross-attention (q from normed x, k/v from encoder output) ----
    xn = _layernorm(x, vrow(V_LN2_A, D), vrow(V_LN2_B, D))
    q = jnp.dot(xn, w(W_CA_Q, D), preferred_element_type=jnp.float32) + vrow(V_CA_BQ, D)
    kv = (jnp.dot(enc, w(W_CA_KV, 2 * D), preferred_element_type=jnp.float32)
          + vrow(V_CA_BKV, 2 * D))
    x = x + _attention(q, kv[:, 0:D], kv[:, D:2 * D],
                       src_neg, w(W_CA_O, D), vrow(V_CA_BO, D), B, S, S_src)

    # ---- residual 3: feed-forward (quant/dequant stubs and dropout = identity) ----
    xn = _layernorm(x, vrow(V_LN3_A, D), vrow(V_LN3_B, D))
    h = jnp.maximum(jnp.dot(xn, w(W_FF_1, D_FF), preferred_element_type=jnp.float32)
                    + vrow(V_FF_B1, D_FF), 0.0)
    x = x + jnp.dot(h, ffw2_ref[...], preferred_element_type=jnp.float32) + vrow(V_FF_B2, D)

    out_ref[...] = x.reshape(B, S, D)


def decoder_block(x, encoder_output, src_mask, tgt_mask, packed_params):
    B, S, D = x.shape
    w_slab, ff_w2, vec_slab = packed_params
    return pl.pallas_call(
        decoder_block_kernel,
        out_shape=jax.ShapeDtypeStruct((B, S, D), jnp.float32),
    )(x, encoder_output, tgt_mask, src_mask, w_slab, ff_w2, vec_slab)


# ---------------------------------------------------------------------------
# Parameter init (mimics nn.Linear U(-1/sqrt(fan_in), 1/sqrt(fan_in))) and slab packing
# ---------------------------------------------------------------------------
def init_params(key):
    def linear(k, fan_in, fan_out):
        k1, k2 = jax.random.split(k)
        bound = 1.0 / math.sqrt(fan_in)
        wmat = jax.random.uniform(k1, (fan_in, fan_out), jnp.float32, -bound, bound)
        bvec = jax.random.uniform(k2, (1, fan_out), jnp.float32, -bound, bound)
        return wmat, bvec

    keys = jax.random.split(key, 10)
    sa_wq, sa_bq = linear(keys[0], D_MODEL, D_MODEL)
    sa_wk, sa_bk = linear(keys[1], D_MODEL, D_MODEL)
    sa_wv, sa_bv = linear(keys[2], D_MODEL, D_MODEL)
    sa_wo, sa_bo = linear(keys[3], D_MODEL, D_MODEL)
    ca_wq, ca_bq = linear(keys[4], D_MODEL, D_MODEL)
    ca_wk, ca_bk = linear(keys[5], D_MODEL, D_MODEL)
    ca_wv, ca_bv = linear(keys[6], D_MODEL, D_MODEL)
    ca_wo, ca_bo = linear(keys[7], D_MODEL, D_MODEL)
    ff_w1, ff_b1 = linear(keys[8], D_MODEL, D_FF)
    ff_w2, ff_b2 = linear(keys[9], D_FF, D_MODEL)
    ones = jnp.ones((1, D_MODEL), jnp.float32)
    zeros = jnp.zeros((1, D_MODEL), jnp.float32)

    return [
        ones, zeros,                                     # ln1 alpha, bias
        sa_wq, sa_bq, sa_wk, sa_bk, sa_wv, sa_bv, sa_wo, sa_bo,
        ones, zeros,                                     # ln2 alpha, bias
        ca_wq, ca_bq, ca_wk, ca_bk, ca_wv, ca_bv, ca_wo, ca_bo,
        ones, zeros,                                     # ln3 alpha, bias
        ff_w1, ff_b1, ff_w2, ff_b2,
    ]


def pack_params(params):
    (ln1_a, ln1_b,
     sa_wq, sa_bq, sa_wk, sa_bk, sa_wv, sa_bv, sa_wo, sa_bo,
     ln2_a, ln2_b,
     ca_wq, ca_bq, ca_wk, ca_bk, ca_wv, ca_bv, ca_wo, ca_bo,
     ln3_a, ln3_b,
     ff_w1, ff_b1, ff_w2, ff_b2) = params

    w_slab = jnp.zeros((D_MODEL, W_SLAB_COLS), jnp.float32)

    def put_w(slab, col, wmat):
        return slab.at[:, col:col + wmat.shape[1]].set(wmat)

    w_slab = put_w(w_slab, W_SA_QKV, jnp.concatenate([sa_wq, sa_wk, sa_wv], axis=1))
    w_slab = put_w(w_slab, W_CA_Q, ca_wq)
    w_slab = put_w(w_slab, W_CA_KV, jnp.concatenate([ca_wk, ca_wv], axis=1))
    w_slab = put_w(w_slab, W_SA_O, sa_wo)
    w_slab = put_w(w_slab, W_CA_O, ca_wo)
    w_slab = put_w(w_slab, W_FF_1, ff_w1)

    vec_slab = jnp.zeros((VEC_ROWS, LANE), jnp.float32)

    def put_v(slab, row, v):
        return slab.at[row, 0:v.shape[1]].set(v[0])

    vec_slab = put_v(vec_slab, V_SA_BQKV, jnp.concatenate([sa_bq, sa_bk, sa_bv], axis=1))
    vec_slab = put_v(vec_slab, V_CA_BQ, ca_bq)
    vec_slab = put_v(vec_slab, V_CA_BKV, jnp.concatenate([ca_bk, ca_bv], axis=1))
    vec_slab = put_v(vec_slab, V_SA_BO, sa_bo)
    vec_slab = put_v(vec_slab, V_CA_BO, ca_bo)
    vec_slab = put_v(vec_slab, V_FF_B1, ff_b1)
    vec_slab = put_v(vec_slab, V_FF_B2, ff_b2)
    vec_slab = put_v(vec_slab, V_LN1_A, ln1_a)
    vec_slab = put_v(vec_slab, V_LN1_B, ln1_b)
    vec_slab = put_v(vec_slab, V_LN2_A, ln2_a)
    vec_slab = put_v(vec_slab, V_LN2_B, ln2_b)
    vec_slab = put_v(vec_slab, V_LN3_A, ln3_a)
    vec_slab = put_v(vec_slab, V_LN3_B, ln3_b)

    return w_slab, ff_w2, vec_slab


# ---------------------------------------------------------------------------
# Pure-JAX reference (mirrors the PyTorch module directly, exact division everywhere)
# ---------------------------------------------------------------------------
def _ref_layernorm(x, alpha, bias):
    n = x.shape[-1]
    mean = jnp.mean(x, axis=-1, keepdims=True)
    var = jnp.sum((x - mean) ** 2, axis=-1, keepdims=True) / (n - 1)
    return alpha * (x - mean) / (jnp.sqrt(var) + EPS) + bias


def _ref_mha(q_in, k_in, v_in, mask, wq, bq, wk, bk, wv, bv, wo, bo):
    q = q_in @ wq + bq
    k = k_in @ wk + bk
    v = v_in @ wv + bv
    scale = 1.0 / math.sqrt(D_K)
    out = jnp.zeros((q_in.shape[0], wo.shape[1]), jnp.float32)
    for h in range(N_HEADS):
        sl = slice(h * D_K, (h + 1) * D_K)
        scores = (q[:, sl] @ k[:, sl].T) * scale
        scores = jnp.where(mask == 0, -1e9, scores)
        attn = jax.nn.softmax(scores, axis=-1)
        out = out + (attn @ v[:, sl]) @ wo[sl, :]
    return out + bo


def reference(x, enc, src_mask, tgt_mask, params):
    (ln1_a, ln1_b,
     sa_wq, sa_bq, sa_wk, sa_bk, sa_wv, sa_bv, sa_wo, sa_bo,
     ln2_a, ln2_b,
     ca_wq, ca_bq, ca_wk, ca_bk, ca_wv, ca_bv, ca_wo, ca_bo,
     ln3_a, ln3_b,
     ff_w1, ff_b1, ff_w2, ff_b2) = params
    outs = []
    for b in range(x.shape[0]):
        xb, eb = x[b], enc[b]
        xn = _ref_layernorm(xb, ln1_a, ln1_b)
        xb = xb + _ref_mha(xn, xn, xn, tgt_mask[b],
                           sa_wq, sa_bq, sa_wk, sa_bk, sa_wv, sa_bv, sa_wo, sa_bo)
        xn = _ref_layernorm(xb, ln2_a, ln2_b)
        xb = xb + _ref_mha(xn, eb, eb, src_mask[b],
                           ca_wq, ca_bq, ca_wk, ca_bk, ca_wv, ca_bv, ca_wo, ca_bo)
        xn = _ref_layernorm(xb, ln3_a, ln3_b)
        h = jnp.maximum(xn @ ff_w1 + ff_b1, 0.0)
        xb = xb + h @ ff_w2 + ff_b2
        outs.append(xb)
    return jnp.stack(outs, axis=0)


if __name__ == "__main__":
    key = jax.random.PRNGKey(0)
    B, S_TGT, S_SRC = 2, 8, 8
    kx, ke, kp = jax.random.split(key, 3)

    x = jax.random.normal(kx, (B, S_TGT, D_MODEL), jnp.float32)
    enc = jax.random.normal(ke, (B, S_SRC, D_MODEL), jnp.float32)
    tgt_mask = jnp.broadcast_to(
        jnp.tril(jnp.ones((S_TGT, S_TGT), jnp.float32)), (B, S_TGT, S_TGT))
    src_mask = jnp.ones((B, S_TGT, S_SRC), jnp.float32)

    params = init_params(kp)
    packed = pack_params(params)

    out = decoder_block(x, enc, src_mask, tgt_mask, packed)
    out = jax.block_until_ready(out)

    ref = reference(x, enc, src_mask, tgt_mask, params)
    assert out.shape == (B, S_TGT, D_MODEL)
    assert jnp.allclose(out, ref, rtol=2e-3, atol=2e-3), "Pallas kernel mismatch vs JAX reference"

    print("KERNEL_OK")
</pallas_src>

<mosaic_0001>
module attributes {stable_mosaic.version = 11 : i64} {
  func.func @decoder_block_kernel(%arg0: memref<2x8x32xf32, #tpu.memory_space<vmem>>, %arg1: memref<2x8x32xf32, #tpu.memory_space<vmem>>, %arg2: memref<2x8x8xf32, #tpu.memory_space<vmem>>, %arg3: memref<2x8x8xf32, #tpu.memory_space<vmem>>, %arg4: memref<32x768xf32, #tpu.memory_space<vmem>>, %arg5: memref<64x32xf32, #tpu.memory_space<vmem>>, %arg6: memref<16x128xf32, #tpu.memory_space<vmem>>, %arg7: memref<2x8x32xf32, #tpu.memory_space<vmem>>) attributes {dimension_semantics = [], scalar_prefetch = 0 : i64, scratch_operands = 0 : i64, tpu.core_type = #tpu.core_type<tc>} {
    %c0 = arith.constant 0 : index
    %c0_0 = arith.constant 0 : index
    %c0_1 = arith.constant 0 : index
    %0 = vector.load %arg0[%c0, %c0_0, %c0_1] : memref<2x8x32xf32, #tpu.memory_space<vmem>>, vector<2x8x32xf32>
    %1 = vector.shape_cast %0 : vector<2x8x32xf32> to vector<16x32xf32>
    %c0_2 = arith.constant 0 : index
    %c0_3 = arith.constant 0 : index
    %c0_4 = arith.constant 0 : index
    %2 = vector.load %arg1[%c0_2, %c0_3, %c0_4] : memref<2x8x32xf32, #tpu.memory_space<vmem>>, vector<2x8x32xf32>
    %3 = vector.shape_cast %2 : vector<2x8x32xf32> to vector<16x32xf32>
    %c0_5 = arith.constant 0 : index
    %c0_6 = arith.constant 0 : index
    %c0_7 = arith.constant 0 : index
    %4 = vector.load %arg2[%c0_5, %c0_6, %c0_7] : memref<2x8x8xf32, #tpu.memory_space<vmem>>, vector<2x8x8xf32>
    %cst = arith.constant 0.000000e+00 : f32
    %5 = vector.broadcast %cst : f32 to vector<2x8x8xf32>
    %6 = arith.cmpf oeq, %4, %5 : vector<2x8x8xf32>
    %c0_8 = arith.constant 0 : index
    %c0_9 = arith.constant 0 : index
    %c0_10 = arith.constant 0 : index
    %7 = vector.load %arg3[%c0_8, %c0_9, %c0_10] : memref<2x8x8xf32, #tpu.memory_space<vmem>>, vector<2x8x8xf32>
    %cst_11 = arith.constant 0.000000e+00 : f32
    %8 = vector.broadcast %cst_11 : f32 to vector<2x8x8xf32>
    %9 = arith.cmpf oeq, %7, %8 : vector<2x8x8xf32>
    %c7 = arith.constant 7 : index
    %c0_12 = arith.constant 0 : index
    %10 = vector.load %arg6[%c7, %c0_12] : memref<16x128xf32, #tpu.memory_space<vmem>>, vector<1x32xf32>
    %c8 = arith.constant 8 : index
    %c0_13 = arith.constant 0 : index
    %11 = vector.load %arg6[%c8, %c0_13] : memref<16x128xf32, #tpu.memory_space<vmem>>, vector<1x32xf32>
    %cst_14 = arith.constant dense<0.000000e+00> : vector<16xf32>
    %12 = vector.multi_reduction <add>, %1, %cst_14 [1] : vector<16x32xf32> to vector<16xf32>
    %13 = vector.shape_cast %12 : vector<16xf32> to vector<16x1xf32>
    %cst_15 = arith.constant 3.200000e+01 : f32
    %14 = vector.broadcast %cst_15 : f32 to vector<16x1xf32>
    %15 = arith.divf %13, %14 : vector<16x1xf32>
    %16 = vector.broadcast %15 : vector<16x1xf32> to vector<16x32xf32>
    %17 = arith.subf %1, %16 : vector<16x32xf32>
    %18 = arith.mulf %17, %17 : vector<16x32xf32>
    %cst_16 = arith.constant dense<0.000000e+00> : vector<16xf32>
    %19 = vector.multi_reduction <add>, %18, %cst_16 [1] : vector<16x32xf32> to vector<16xf32>
    %20 = vector.shape_cast %19 : vector<16xf32> to vector<16x1xf32>
    %cst_17 = arith.constant 0.0322580636 : f32
    %21 = vector.broadcast %cst_17 : f32 to vector<16x1xf32>
    %22 = arith.mulf %20, %21 : vector<16x1xf32>
    %23 = math.sqrt %22 : vector<16x1xf32>
    %cst_18 = arith.constant 9.99999997E-7 : f32
    %24 = vector.broadcast %cst_18 : f32 to vector<16x1xf32>
    %25 = arith.addf %23, %24 : vector<16x1xf32>
    %26 = tpu.reciprocal %25 : vector<16x1xf32> -> vector<16x1xf32>
    %27 = vector.broadcast %15 : vector<16x1xf32> to vector<16x32xf32>
    %28 = arith.subf %1, %27 : vector<16x32xf32>
    %29 = vector.broadcast %10 : vector<1x32xf32> to vector<16x32xf32>
    %30 = arith.mulf %29, %28 : vector<16x32xf32>
    %31 = vector.broadcast %26 : vector<16x1xf32> to vector<16x32xf32>
    %32 = arith.mulf %30, %31 : vector<16x32xf32>
    %33 = vector.broadcast %11 : vector<1x32xf32> to vector<16x32xf32>
    %34 = arith.addf %32, %33 : vector<16x32xf32>
    %c0_19 = arith.constant 0 : index
    %c0_20 = arith.constant 0 : index
    %35 = vector.load %arg4[%c0_19, %c0_20] : memref<32x768xf32, #tpu.memory_space<vmem>>, vector<32x96xf32>
    %cst_21 = arith.constant dense<0.000000e+00> : vector<16x96xf32>
    %36 = tpu.matmul %34, %35, %cst_21 {dimension_numbers = #tpu.dot_dimension_numbers<[1], [0], [0], [1], [0, 0, 1, 1], [], []>} : vector<16x32xf32>, vector<32x96xf32>, vector<16x96xf32> -> vector<16x96xf32>
    %c0_22 = arith.constant 0 : index
    %c0_23 = arith.constant 0 : index
    %37 = vector.load %arg6[%c0_22, %c0_23] : memref<16x128xf32, #tpu.memory_space<vmem>>, vector<1x96xf32>
    %38 = vector.broadcast %37 : vector<1x96xf32> to vector<16x96xf32>
    %39 = arith.addf %36, %38 : vector<16x96xf32>
    %40 = vector.extract_strided_slice %39 {offsets = [0, 0], sizes = [16, 32], strides = [1, 1]} : vector<16x96xf32> to vector<16x32xf32>
    %41 = vector.extract_strided_slice %39 {offsets = [0, 32], sizes = [16, 32], strides = [1, 1]} : vector<16x96xf32> to vector<16x32xf32>
    %42 = vector.extract_strided_slice %39 {offsets = [0, 64], sizes = [16, 32], strides = [1, 1]} : vector<16x96xf32> to vector<16x32xf32>
    %c0_24 = arith.constant 0 : index
    %c384 = arith.constant 384 : index
    %43 = vector.load %arg4[%c0_24, %c384] : memref<32x768xf32, #tpu.memory_space<vmem>>, vector<32x32xf32>
    %c3 = arith.constant 3 : index
    %c0_25 = arith.constant 0 : index
    %44 = vector.load %arg6[%c3, %c0_25] : memref<16x128xf32, #tpu.memory_space<vmem>>, vector<1x32xf32>
    %45 = vector.shape_cast %40 : vector<16x32xf32> to vector<2x8x32xf32>
    %46 = vector.shape_cast %41 : vector<16x32xf32> to vector<2x8x32xf32>
    %47 = vector.shape_cast %42 : vector<16x32xf32> to vector<2x8x32xf32>
    %48 = vector.extract_strided_slice %45 {offsets = [0, 0, 0], sizes = [2, 8, 8], strides = [1, 1, 1]} : vector<2x8x32xf32> to vector<2x8x8xf32>
    %49 = vector.extract_strided_slice %46 {offsets = [0, 0, 0], sizes = [2, 8, 8], strides = [1, 1, 1]} : vector<2x8x32xf32> to vector<2x8x8xf32>
    "tpu.trace_start"() <{level = 10 : i32, message = "bqd,bkd->bqk"}> : () -> ()
    %cst_26 = arith.constant dense<0.000000e+00> : vector<2x8x8xf32>
    %50 = tpu.matmul %48, %49, %cst_26 {dimension_numbers = #tpu.dot_dimension_numbers<[2], [2], [1], [1], [0, 0, 0, 1, 1, 1], [0], [0]>} : vector<2x8x8xf32>, vector<2x8x8xf32>, vector<2x8x8xf32> -> vector<2x8x8xf32>
    "tpu.trace_stop"() : () -> ()
    %cst_27 = arith.constant 0.353553385 : f32
    %51 = vector.broadcast %cst_27 : f32 to vector<2x8x8xf32>
    %52 = arith.mulf %50, %51 : vector<2x8x8xf32>
    %cst_28 = arith.constant -1.000000e+09 : f32
    %53 = vector.broadcast %cst_28 : f32 to vector<2x8x8xf32>
    %54 = arith.select %6, %53, %52 : vector<2x8x8xi1>, vector<2x8x8xf32>
    %cst_29 = arith.constant dense<0xFF800000> : vector<2x8xf32>
    %55 = vector.multi_reduction <maximumf>, %54, %cst_29 [2] : vector<2x8x8xf32> to vector<2x8xf32>
    %56 = vector.shape_cast %55 : vector<2x8xf32> to vector<2x8x1xf32>
    %57 = vector.broadcast %56 : vector<2x8x1xf32> to vector<2x8x8xf32>
    %58 = arith.subf %54, %57 : vector<2x8x8xf32>
    %59 = math.exp %58 : vector<2x8x8xf32>
    %cst_30 = arith.constant dense<0.000000e+00> : vector<2x8xf32>
    %60 = vector.multi_reduction <add>, %59, %cst_30 [2] : vector<2x8x8xf32> to vector<2x8xf32>
    %61 = vector.shape_cast %60 : vector<2x8xf32> to vector<2x8x1xf32>
    %62 = tpu.reciprocal %61 {approx = true} : vector<2x8x1xf32> -> vector<2x8x1xf32>
    %63 = vector.broadcast %62 : vector<2x8x1xf32> to vector<2x8x8xf32>
    %64 = arith.mulf %59, %63 : vector<2x8x8xf32>
    %65 = vector.extract_strided_slice %47 {offsets = [0, 0, 0], sizes = [2, 8, 8], strides = [1, 1, 1]} : vector<2x8x32xf32> to vector<2x8x8xf32>
    "tpu.trace_start"() <{level = 10 : i32, message = "bqk,bkd->bqd"}> : () -> ()
    %cst_31 = arith.constant dense<0.000000e+00> : vector<2x8x8xf32>
    %66 = tpu.matmul %64, %65, %cst_31 {dimension_numbers = #tpu.dot_dimension_numbers<[2], [1], [1], [2], [0, 0, 0, 1, 1, 2], [0], [0]>} : vector<2x8x8xf32>, vector<2x8x8xf32>, vector<2x8x8xf32> -> vector<2x8x8xf32>
    "tpu.trace_stop"() : () -> ()
    %67 = vector.extract_strided_slice %45 {offsets = [0, 0, 8], sizes = [2, 8, 8], strides = [1, 1, 1]} : vector<2x8x32xf32> to vector<2x8x8xf32>
    %68 = vector.extract_strided_slice %46 {offsets = [0, 0, 8], sizes = [2, 8, 8], strides = [1, 1, 1]} : vector<2x8x32xf32> to vector<2x8x8xf32>
    "tpu.trace_start"() <{level = 10 : i32, message = "bqd,bkd->bqk"}> : () -> ()
    %cst_32 = arith.constant dense<0.000000e+00> : vector<2x8x8xf32>
    %69 = tpu.matmul %67, %68, %cst_32 {dimension_numbers = #tpu.dot_dimension_numbers<[2], [2], [1], [1], [0, 0, 0, 1, 1, 1], [0], [0]>} : vector<2x8x8xf32>, vector<2x8x8xf32>, vector<2x8x8xf32> -> vector<2x8x8xf32>
    "tpu.trace_stop"() : () -> ()
    %cst_33 = arith.constant 0.353553385 : f32
    %70 = vector.broadcast %cst_33 : f32 to vector<2x8x8xf32>
    %71 = arith.mulf %69, %70 : vector<2x8x8xf32>
    %cst_34 = arith.constant -1.000000e+09 : f32
    %72 = vector.broadcast %cst_34 : f32 to vector<2x8x8xf32>
    %73 = arith.select %6, %72, %71 : vector<2x8x8xi1>, vector<2x8x8xf32>
    %cst_35 = arith.constant dense<0xFF800000> : vector<2x8xf32>
    %74 = vector.multi_reduction <maximumf>, %73, %cst_35 [2] : vector<2x8x8xf32> to vector<2x8xf32>
    %75 = vector.shape_cast %74 : vector<2x8xf32> to vector<2x8x1xf32>
    %76 = vector.broadcast %75 : vector<2x8x1xf32> to vector<2x8x8xf32>
    %77 = arith.subf %73, %76 : vector<2x8x8xf32>
    %78 = math.exp %77 : vector<2x8x8xf32>
    %cst_36 = arith.constant dense<0.000000e+00> : vector<2x8xf32>
    %79 = vector.multi_reduction <add>, %78, %cst_36 [2] : vector<2x8x8xf32> to vector<2x8xf32>
    %80 = vector.shape_cast %79 : vector<2x8xf32> to vector<2x8x1xf32>
    %81 = tpu.reciprocal %80 {approx = true} : vector<2x8x1xf32> -> vector<2x8x1xf32>
    %82 = vector.broadcast %81 : vector<2x8x1xf32> to vector<2x8x8xf32>
    %83 = arith.mulf %78, %82 : vector<2x8x8xf32>
    %84 = vector.extract_strided_slice %47 {offsets = [0, 0, 8], sizes = [2, 8, 8], strides = [1, 1, 1]} : vector<2x8x32xf32> to vector<2x8x8xf32>
    "tpu.trace_start"() <{level = 10 : i32, message = "bqk,bkd->bqd"}> : () -> ()
    %cst_37 = arith.constant dense<0.000000e+00> : vector<2x8x8xf32>
    %85 = tpu.matmul %83, %84, %cst_37 {dimension_numbers = #tpu.dot_dimension_numbers<[2], [1], [1], [2], [0, 0, 0, 1, 1, 2], [0], [0]>} : vector<2x8x8xf32>, vector<2x8x8xf32>, vector<2x8x8xf32> -> vector<2x8x8xf32>
    "tpu.trace_stop"() : () -> ()
    %86 = vector.extract_strided_slice %45 {offsets = [0, 0, 16], sizes = [2, 8, 8], strides = [1, 1, 1]} : vector<2x8x32xf32> to vector<2x8x8xf32>
    %87 = vector.extract_strided_slice %46 {offsets = [0, 0, 16], sizes = [2, 8, 8], strides = [1, 1, 1]} : vector<2x8x32xf32> to vector<2x8x8xf32>
    "tpu.trace_start"() <{level = 10 : i32, message = "bqd,bkd->bqk"}> : () -> ()
    %cst_38 = arith.constant dense<0.000000e+00> : vector<2x8x8xf32>
    %88 = tpu.matmul %86, %87, %cst_38 {dimension_numbers = #tpu.dot_dimension_numbers<[2], [2], [1], [1], [0, 0, 0, 1, 1, 1], [0], [0]>} : vector<2x8x8xf32>, vector<2x8x8xf32>, vector<2x8x8xf32> -> vector<2x8x8xf32>
    "tpu.trace_stop"() : () -> ()
    %cst_39 = arith.constant 0.353553385 : f32
    %89 = vector.broadcast %cst_39 : f32 to vector<2x8x8xf32>
    %90 = arith.mulf %88, %89 : vector<2x8x8xf32>
    %cst_40 = arith.constant -1.000000e+09 : f32
    %91 = vector.broadcast %cst_40 : f32 to vector<2x8x8xf32>
    %92 = arith.select %6, %91, %90 : vector<2x8x8xi1>, vector<2x8x8xf32>
    %cst_41 = arith.constant dense<0xFF800000> : vector<2x8xf32>
    %93 = vector.multi_reduction <maximumf>, %92, %cst_41 [2] : vector<2x8x8xf32> to vector<2x8xf32>
    %94 = vector.shape_cast %93 : vector<2x8xf32> to vector<2x8x1xf32>
    %95 = vector.broadcast %94 : vector<2x8x1xf32> to vector<2x8x8xf32>
    %96 = arith.subf %92, %95 : vector<2x8x8xf32>
    %97 = math.exp %96 : vector<2x8x8xf32>
    %cst_42 = arith.constant dense<0.000000e+00> : vector<2x8xf32>
    %98 = vector.multi_reduction <add>, %97, %cst_42 [2] : vector<2x8x8xf32> to vector<2x8xf32>
    %99 = vector.shape_cast %98 : vector<2x8xf32> to vector<2x8x1xf32>
    %100 = tpu.reciprocal %99 {approx = true} : vector<2x8x1xf32> -> vector<2x8x1xf32>
    %101 = vector.broadcast %100 : vector<2x8x1xf32> to vector<2x8x8xf32>
    %102 = arith.mulf %97, %101 : vector<2x8x8xf32>
    %103 = vector.extract_strided_slice %47 {offsets = [0, 0, 16], sizes = [2, 8, 8], strides = [1, 1, 1]} : vector<2x8x32xf32> to vector<2x8x8xf32>
    "tpu.trace_start"() <{level = 10 : i32, message = "bqk,bkd->bqd"}> : () -> ()
    %cst_43 = arith.constant dense<0.000000e+00> : vector<2x8x8xf32>
    %104 = tpu.matmul %102, %103, %cst_43 {dimension_numbers = #tpu.dot_dimension_numbers<[2], [1], [1], [2], [0, 0, 0, 1, 1, 2], [0], [0]>} : vector<2x8x8xf32>, vector<2x8x8xf32>, vector<2x8x8xf32> -> vector<2x8x8xf32>
    "tpu.trace_stop"() : () -> ()
    %105 = vector.extract_strided_slice %45 {offsets = [0, 0, 24], sizes = [2, 8, 8], strides = [1, 1, 1]} : vector<2x8x32xf32> to vector<2x8x8xf32>
    %106 = vector.extract_strided_slice %46 {offsets = [0, 0, 24], sizes = [2, 8, 8], strides = [1, 1, 1]} : vector<2x8x32xf32> to vector<2x8x8xf32>
    "tpu.trace_start"() <{level = 10 : i32, message = "bqd,bkd->bqk"}> : () -> ()
    %cst_44 = arith.constant dense<0.000000e+00> : vector<2x8x8xf32>
    %107 = tpu.matmul %105, %106, %cst_44 {dimension_numbers = #tpu.dot_dimension_numbers<[2], [2], [1], [1], [0, 0, 0, 1, 1, 1], [0], [0]>} : vector<2x8x8xf32>, vector<2x8x8xf32>, vector<2x8x8xf32> -> vector<2x8x8xf32>
    "tpu.trace_stop"() : () -> ()
    %cst_45 = arith.constant 0.353553385 : f32
    %108 = vector.broadcast %cst_45 : f32 to vector<2x8x8xf32>
    %109 = arith.mulf %107, %108 : vector<2x8x8xf32>
    %cst_46 = arith.constant -1.000000e+09 : f32
    %110 = vector.broadcast %cst_46 : f32 to vector<2x8x8xf32>
    %111 = arith.select %6, %110, %109 : vector<2x8x8xi1>, vector<2x8x8xf32>
    %cst_47 = arith.constant dense<0xFF800000> : vector<2x8xf32>
    %112 = vector.multi_reduction <maximumf>, %111, %cst_47 [2] : vector<2x8x8xf32> to vector<2x8xf32>
    %113 = vector.shape_cast %112 : vector<2x8xf32> to vector<2x8x1xf32>
    %114 = vector.broadcast %113 : vector<2x8x1xf32> to vector<2x8x8xf32>
    %115 = arith.subf %111, %114 : vector<2x8x8xf32>
    %116 = math.exp %115 : vector<2x8x8xf32>
    %cst_48 = arith.constant dense<0.000000e+00> : vector<2x8xf32>
    %117 = vector.multi_reduction <add>, %116, %cst_48 [2] : vector<2x8x8xf32> to vector<2x8xf32>
    %118 = vector.shape_cast %117 : vector<2x8xf32> to vector<2x8x1xf32>
    %119 = tpu.reciprocal %118 {approx = true} : vector<2x8x1xf32> -> vector<2x8x1xf32>
    %120 = vector.broadcast %119 : vector<2x8x1xf32> to vector<2x8x8xf32>
    %121 = arith.mulf %116, %120 : vector<2x8x8xf32>
    %122 = vector.extract_strided_slice %47 {offsets = [0, 0, 24], sizes = [2, 8, 8], strides = [1, 1, 1]} : vector<2x8x32xf32> to vector<2x8x8xf32>
    "tpu.trace_start"() <{level = 10 : i32, message = "bqk,bkd->bqd"}> : () -> ()
    %cst_49 = arith.constant dense<0.000000e+00> : vector<2x8x8xf32>
    %123 = tpu.matmul %121, %122, %cst_49 {dimension_numbers = #tpu.dot_dimension_numbers<[2], [1], [1], [2], [0, 0, 0, 1, 1, 2], [0], [0]>} : vector<2x8x8xf32>, vector<2x8x8xf32>, vector<2x8x8xf32> -> vector<2x8x8xf32>
    "tpu.trace_stop"() : () -> ()
    %124 = tpu.concatenate %66, %85, %104, %123 in 2 : vector<2x8x8xf32>, vector<2x8x8xf32>, vector<2x8x8xf32>, vector<2x8x8xf32> -> vector<2x8x32xf32>
    %125 = vector.shape_cast %124 : vector<2x8x32xf32> to vector<16x32xf32>
    %cst_50 = arith.constant dense<0.000000e+00> : vector<16x32xf32>
    %126 = tpu.matmul %125, %43, %cst_50 {dimension_numbers = #tpu.dot_dimension_numbers<[1], [0], [0], [1], [0, 0, 1, 1], [], []>} : vector<16x32xf32>, vector<32x32xf32>, vector<16x32xf32> -> vector<16x32xf32>
    %127 = vector.broadcast %44 : vector<1x32xf32> to vector<16x32xf32>
    %128 = arith.addf %126, %127 : vector<16x32xf32>
    %129 = arith.addf %1, %128 : vector<16x32xf32>
    %c9 = arith.constant 9 : index
    %c0_51 = arith.constant 0 : index
    %130 = vector.load %arg6[%c9, %c0_51] : memref<16x128xf32, #tpu.memory_space<vmem>>, vector<1x32xf32>
    %c10 = arith.constant 10 : index
    %c0_52 = arith.constant 0 : index
    %131 = vector.load %arg6[%c10, %c0_52] : memref<16x128xf32, #tpu.memory_space<vmem>>, vector<1x32xf32>
    %cst_53 = arith.constant dense<0.000000e+00> : vector<16xf32>
    %132 = vector.multi_reduction <add>, %129, %cst_53 [1] : vector<16x32xf32> to vector<16xf32>
    %133 = vector.shape_cast %132 : vector<16xf32> to vector<16x1xf32>
    %cst_54 = arith.constant 3.200000e+01 : f32
    %134 = vector.broadcast %cst_54 : f32 to vector<16x1xf32>
    %135 = arith.divf %133, %134 : vector<16x1xf32>
    %136 = vector.broadcast %135 : vector<16x1xf32> to vector<16x32xf32>
    %137 = arith.subf %129, %136 : vector<16x32xf32>
    %138 = arith.mulf %137, %137 : vector<16x32xf32>
    %cst_55 = arith.constant dense<0.000000e+00> : vector<16xf32>
    %139 = vector.multi_reduction <add>, %138, %cst_55 [1] : vector<16x32xf32> to vector<16xf32>
    %140 = vector.shape_cast %139 : vector<16xf32> to vector<16x1xf32>
    %cst_56 = arith.constant 0.0322580636 : f32
    %141 = vector.broadcast %cst_56 : f32 to vector<16x1xf32>
    %142 = arith.mulf %140, %141 : vector<16x1xf32>
    %143 = math.sqrt %142 : vector<16x1xf32>
    %cst_57 = arith.constant 9.99999997E-7 : f32
    %144 = vector.broadcast %cst_57 : f32 to vector<16x1xf32>
    %145 = arith.addf %143, %144 : vector<16x1xf32>
    %146 = tpu.reciprocal %145 : vector<16x1xf32> -> vector<16x1xf32>
    %147 = vector.broadcast %135 : vector<16x1xf32> to vector<16x32xf32>
    %148 = arith.subf %129, %147 : vector<16x32xf32>
    %149 = vector.broadcast %130 : vector<1x32xf32> to vector<16x32xf32>
    %150 = arith.mulf %149, %148 : vector<16x32xf32>
    %151 = vector.broadcast %146 : vector<16x1xf32> to vector<16x32xf32>
    %152 = arith.mulf %150, %151 : vector<16x32xf32>
    %153 = vector.broadcast %131 : vector<1x32xf32> to vector<16x32xf32>
    %154 = arith.addf %152, %153 : vector<16x32xf32>
    %c0_58 = arith.constant 0 : index
    %c128 = arith.constant 128 : index
    %155 = vector.load %arg4[%c0_58, %c128] : memref<32x768xf32, #tpu.memory_space<vmem>>, vector<32x32xf32>
    %cst_59 = arith.constant dense<0.000000e+00> : vector<16x32xf32>
    %156 = tpu.matmul %154, %155, %cst_59 {dimension_numbers = #tpu.dot_dimension_numbers<[1], [0], [0], [1], [0, 0, 1, 1], [], []>} : vector<16x32xf32>, vector<32x32xf32>, vector<16x32xf32> -> vector<16x32xf32>
    %c1 = arith.constant 1 : index
    %c0_60 = arith.constant 0 : index
    %157 = vector.load %arg6[%c1, %c0_60] : memref<16x128xf32, #tpu.memory_space<vmem>>, vector<1x32xf32>
    %158 = vector.broadcast %157 : vector<1x32xf32> to vector<16x32xf32>
    %159 = arith.addf %156, %158 : vector<16x32xf32>
    %c0_61 = arith.constant 0 : index
    %c256 = arith.constant 256 : index
    %160 = vector.load %arg4[%c0_61, %c256] : memref<32x768xf32, #tpu.memory_space<vmem>>, vector<32x64xf32>
    %cst_62 = arith.constant dense<0.000000e+00> : vector<16x64xf32>
    %161 = tpu.matmul %3, %160, %cst_62 {dimension_numbers = #tpu.dot_dimension_numbers<[1], [0], [0], [1], [0, 0, 1, 1], [], []>} : vector<16x32xf32>, vector<32x64xf32>, vector<16x64xf32> -> vector<16x64xf32>
    %c2 = arith.constant 2 : index
    %c0_63 = arith.constant 0 : index
    %162 = vector.load %arg6[%c2, %c0_63] : memref<16x128xf32, #tpu.memory_space<vmem>>, vector<1x64xf32>
    %163 = vector.broadcast %162 : vector<1x64xf32> to vector<16x64xf32>
    %164 = arith.addf %161, %163 : vector<16x64xf32>
    %165 = vector.extract_strided_slice %164 {offsets = [0, 0], sizes = [16, 32], strides = [1, 1]} : vector<16x64xf32> to vector<16x32xf32>
    %166 = vector.extract_strided_slice %164 {offsets = [0, 32], sizes = [16, 32], strides = [1, 1]} : vector<16x64xf32> to vector<16x32xf32>
    %c0_64 = arith.constant 0 : index
    %c512 = arith.constant 512 : index
    %167 = vector.load %arg4[%c0_64, %c512] : memref<32x768xf32, #tpu.memory_space<vmem>>, vector<32x32xf32>
    %c4 = arith.constant 4 : index
    %c0_65 = arith.constant 0 : index
    %168 = vector.load %arg6[%c4, %c0_65] : memref<16x128xf32, #tpu.memory_space<vmem>>, vector<1x32xf32>
    %169 = vector.shape_cast %159 : vector<16x32xf32> to vector<2x8x32xf32>
    %170 = vector.shape_cast %165 : vector<16x32xf32> to vector<2x8x32xf32>
    %171 = vector.shape_cast %166 : vector<16x32xf32> to vector<2x8x32xf32>
    %172 = vector.extract_strided_slice %169 {offsets = [0, 0, 0], sizes = [2, 8, 8], strides = [1, 1, 1]} : vector<2x8x32xf32> to vector<2x8x8xf32>
    %173 = vector.extract_strided_slice %170 {offsets = [0, 0, 0], sizes = [2, 8, 8], strides = [1, 1, 1]} : vector<2x8x32xf32> to vector<2x8x8xf32>
    "tpu.trace_start"() <{level = 10 : i32, message = "bqd,bkd->bqk"}> : () -> ()
    %cst_66 = arith.constant dense<0.000000e+00> : vector<2x8x8xf32>
    %174 = tpu.matmul %172, %173, %cst_66 {dimension_numbers = #tpu.dot_dimension_numbers<[2], [2], [1], [1], [0, 0, 0, 1, 1, 1], [0], [0]>} : vector<2x8x8xf32>, vector<2x8x8xf32>, vector<2x8x8xf32> -> vector<2x8x8xf32>
    "tpu.trace_stop"() : () -> ()
    %cst_67 = arith.constant 0.353553385 : f32
    %175 = vector.broadcast %cst_67 : f32 to vector<2x8x8xf32>
    %176 = arith.mulf %174, %175 : vector<2x8x8xf32>
    %cst_68 = arith.constant -1.000000e+09 : f32
    %177 = vector.broadcast %cst_68 : f32 to vector<2x8x8xf32>
    %178 = arith.select %9, %177, %176 : vector<2x8x8xi1>, vector<2x8x8xf32>
    %cst_69 = arith.constant dense<0xFF800000> : vector<2x8xf32>
    %179 = vector.multi_reduction <maximumf>, %178, %cst_69 [2] : vector<2x8x8xf32> to vector<2x8xf32>
    %180 = vector.shape_cast %179 : vector<2x8xf32> to vector<2x8x1xf32>
    %181 = vector.broadcast %180 : vector<2x8x1xf32> to vector<2x8x8xf32>
    %182 = arith.subf %178, %181 : vector<2x8x8xf32>
    %183 = math.exp %182 : vector<2x8x8xf32>
    %cst_70 = arith.constant dense<0.000000e+00> : vector<2x8xf32>
    %184 = vector.multi_reduction <add>, %183, %cst_70 [2] : vector<2x8x8xf32> to vector<2x8xf32>
    %185 = vector.shape_cast %184 : vector<2x8xf32> to vector<2x8x1xf32>
    %186 = tpu.reciprocal %185 {approx = true} : vector<2x8x1xf32> -> vector<2x8x1xf32>
    %187 = vector.broadcast %186 : vector<2x8x1xf32> to vector<2x8x8xf32>
    %188 = arith.mulf %183, %187 : vector<2x8x8xf32>
    %189 = vector.extract_strided_slice %171 {offsets = [0, 0, 0], sizes = [2, 8, 8], strides = [1, 1, 1]} : vector<2x8x32xf32> to vector<2x8x8xf32>
    "tpu.trace_start"() <{level = 10 : i32, message = "bqk,bkd->bqd"}> : () -> ()
    %cst_71 = arith.constant dense<0.000000e+00> : vector<2x8x8xf32>
    %190 = tpu.matmul %188, %189, %cst_71 {dimension_numbers = #tpu.dot_dimension_numbers<[2], [1], [1], [2], [0, 0, 0, 1, 1, 2], [0], [0]>} : vector<2x8x8xf32>, vector<2x8x8xf32>, vector<2x8x8xf32> -> vector<2x8x8xf32>
    "tpu.trace_stop"() : () -> ()
    %191 = vector.extract_strided_slice %169 {offsets = [0, 0, 8], sizes = [2, 8, 8], strides = [1, 1, 1]} : vector<2x8x32xf32> to vector<2x8x8xf32>
    %192 = vector.extract_strided_slice %170 {offsets = [0, 0, 8], sizes = [2, 8, 8], strides = [1, 1, 1]} : vector<2x8x32xf32> to vector<2x8x8xf32>
    "tpu.trace_start"() <{level = 10 : i32, message = "bqd,bkd->bqk"}> : () -> ()
    %cst_72 = arith.constant dense<0.000000e+00> : vector<2x8x8xf32>
    %193 = tpu.matmul %191, %192, %cst_72 {dimension_numbers = #tpu.dot_dimension_numbers<[2], [2], [1], [1], [0, 0, 0, 1, 1, 1], [0], [0]>} : vector<2x8x8xf32>, vector<2x8x8xf32>, vector<2x8x8xf32> -> vector<2x8x8xf32>
    "tpu.trace_stop"() : () -> ()
    %cst_73 = arith.constant 0.353553385 : f32
    %194 = vector.broadcast %cst_73 : f32 to vector<2x8x8xf32>
    %195 = arith.mulf %193, %194 : vector<2x8x8xf32>
    %cst_74 = arith.constant -1.000000e+09 : f32
    %196 = vector.broadcast %cst_74 : f32 to vector<2x8x8xf32>
    %197 = arith.select %9, %196, %195 : vector<2x8x8xi1>, vector<2x8x8xf32>
    %cst_75 = arith.constant dense<0xFF800000> : vector<2x8xf32>
    %198 = vector.multi_reduction <maximumf>, %197, %cst_75 [2] : vector<2x8x8xf32> to vector<2x8xf32>
    %199 = vector.shape_cast %198 : vector<2x8xf32> to vector<2x8x1xf32>
    %200 = vector.broadcast %199 : vector<2x8x1xf32> to vector<2x8x8xf32>
    %201 = arith.subf %197, %200 : vector<2x8x8xf32>
    %202 = math.exp %201 : vector<2x8x8xf32>
    %cst_76 = arith.constant dense<0.000000e+00> : vector<2x8xf32>
    %203 = vector.multi_reduction <add>, %202, %cst_76 [2] : vector<2x8x8xf32> to vector<2x8xf32>
    %204 = vector.shape_cast %203 : vector<2x8xf32> to vector<2x8x1xf32>
    %205 = tpu.reciprocal %204 {approx = true} : vector<2x8x1xf32> -> vector<2x8x1xf32>
    %206 = vector.broadcast %205 : vector<2x8x1xf32> to vector<2x8x8xf32>
    %207 = arith.mulf %202, %206 : vector<2x8x8xf32>
    %208 = vector.extract_strided_slice %171 {offsets = [0, 0, 8], sizes = [2, 8, 8], strides = [1, 1, 1]} : vector<2x8x32xf32> to vector<2x8x8xf32>
    "tpu.trace_start"() <{level = 10 : i32, message = "bqk,bkd->bqd"}> : () -> ()
    %cst_77 = arith.constant dense<0.000000e+00> : vector<2x8x8xf32>
    %209 = tpu.matmul %207, %208, %cst_77 {dimension_numbers = #tpu.dot_dimension_numbers<[2], [1], [1], [2], [0, 0, 0, 1, 1, 2], [0], [0]>} : vector<2x8x8xf32>, vector<2x8x8xf32>, vector<2x8x8xf32> -> vector<2x8x8xf32>
    "tpu.trace_stop"() : () -> ()
    %210 = vector.extract_strided_slice %169 {offsets = [0, 0, 16], sizes = [2, 8, 8], strides = [1, 1, 1]} : vector<2x8x32xf32> to vector<2x8x8xf32>
    %211 = vector.extract_strided_slice %170 {offsets = [0, 0, 16], sizes = [2, 8, 8], strides = [1, 1, 1]} : vector<2x8x32xf32> to vector<2x8x8xf32>
    "tpu.trace_start"() <{level = 10 : i32, message = "bqd,bkd->bqk"}> : () -> ()
    %cst_78 = arith.constant dense<0.000000e+00> : vector<2x8x8xf32>
    %212 = tpu.matmul %210, %211, %cst_78 {dimension_numbers = #tpu.dot_dimension_numbers<[2], [2], [1], [1], [0, 0, 0, 1, 1, 1], [0], [0]>} : vector<2x8x8xf32>, vector<2x8x8xf32>, vector<2x8x8xf32> -> vector<2x8x8xf32>
    "tpu.trace_stop"() : () -> ()
    %cst_79 = arith.constant 0.353553385 : f32
    %213 = vector.broadcast %cst_79 : f32 to vector<2x8x8xf32>
    %214 = arith.mulf %212, %213 : vector<2x8x8xf32>
    %cst_80 = arith.constant -1.000000e+09 : f32
    %215 = vector.broadcast %cst_80 : f32 to vector<2x8x8xf32>
    %216 = arith.select %9, %215, %214 : vector<2x8x8xi1>, vector<2x8x8xf32>
    %cst_81 = arith.constant dense<0xFF800000> : vector<2x8xf32>
    %217 = vector.multi_reduction <maximumf>, %216, %cst_81 [2] : vector<2x8x8xf32> to vector<2x8xf32>
    %218 = vector.shape_cast %217 : vector<2x8xf32> to vector<2x8x1xf32>
    %219 = vector.broadcast %218 : vector<2x8x1xf32> to vector<2x8x8xf32>
    %220 = arith.subf %216, %219 : vector<2x8x8xf32>
    %221 = math.exp %220 : vector<2x8x8xf32>
    %cst_82 = arith.constant dense<0.000000e+00> : vector<2x8xf32>
    %222 = vector.multi_reduction <add>, %221, %cst_82 [2] : vector<2x8x8xf32> to vector<2x8xf32>
    %223 = vector.shape_cast %222 : vector<2x8xf32> to vector<2x8x1xf32>
    %224 = tpu.reciprocal %223 {approx = true} : vector<2x8x1xf32> -> vector<2x8x1xf32>
    %225 = vector.broadcast %224 : vector<2x8x1xf32> to vector<2x8x8xf32>
    %226 = arith.mulf %221, %225 : vector<2x8x8xf32>
    %227 = vector.extract_strided_slice %171 {offsets = [0, 0, 16], sizes = [2, 8, 8], strides = [1, 1, 1]} : vector<2x8x32xf32> to vector<2x8x8xf32>
    "tpu.trace_start"() <{level = 10 : i32, message = "bqk,bkd->bqd"}> : () -> ()
    %cst_83 = arith.constant dense<0.000000e+00> : vector<2x8x8xf32>
    %228 = tpu.matmul %226, %227, %cst_83 {dimension_numbers = #tpu.dot_dimension_numbers<[2], [1], [1], [2], [0, 0, 0, 1, 1, 2], [0], [0]>} : vector<2x8x8xf32>, vector<2x8x8xf32>, vector<2x8x8xf32> -> vector<2x8x8xf32>
    "tpu.trace_stop"() : () -> ()
    %229 = vector.extract_strided_slice %169 {offsets = [0, 0, 24], sizes = [2, 8, 8], strides = [1, 1, 1]} : vector<2x8x32xf32> to vector<2x8x8xf32>
    %230 = vector.extract_strided_slice %170 {offsets = [0, 0, 24], sizes = [2, 8, 8], strides = [1, 1, 1]} : vector<2x8x32xf32> to vector<2x8x8xf32>
    "tpu.trace_start"() <{level = 10 : i32, message = "bqd,bkd->bqk"}> : () -> ()
    %cst_84 = arith.constant dense<0.000000e+00> : vector<2x8x8xf32>
    %231 = tpu.matmul %229, %230, %cst_84 {dimension_numbers = #tpu.dot_dimension_numbers<[2], [2], [1], [1], [0, 0, 0, 1, 1, 1], [0], [0]>} : vector<2x8x8xf32>, vector<2x8x8xf32>, vector<2x8x8xf32> -> vector<2x8x8xf32>
    "tpu.trace_stop"() : () -> ()
    %cst_85 = arith.constant 0.353553385 : f32
    %232 = vector.broadcast %cst_85 : f32 to vector<2x8x8xf32>
    %233 = arith.mulf %231, %232 : vector<2x8x8xf32>
    %cst_86 = arith.constant -1.000000e+09 : f32
    %234 = vector.broadcast %cst_86 : f32 to vector<2x8x8xf32>
    %235 = arith.select %9, %234, %233 : vector<2x8x8xi1>, vector<2x8x8xf32>
    %cst_87 = arith.constant dense<0xFF800000> : vector<2x8xf32>
    %236 = vector.multi_reduction <maximumf>, %235, %cst_87 [2] : vector<2x8x8xf32> to vector<2x8xf32>
    %237 = vector.shape_cast %236 : vector<2x8xf32> to vector<2x8x1xf32>
    %238 = vector.broadcast %237 : vector<2x8x1xf32> to vector<2x8x8xf32>
    %239 = arith.subf %235, %238 : vector<2x8x8xf32>
    %240 = math.exp %239 : vector<2x8x8xf32>
    %cst_88 = arith.constant dense<0.000000e+00> : vector<2x8xf32>
    %241 = vector.multi_reduction <add>, %240, %cst_88 [2] : vector<2x8x8xf32> to vector<2x8xf32>
    %242 = vector.shape_cast %241 : vector<2x8xf32> to vector<2x8x1xf32>
    %243 = tpu.reciprocal %242 {approx = true} : vector<2x8x1xf32> -> vector<2x8x1xf32>
    %244 = vector.broadcast %243 : vector<2x8x1xf32> to vector<2x8x8xf32>
    %245 = arith.mulf %240, %244 : vector<2x8x8xf32>
    %246 = vector.extract_strided_slice %171 {offsets = [0, 0, 24], sizes = [2, 8, 8], strides = [1, 1, 1]} : vector<2x8x32xf32> to vector<2x8x8xf32>
    "tpu.trace_start"() <{level = 10 : i32, message = "bqk,bkd->bqd"}> : () -> ()
    %cst_89 = arith.constant dense<0.000000e+00> : vector<2x8x8xf32>
    %247 = tpu.matmul %245, %246, %cst_89 {dimension_numbers = #tpu.dot_dimension_numbers<[2], [1], [1], [2], [0, 0, 0, 1, 1, 2], [0], [0]>} : vector<2x8x8xf32>, vector<2x8x8xf32>, vector<2x8x8xf32> -> vector<2x8x8xf32>
    "tpu.trace_stop"() : () -> ()
    %248 = tpu.concatenate %190, %209, %228, %247 in 2 : vector<2x8x8xf32>, vector<2x8x8xf32>, vector<2x8x8xf32>, vector<2x8x8xf32> -> vector<2x8x32xf32>
    %249 = vector.shape_cast %248 : vector<2x8x32xf32> to vector<16x32xf32>
    %cst_90 = arith.constant dense<0.000000e+00> : vector<16x32xf32>
    %250 = tpu.matmul %249, %167, %cst_90 {dimension_numbers = #tpu.dot_dimension_numbers<[1], [0], [0], [1], [0, 0, 1, 1], [], []>} : vector<16x32xf32>, vector<32x32xf32>, vector<16x32xf32> -> vector<16x32xf32>
    %251 = vector.broadcast %168 : vector<1x32xf32> to vector<16x32xf32>
    %252 = arith.addf %250, %251 : vector<16x32xf32>
    %253 = arith.addf %129, %252 : vector<16x32xf32>
    %c11 = arith.constant 11 : index
    %c0_91 = arith.constant 0 : index
    %254 = vector.load %arg6[%c11, %c0_91] : memref<16x128xf32, #tpu.memory_space<vmem>>, vector<1x32xf32>
    %c12 = arith.constant 12 : index
    %c0_92 = arith.constant 0 : index
    %255 = vector.load %arg6[%c12, %c0_92] : memref<16x128xf32, #tpu.memory_space<vmem>>, vector<1x32xf32>
    %cst_93 = arith.constant dense<0.000000e+00> : vector<16xf32>
    %256 = vector.multi_reduction <add>, %253, %cst_93 [1] : vector<16x32xf32> to vector<16xf32>
    %257 = vector.shape_cast %256 : vector<16xf32> to vector<16x1xf32>
    %cst_94 = arith.constant 3.200000e+01 : f32
    %258 = vector.broadcast %cst_94 : f32 to vector<16x1xf32>
    %259 = arith.divf %257, %258 : vector<16x1xf32>
    %260 = vector.broadcast %259 : vector<16x1xf32> to vector<16x32xf32>
    %261 = arith.subf %253, %260 : vector<16x32xf32>
    %262 = arith.mulf %261, %261 : vector<16x32xf32>
    %cst_95 = arith.constant dense<0.000000e+00> : vector<16xf32>
    %263 = vector.multi_reduction <add>, %262, %cst_95 [1] : vector<16x32xf32> to vector<16xf32>
    %264 = vector.shape_cast %263 : vector<16xf32> to vector<16x1xf32>
    %cst_96 = arith.constant 0.0322580636 : f32
    %265 = vector.broadcast %cst_96 : f32 to vector<16x1xf32>
    %266 = arith.mulf %264, %265 : vector<16x1xf32>
    %267 = math.sqrt %266 : vector<16x1xf32>
    %cst_97 = arith.constant 9.99999997E-7 : f32
    %268 = vector.broadcast %cst_97 : f32 to vector<16x1xf32>
    %269 = arith.addf %267, %268 : vector<16x1xf32>
    %270 = tpu.reciprocal %269 : vector<16x1xf32> -> vector<16x1xf32>
    %271 = vector.broadcast %259 : vector<16x1xf32> to vector<16x32xf32>
    %272 = arith.subf %253, %271 : vector<16x32xf32>
    %273 = vector.broadcast %254 : vector<1x32xf32> to vector<16x32xf32>
    %274 = arith.mulf %273, %272 : vector<16x32xf32>
    %275 = vector.broadcast %270 : vector<16x1xf32> to vector<16x32xf32>
    %276 = arith.mulf %274, %275 : vector<16x32xf32>
    %277 = vector.broadcast %255 : vector<1x32xf32> to vector<16x32xf32>
    %278 = arith.addf %276, %277 : vector<16x32xf32>
    %c0_98 = arith.constant 0 : index
    %c640 = arith.constant 640 : index
    %279 = vector.load %arg4[%c0_98, %c640] : memref<32x768xf32, #tpu.memory_space<vmem>>, vector<32x64xf32>
    %cst_99 = arith.constant dense<0.000000e+00> : vector<16x64xf32>
    %280 = tpu.matmul %278, %279, %cst_99 {dimension_numbers = #tpu.dot_dimension_numbers<[1], [0], [0], [1], [0, 0, 1, 1], [], []>} : vector<16x32xf32>, vector<32x64xf32>, vector<16x64xf32> -> vector<16x64xf32>
    %c5 = arith.constant 5 : index
    %c0_100 = arith.constant 0 : index
    %281 = vector.load %arg6[%c5, %c0_100] : memref<16x128xf32, #tpu.memory_space<vmem>>, vector<1x64xf32>
    %282 = vector.broadcast %281 : vector<1x64xf32> to vector<16x64xf32>
    %283 = arith.addf %280, %282 : vector<16x64xf32>
    %cst_101 = arith.constant 0.000000e+00 : f32
    %284 = vector.broadcast %cst_101 : f32 to vector<16x64xf32>
    %285 = arith.maximumf %283, %284 : vector<16x64xf32>
    %c0_102 = arith.constant 0 : index
    %c0_103 = arith.constant 0 : index
    %286 = vector.load %arg5[%c0_102, %c0_103] : memref<64x32xf32, #tpu.memory_space<vmem>>, vector<64x32xf32>
    %cst_104 = arith.constant dense<0.000000e+00> : vector<16x32xf32>
    %287 = tpu.matmul %285, %286, %cst_104 {dimension_numbers = #tpu.dot_dimension_numbers<[1], [0], [0], [1], [0, 0, 1, 1], [], []>} : vector<16x64xf32>, vector<64x32xf32>, vector<16x32xf32> -> vector<16x32xf32>
    %288 = arith.addf %253, %287 : vector<16x32xf32>
    %c6 = arith.constant 6 : index
    %c0_105 = arith.constant 0 : index
    %289 = vector.load %arg6[%c6, %c0_105] : memref<16x128xf32, #tpu.memory_space<vmem>>, vector<1x32xf32>
    %290 = vector.broadcast %289 : vector<1x32xf32> to vector<16x32xf32>
    %291 = arith.addf %288, %290 : vector<16x32xf32>
    %292 = vector.shape_cast %291 : vector<16x32xf32> to vector<2x8x32xf32>
    %c0_106 = arith.constant 0 : index
    %c0_107 = arith.constant 0 : index
    %c0_108 = arith.constant 0 : index
    %293 = vector.load %arg7[%c0_106, %c0_107, %c0_108] : memref<2x8x32xf32, #tpu.memory_space<vmem>>, vector<2x8x32xf32>
    tpu.vector_store %arg7[%c0_106, %c0_107, %c0_108], %292 {strides = array<i32>} : memref<2x8x32xf32, #tpu.memory_space<vmem>>, vector<2x8x32xf32>,
    return
  }
}

</mosaic_0001>

<llo_original>
// kernel: tpu_custom_call.1
$region0: #{tpu_custom_call.1}
  #allocation0 [shape = 'u32[]', space=smem, size = 0x4, offset = 0x4, fixed_abs, tag = 'smem constant byte address 0x4 - core index']
  #allocation1 [shape = 'u32[144,128]{1,0:T(1,128)}', space=vmem, size = 0x12000, scoped, tag = 'internal scratch']
  %s0 = inlined_call_operand.vmem [shape: f32[2,8,32], index: 0, kind: input, shape index: {}]
  %s1 = inlined_call_operand.vmem [shape: f32[2,8,32], index: 1, kind: input, shape index: {}]
  %s2 = inlined_call_operand.vmem [shape: f32[2,8,8], index: 2, kind: input, shape index: {}]
  %s3 = inlined_call_operand.vmem [shape: f32[2,8,8], index: 3, kind: input, shape index: {}]
  %s4 = inlined_call_operand.hbm [shape: f32[32,768], index: 4, kind: input, shape index: {}]
  %s5 = inlined_call_operand.vmem [shape: f32[64,32], index: 5, kind: input, shape index: {}]
  %s6 = inlined_call_operand.vmem [shape: f32[16,128], index: 6, kind: input, shape index: {}]
  %s7 = inlined_call_operand.hbm [shape: f32[2,8,32], index: 7, kind: output, shape index: {}]
  %s8 = sld [smem:[#allocation0]]
  $region42: #{tpu_custom_call.1} parent=0
    _
  %s10 = ssub.s32 1, %s8
  %s11 = scalar_select 0, %s10, %s8
  $region1: #{tpu_custom_call.1} parent=0
    #allocation2 [shape = 'u8[98304]{0}', space=vmem, size = 0x18000, scoped, tag = 'input window, operand 4, single buffered']
    #allocation3 [shape = 's32[1]{0}', space=sflag, size = 0x4, scoped, tag = 'scoped memory for tpu_custom_call.1']
    #allocation4 [shape = 's32[1]{0}', space=sflag, size = 0x4, scoped, tag = 'scoped memory for tpu_custom_call.1']
    #allocation5 [shape = 'u8[8192]{0}', space=vmem, size = 0x2000, scoped, tag = 'output window, operand 0, single buffered']
    %12 = vsyncpa [#allocation3], 0
    %13 = vsyncpa [#allocation4], 0
    // Predicated region
    $region2: #{tpu_custom_call.1} parent=1 // pred_check
      _
    $region3: #{tpu_custom_call.1} parent=1 // pred_check_branch
      %15 = sbr.rel (0) target = $region5
    $region4: #{tpu_custom_call.1} parent=1 // pred_region
      _
    $region5: #{tpu_custom_call.1} parent=1 // pred_fallthru
      _
    // Predicated region
    $region6: #{tpu_custom_call.1} parent=1 // pred_check
      _
    $region7: #{tpu_custom_call.1} parent=1 // pred_check_branch
      %17 = sbr.rel (0) target = $region9
    $region8: #{tpu_custom_call.1} parent=1 // pred_region
      _
    $region9: #{tpu_custom_call.1} parent=1 // pred_fallthru
      _
    // Predicated region
    $region10: #{tpu_custom_call.1} parent=1 // pred_check
      _
    $region11: #{tpu_custom_call.1} parent=1 // pred_check_branch
      %19 = sbr.rel (0) target = $region13
    $region12: #{tpu_custom_call.1} parent=1 // pred_region
      _
    $region13: #{tpu_custom_call.1} parent=1 // pred_fallthru
      _
    // Predicated region
    $region14: #{tpu_custom_call.1} parent=1 // pred_check
      _
    $region15: #{tpu_custom_call.1} parent=1 // pred_check_branch
      %21 = sbr.rel (0) target = $region17
    $region16: #{tpu_custom_call.1} parent=1 // pred_region
      _
    $region17: #{tpu_custom_call.1} parent=1 // pred_fallthru
      _
    // Predicated region
    $region18: #{tpu_custom_call.1} parent=1 // pred_check
      _
    $region19: #{tpu_custom_call.1} parent=1 // pred_check_branch
      %23 = sbr.rel (0) target = $region21
    $region20: #{tpu_custom_call.1} parent=1 // pred_region
      %s25 = ssub.s32 3072, 3072
      %26 = vsyncadd [#allocation3], %s25
      %s27 = sshll.u32 [#allocation2], 4
      %s28 = int_to_ptr.vmem [resolvable:$true] %s27
      %33 = dma.hbm_to_vmem [thread:$0]  %s4, 3072, %s28, [#allocation3], 768, 768, 48
    $region21: #{tpu_custom_call.1} parent=1 // pred_fallthru
      _
    // Predicated region
    $region22: #{tpu_custom_call.1} parent=1 // pred_check
      _
    $region23: #{tpu_custom_call.1} parent=1 // pred_check_branch
      %35 = sbr.rel (0) target = $region25
    $region24: #{tpu_custom_call.1} parent=1 // pred_region
      _
    $region25: #{tpu_custom_call.1} parent=1 // pred_fallthru
      _
    // Predicated region
    $region26: #{tpu_custom_call.1} parent=1 // pred_check
      _
    $region27: #{tpu_custom_call.1} parent=1 // pred_check_branch
      %37 = sbr.rel (0) target = $region29
    $region28: #{tpu_custom_call.1} parent=1 // pred_region
      _
    $region29: #{tpu_custom_call.1} parent=1 // pred_fallthru
      _
    // Predicated region
    $region30: #{tpu_custom_call.1} parent=1 // pred_check
      _
    $region31: #{tpu_custom_call.1} parent=1 // pred_check_branch
      %39 = sbr.rel (0) target = $region33
    $region32: #{tpu_custom_call.1} parent=1 // pred_region
      %40 = dma.done [#allocation3], 3072
    $region33: #{tpu_custom_call.1} parent=1 // pred_fallthru
      _
    %v41 = vld [vmem:[%s0] sm:$0xff]
    %v42 = vld [vmem:[%s0 + $0x8] sm:$0xff]
    %v43 = vld [vmem:[%s1] sm:$0xff]
    %v44 = vld [vmem:[%s1 + $0x8] sm:$0xff]
    %v45 = vld [vmem:[%s2] sm:$0xff]
    %v46 = vld [vmem:[%s2 + $0x8] sm:$0xff]
    %vm47 = vcmp.eq.f32.partialorder %v45, 0.0
    %vm48 = vcmp.eq.f32.partialorder %v46, 0.0
    %v49 = vld [vmem:[%s3] sm:$0xff]
    %v50 = vld [vmem:[%s3 + $0x8] sm:$0xff]
    %vm51 = vcmp.eq.f32.partialorder %v49, 0.0
    %vm52 = vcmp.eq.f32.partialorder %v50, 0.0
    %v53 = vld [vmem:[%s6 + $0x7] sm:$0x1]
    %v54 = vld [vmem:[%s6 + $0x8] sm:$0x1]
    %vm55 = vcmask 261120
    %v56 = vsel %vm55, %v41, 0.0
    %57 = vadd.xlane.f32.xlu0 %v56
    %v58 = vpop.xlane.xlu0 %57
    %v59 = vsel %vm55, %v42, 0.0
    %60 = vadd.xlane.f32.xlu0 %v59
    %v61 = vpop.xlane.xlu0 %60
    %v62 = vrcp.pop 32.0
    %v63 = vmul.f32 %v58, %v62
    %v64 = vmul.f32 %v61, %v62
    %v65 = vsub.f32 %v41, %v63
    %v66 = vsub.f32 %v42, %v64
    %v67 = vmul.f32 %v65, %v65
    %v68 = vmul.f32 %v66, %v66
    %v69 = vsel %vm55, %v67, 0.0
    %70 = vadd.xlane.f32.xlu0 %v69
    %v71 = vpop.xlane.xlu0 %70
    %v72 = vsel %vm55, %v68, 0.0
    %73 = vadd.xlane.f32.xlu0 %v72
    %v74 = vpop.xlane.xlu0 %73
    %v75 = vmul.f32 %v71, 0.032258064
    %v76 = vmul.f32 %v74, 0.032258064
    %v77 = vrsqrt.pop %v75
    %v78 = vmul.f32 %v75, %v77
    %vm79 = vcmp.eq.f32.partialorder %v75, inf
    %v80 = vsel %vm79, %v75, %v78
    %vm81 = vcmp.eq.f32.partialorder %v75, 0.0
    %v82 = vand.u32 %v75, 2147483648
    %v83 = vsel %vm81, %v82, %v80
    %v84 = vrsqrt.pop %v76
    %v85 = vmul.f32 %v76, %v84
    %vm86 = vcmp.eq.f32.partialorder %v76, inf
    %v87 = vsel %vm86, %v76, %v85
    %vm88 = vcmp.eq.f32.partialorder %v76, 0.0
    %v89 = vand.u32 %v76, 2147483648
    %v90 = vsel %vm88, %v89, %v87
    %v91 = vadd.f32 %v83, 1e-06
    %v92 = vadd.f32 %v90, 1e-06
    %v93 = vrcp.pop %v91
    %v94 = vrcp.pop %v92
    %v95 = vlaneseq
    %v96 = vshrl.u32 %v95, 7
    %v97 = vsub.s32 0, %v96
    %v98 = vrot.slane %v53, %v97
    %v99 = vmul.f32 %v98, %v65
    %v100 = vmul.f32 %v98, %v66
    %v101 = vmul.f32 %v99, %v93
    %v102 = vmul.f32 %v100, %v94
    %v103 = vlaneseq
    %v104 = vshrl.u32 %v103, 7
    %v105 = vsub.s32 0, %v104
    %v106 = vrot.slane %v54, %v105
    %v107 = vadd.f32 %v101, %v106
    %v108 = vadd.f32 %v102, %v106
    %v109 = vld [vmem:[#allocation2] sm:$0xff]
    %v110 = vld [vmem:[#allocation2 + $0x30] sm:$0xff]
    %v111 = vld [vmem:[#allocation2 + $0x60] sm:$0xff]
    %v112 = vld [vmem:[#allocation2 + $0x90] sm:$0xff]
    %v113 = vld [vmem:[%s6] sm:$0x1]
    %v114 = vlaneseq
    %v115 = vshrl.u32 %v114, 7
    %v116 = vsub.s32 0, %v115
    %v117 = vrot.slane %v113, %v116
    %v119 = vsel %vm55, %v107, 0
    %v122 = vsel %vm55, %v108, 0
    %124 = vmatprep.subr.mxu0 0.0
    %125 = vmatpush1.msra.mxu0 %v109
    %126 = vmatprep.subr.mxu0 0.0
    %127 = vmatpush1.msra.mxu0 %v110
    %128 = vmatprep.subr.mxu0 0.0
    %129 = vmatpush1.msra.mxu0 %v111
    %130 = vmatprep.subr.mxu0 0.0
    %131 = vmatpush1.msra.mxu0 %v112
    %132 = vmatprep.subr.mxu0 0.0
    %133 = vmatpush1.msra.mxu0 0.0
    %134 = vmatprep.subr.mxu0 0.0
    %135 = vmatpush1.msra.mxu0 0.0
    %136 = vmatprep.subr.mxu0 0.0
    %137 = vmatpush1.msra.mxu0 0.0
    %138 = vmatprep.subr.mxu0 0.0
    %139 = vmatpush1.msra.mxu0 0.0
    %140 = vmatprep.subr.mxu0 0.0
    %141 = vmatpush1.msra.mxu0 0.0
    %142 = vmatprep.subr.mxu0 0.0
    %143 = vmatpush1.msra.mxu0 0.0
    %144 = vmatprep.subr.mxu0 0.0
    %145 = vmatpush1.msra.mxu0 0.0
    %146 = vmatprep.subr.mxu0 0.0
    %147 = vmatpush1.msra.mxu0 0.0
    %148 = vmatprep.subr.mxu0 0.0
    %149 = vmatpush1.msra.mxu0 0.0
    %150 = vmatprep.subr.mxu0 0.0
    %151 = vmatpush1.msra.mxu0 0.0
    %152 = vmatprep.subr.mxu0 0.0
    %153 = vmatpush1.msra.mxu0 0.0
    %154 = vmatprep.subr.mxu0 0.0
    %155 = vmatpush1.msra.mxu0 0.0
    %156 = vmatprep.subr.mxu0 0.0
    %157 = vmatpush1.msra.mxu0 0.0
    %158 = vmatprep.subr.mxu0 0.0
    %159 = vmatpush1.msra.mxu0 0.0
    %160 = vmatprep.subr.mxu0 0.0
    %161 = vmatpush1.msra.mxu0 0.0
    %162 = vmatprep.subr.mxu0 0.0
    %163 = vmatpush1.msra.mxu0 0.0
    %164 = vmatprep.subr.mxu0 0.0
    %165 = vmatpush1.msra.mxu0 0.0
    %166 = vmatprep.subr.mxu0 0.0
    %167 = vmatpush1.msra.mxu0 0.0
    %168 = vmatprep.subr.mxu0 0.0
    %169 = vmatpush1.msra.mxu0 0.0
    %170 = vmatprep.subr.mxu0 0.0
    %171 = vmatpush1.msra.mxu0 0.0
    %172 = vmatprep.subr.mxu0 0.0
    %173 = vmatpush1.msra.mxu0 0.0
    %174 = vmatprep.subr.mxu0 0.0
    %175 = vmatpush1.msra.mxu0 0.0
    %176 = vmatprep.subr.mxu0 0.0
    %177 = vmatpush1.msra.mxu0 0.0
    %178 = vmatprep.subr.mxu0 0.0
    %179 = vmatpush1.msra.mxu0 0.0
    %180 = vmatprep.subr.mxu0 0.0
    %181 = vmatpush1.msra.mxu0 0.0
    %182 = vmatprep.subr.mxu0 0.0
    %183 = vmatpush1.msra.mxu0 0.0
    %184 = vmatprep.subr.mxu0 0.0
    %185 = vmatpush1.msra.mxu0 0.0
    %186 = vmatprep.subr.mxu0 0.0
    %187 = vmatpush1.msra.mxu0 0.0
    %188 = vmatprep.mubr.f32.mxu0 0.0
    %189 = vmatmul.mubr.f32.gmra.mrb[0].mxu0 %v119
    %v190 = vpop.f32.mrb[0].mxu0
    %v191 = vadd.f32 %v117, %v190
    %v192 = vpop.f32.mrb[0].mxu0
    %193 = vmatprep.mubr.f32.mxu0 0.0
    %194 = vmatmul.mubr.f32.gmra.mrb[0].mxu0 %v122
    %v195 = vpop.f32.mrb[0].mxu0
    %v196 = vadd.f32 %v117, %v195
    %v197 = vpop.f32.mrb[0].mxu0
    %198 = vdwg.mxu0
    %v199 = vld [vmem:[#allocation2 + $0x18] sm:$0xff]
    %v200 = vld [vmem:[#allocation2 + $0x48] sm:$0xff]
    %v201 = vld [vmem:[#allocation2 + $0x78] sm:$0xff]
    %v202 = vld [vmem:[#allocation2 + $0xa8] sm:$0xff]
    %v203 = vld [vmem:[%s6 + $0x3] sm:$0x1]
    %205 = vrot.lane.b32.xlu0 %v191, 96
    %v206 = vpop.permute.xlu0 %205
    %vm207 = vcmask 64512
    %v208 = vsel %vm207, %v191, 0
    %v210 = vsel %vm207, %v206, 0
    %212 = vmatprep.subr.mxu0 0.0
    %213 = vmatpush1.xpose.msra.mxu0 %v210
    %214 = vmatprep.subr.mxu0 0.0
    %215 = vmatpush1.xpose.msra.mxu0 0.0
    %216 = vmatprep.subr.mxu0 0.0
    %217 = vmatpush1.xpose.msra.mxu0 0.0
    %218 = vmatprep.subr.mxu0 0.0
    %219 = vmatpush1.xpose.msra.mxu0 0.0
    %220 = vmatprep.subr.mxu0 0.0
    %221 = vmatpush1.xpose.msra.mxu0 0.0
    %222 = vmatprep.subr.mxu0 0.0
    %223 = vmatpush1.xpose.msra.mxu0 0.0
    %224 = vmatprep.subr.mxu0 0.0
    %225 = vmatpush1.xpose.msra.mxu0 0.0
    %226 = vmatprep.subr.mxu0 0.0
    %227 = vmatpush1.xpose.msra.mxu0 0.0
    %228 = vmatprep.subr.mxu0 0.0
    %229 = vmatpush1.xpose.msra.mxu0 0.0
    %230 = vmatprep.subr.mxu0 0.0
    %231 = vmatpush1.xpose.msra.mxu0 0.0
    %232 = vmatprep.subr.mxu0 0.0
    %233 = vmatpush1.xpose.msra.mxu0 0.0
    %234 = vmatprep.subr.mxu0 0.0
    %235 = vmatpush1.xpose.msra.mxu0 0.0
    %236 = vmatprep.subr.mxu0 0.0
    %237 = vmatpush1.xpose.msra.mxu0 0.0
    %238 = vmatprep.subr.mxu0 0.0
    %239 = vmatpush1.xpose.msra.mxu0 0.0
    %240 = vmatprep.subr.mxu0 0.0
    %241 = vmatpush1.xpose.msra.mxu0 0.0
    %242 = vmatprep.subr.mxu0 0.0
    %243 = vmatpush1.xpose.msra.mxu0 0.0
    %244 = vmatprep.subr.mxu0 0.0
    %245 = vmatpush1.xpose.msra.mxu0 0.0
    %246 = vmatprep.subr.mxu0 0.0
    %247 = vmatpush1.xpose.msra.mxu0 0.0
    %248 = vmatprep.subr.mxu0 0.0
    %249 = vmatpush1.xpose.msra.mxu0 0.0
    %250 = vmatprep.subr.mxu0 0.0
    %251 = vmatpush1.xpose.msra.mxu0 0.0
    %252 = vmatprep.subr.mxu0 0.0
    %253 = vmatpush1.xpose.msra.mxu0 0.0
    %254 = vmatprep.subr.mxu0 0.0
    %255 = vmatpush1.xpose.msra.mxu0 0.0
    %256 = vmatprep.subr.mxu0 0.0
    %257 = vmatpush1.xpose.msra.mxu0 0.0
    %258 = vmatprep.subr.mxu0 0.0
    %259 = vmatpush1.xpose.msra.mxu0 0.0
    %260 = vmatprep.subr.mxu0 0.0
    %261 = vmatpush1.xpose.msra.mxu0 0.0
    %262 = vmatprep.subr.mxu0 0.0
    %263 = vmatpush1.xpose.msra.mxu0 0.0
    %264 = vmatprep.subr.mxu0 0.0
    %265 = vmatpush1.xpose.msra.mxu0 0.0
    %266 = vmatprep.subr.mxu0 0.0
    %267 = vmatpush1.xpose.msra.mxu0 0.0
    %268 = vmatprep.subr.mxu0 0.0
    %269 = vmatpush1.xpose.msra.mxu0 0.0
    %270 = vmatprep.subr.mxu0 0.0
    %271 = vmatpush1.xpose.msra.mxu0 0.0
    %272 = vmatprep.subr.mxu0 0.0
    %273 = vmatpush1.xpose.msra.mxu0 0.0
    %274 = vmatprep.subr.mxu0 0.0
    %275 = vmatpush1.xpose.msra.mxu0 0.0
    %276 = vmatprep.mubr.f32.mxu0 0.0
    %277 = vmatmul.mubr.f32.gmra.mrb[0].mxu0 %v208
    %v278 = vpop.f32.mrb[0].mxu0
    %v279 = vadd.f32 0.0, %v278
    %v280 = vpop.f32.mrb[0].mxu0
    %281 = vdwg.mxu0
    %283 = vrot.lane.b32.xlu0 %v196, 96
    %v284 = vpop.permute.xlu0 %283
    %v285 = vsel %vm207, %v196, 0
    %v287 = vsel %vm207, %v284, 0
    %289 = vmatprep.subr.mxu0 0.0
    %290 = vmatpush1.xpose.msra.mxu0 %v287
    %291 = vmatprep.subr.mxu0 0.0
    %292 = vmatpush1.xpose.msra.mxu0 0.0
    %293 = vmatprep.subr.mxu0 0.0
    %294 = vmatpush1.xpose.msra.mxu0 0.0
    %295 = vmatprep.subr.mxu0 0.0
    %296 = vmatpush1.xpose.msra.mxu0 0.0
    %297 = vmatprep.subr.mxu0 0.0
    %298 = vmatpush1.xpose.msra.mxu0 0.0
    %299 = vmatprep.subr.mxu0 0.0
    %300 = vmatpush1.xpose.msra.mxu0 0.0
    %301 = vmatprep.subr.mxu0 0.0
    %302 = vmatpush1.xpose.msra.mxu0 0.0
    %303 = vmatprep.subr.mxu0 0.0
    %304 = vmatpush1.xpose.msra.mxu0 0.0
    %305 = vmatprep.subr.mxu0 0.0
    %306 = vmatpush1.xpose.msra.mxu0 0.0
    %307 = vmatprep.subr.mxu0 0.0
    %308 = vmatpush1.xpose.msra.mxu0 0.0
    %309 = vmatprep.subr.mxu0 0.0
    %310 = vmatpush1.xpose.msra.mxu0 0.0
    %311 = vmatprep.subr.mxu0 0.0
    %312 = vmatpush1.xpose.msra.mxu0 0.0
    %313 = vmatprep.subr.mxu0 0.0
    %314 = vmatpush1.xpose.msra.mxu0 0.0
    %315 = vmatprep.subr.mxu0 0.0
    %316 = vmatpush1.xpose.msra.mxu0 0.0
    %317 = vmatprep.subr.mxu0 0.0
    %318 = vmatpush1.xpose.msra.mxu0 0.0
    %319 = vmatprep.subr.mxu0 0.0
    %320 = vmatpush1.xpose.msra.mxu0 0.0
    %321 = vmatprep.subr.mxu0 0.0
    %322 = vmatpush1.xpose.msra.mxu0 0.0
    %323 = vmatprep.subr.mxu0 0.0
    %324 = vmatpush1.xpose.msra.mxu0 0.0
    %325 = vmatprep.subr.mxu0 0.0
    %326 = vmatpush1.xpose.msra.mxu0 0.0
    %327 = vmatprep.subr.mxu0 0.0
    %328 = vmatpush1.xpose.msra.mxu0 0.0
    %329 = vmatprep.subr.mxu0 0.0
    %330 = vmatpush1.xpose.msra.mxu0 0.0
    %331 = vmatprep.subr.mxu0 0.0
    %332 = vmatpush1.xpose.msra.mxu0 0.0
    %333 = vmatprep.subr.mxu0 0.0
    %334 = vmatpush1.xpose.msra.mxu0 0.0
    %335 = vmatprep.subr.mxu0 0.0
    %336 = vmatpush1.xpose.msra.mxu0 0.0
    %337 = vmatprep.subr.mxu0 0.0
    %338 = vmatpush1.xpose.msra.mxu0 0.0
    %339 = vmatprep.subr.mxu0 0.0
    %340 = vmatpush1.xpose.msra.mxu0 0.0
    %341 = vmatprep.subr.mxu0 0.0
    %342 = vmatpush1.xpose.msra.mxu0 0.0
    %343 = vmatprep.subr.mxu0 0.0
    %344 = vmatpush1.xpose.msra.mxu0 0.0
    %345 = vmatprep.subr.mxu0 0.0
    %346 = vmatpush1.xpose.msra.mxu0 0.0
    %347 = vmatprep.subr.mxu0 0.0
    %348 = vmatpush1.xpose.msra.mxu0 0.0
    %349 = vmatprep.subr.mxu0 0.0
    %350 = vmatpush1.xpose.msra.mxu0 0.0
    %351 = vmatprep.subr.mxu0 0.0
    %352 = vmatpush1.xpose.msra.mxu0 0.0
    %353 = vmatprep.mubr.f32.mxu0 0.0
    %354 = vmatmul.mubr.f32.gmra.mrb[0].mxu0 %v285
    %v355 = vpop.f32.mrb[0].mxu0
    %v356 = vadd.f32 0.0, %v355
    %v357 = vpop.f32.mrb[0].mxu0
    %358 = vdwg.mxu0
    %v359 = vmul.f32 %v279, 0.35355338
    %v360 = vmul.f32 %v356, 0.35355338
    %v361 = vsel %vm47, -1e+09, %v359
    %v362 = vsel %vm48, -1e+09, %v360
    %v363 = vsel %vm207, %v361, -inf
    %364 = vmax.xlane.f32.xlu0 %v363
    %v365 = vpop.xlane.xlu0 %364
    %v366 = vsel %vm207, %v362, -inf
    %367 = vmax.xlane.f32.xlu0 %v366
    %v368 = vpop.xlane.xlu0 %367
    %v369 = vsub.f32 %v361, %v365
    %v370 = vsub.f32 %v362, %v368
    %v371 = vmul.f32 %v369, 1.442695
    %v372 = vpow.pop %v371
    %v373 = vmul.f32 %v370, 1.442695
    %v374 = vpow.pop %v373
    %v375 = vsel %vm207, %v372, 0.0
    %376 = vadd.xlane.f32.xlu0 %v375
    %v377 = vpop.xlane.xlu0 %376
    %v378 = vsel %vm207, %v374, 0.0
    %379 = vadd.xlane.f32.xlu0 %v378
    %v380 = vpop.xlane.xlu0 %379
    %v381 = vrcp.pop %v377
    %v382 = vrcp.pop %v380
    %v383 = vmul.f32 %v372, %v381
    %v384 = vmul.f32 %v374, %v382
    %385 = vrot.lane.b32.xlu0 %v191, 64
    %v386 = vpop.permute.xlu0 %385
    %v389 = vsel %vm207, %v383, 0
    %391 = vmatprep.subr.mxu0 0.0
    %392 = vmatpush1.msra.mxu0 %v386
    %393 = vmatprep.subr.mxu0 0.0
    %394 = vmatpush1.msra.mxu0 0.0
    %395 = vmatprep.subr.mxu0 0.0
    %396 = vmatpush1.msra.mxu0 0.0
    %397 = vmatprep.subr.mxu0 0.0
    %398 = vmatpush1.msra.mxu0 0.0
    %399 = vmatprep.subr.mxu0 0.0
    %400 = vmatpush1.msra.mxu0 0.0
    %401 = vmatprep.subr.mxu0 0.0
    %402 = vmatpush1.msra.mxu0 0.0
    %403 = vmatprep.subr.mxu0 0.0
    %404 = vmatpush1.msra.mxu0 0.0
    %405 = vmatprep.subr.mxu0 0.0
    %406 = vmatpush1.msra.mxu0 0.0
    %407 = vmatprep.subr.mxu0 0.0
    %408 = vmatpush1.msra.mxu0 0.0
    %409 = vmatprep.subr.mxu0 0.0
    %410 = vmatpush1.msra.mxu0 0.0
    %411 = vmatprep.subr.mxu0 0.0
    %412 = vmatpush1.msra.mxu0 0.0
    %413 = vmatprep.subr.mxu0 0.0
    %414 = vmatpush1.msra.mxu0 0.0
    %415 = vmatprep.subr.mxu0 0.0
    %416 = vmatpush1.msra.mxu0 0.0
    %417 = vmatprep.subr.mxu0 0.0
    %418 = vmatpush1.msra.mxu0 0.0
    %419 = vmatprep.subr.mxu0 0.0
    %420 = vmatpush1.msra.mxu0 0.0
    %421 = vmatprep.subr.mxu0 0.0
    %422 = vmatpush1.msra.mxu0 0.0
    %423 = vmatprep.subr.mxu0 0.0
    %424 = vmatpush1.msra.mxu0 0.0
    %425 = vmatprep.subr.mxu0 0.0
    %426 = vmatpush1.msra.mxu0 0.0
    %427 = vmatprep.subr.mxu0 0.0
    %428 = vmatpush1.msra.mxu0 0.0
    %429 = vmatprep.subr.mxu0 0.0
    %430 = vmatpush1.msra.mxu0 0.0
    %431 = vmatprep.subr.mxu0 0.0
    %432 = vmatpush1.msra.mxu0 0.0
    %433 = vmatprep.subr.mxu0 0.0
    %434 = vmatpush1.msra.mxu0 0.0
    %435 = vmatprep.subr.mxu0 0.0
    %436 = vmatpush1.msra.mxu0 0.0
    %437 = vmatprep.subr.mxu0 0.0
    %438 = vmatpush1.msra.mxu0 0.0
    %439 = vmatprep.subr.mxu0 0.0
    %440 = vmatpush1.msra.mxu0 0.0
    %441 = vmatprep.subr.mxu0 0.0
    %442 = vmatpush1.msra.mxu0 0.0
    %443 = vmatprep.subr.mxu0 0.0
    %444 = vmatpush1.msra.mxu0 0.0
    %445 = vmatprep.subr.mxu0 0.0
    %446 = vmatpush1.msra.mxu0 0.0
    %447 = vmatprep.subr.mxu0 0.0
    %448 = vmatpush1.msra.mxu0 0.0
    %449 = vmatprep.subr.mxu0 0.0
    %450 = vmatpush1.msra.mxu0 0.0
    %451 = vmatprep.subr.mxu0 0.0
    %452 = vmatpush1.msra.mxu0 0.0
    %453 = vmatprep.subr.mxu0 0.0
    %454 = vmatpush1.msra.mxu0 0.0
    %455 = vmatprep.mubr.f32.mxu0 0.0
    %456 = vmatmul.mubr.f32.gmra.mrb[0].mxu0 %v389
    %v457 = vpop.f32.mrb[0].mxu0
    %v458 = vadd.f32 0.0, %v457
    %v459 = vpop.f32.mrb[0].mxu0
    %460 = vdwg.mxu0
    %461 = vrot.lane.b32.xlu0 %v196, 64
    %v462 = vpop.permute.xlu0 %461
    %v465 = vsel %vm207, %v384, 0
    %467 = vmatprep.subr.mxu0 0.0
    %468 = vmatpush1.msra.mxu0 %v462
    %469 = vmatprep.subr.mxu0 0.0
    %470 = vmatpush1.msra.mxu0 0.0
    %471 = vmatprep.subr.mxu0 0.0
    %472 = vmatpush1.msra.mxu0 0.0
    %473 = vmatprep.subr.mxu0 0.0
    %474 = vmatpush1.msra.mxu0 0.0
    %475 = vmatprep.subr.mxu0 0.0
    %476 = vmatpush1.msra.mxu0 0.0
    %477 = vmatprep.subr.mxu0 0.0
    %478 = vmatpush1.msra.mxu0 0.0
    %479 = vmatprep.subr.mxu0 0.0
    %480 = vmatpush1.msra.mxu0 0.0
    %481 = vmatprep.subr.mxu0 0.0
    %482 = vmatpush1.msra.mxu0 0.0
    %483 = vmatprep.subr.mxu0 0.0
    %484 = vmatpush1.msra.mxu0 0.0
    %485 = vmatprep.subr.mxu0 0.0
    %486 = vmatpush1.msra.mxu0 0.0
    %487 = vmatprep.subr.mxu0 0.0
    %488 = vmatpush1.msra.mxu0 0.0
    %489 = vmatprep.subr.mxu0 0.0
    %490 = vmatpush1.msra.mxu0 0.0
    %491 = vmatprep.subr.mxu0 0.0
    %492 = vmatpush1.msra.mxu0 0.0
    %493 = vmatprep.subr.mxu0 0.0
    %494 = vmatpush1.msra.mxu0 0.0
    %495 = vmatprep.subr.mxu0 0.0
    %496 = vmatpush1.msra.mxu0 0.0
    %497 = vmatprep.subr.mxu0 0.0
    %498 = vmatpush1.msra.mxu0 0.0
    %499 = vmatprep.subr.mxu0 0.0
    %500 = vmatpush1.msra.mxu0 0.0
    %501 = vmatprep.subr.mxu0 0.0
    %502 = vmatpush1.msra.mxu0 0.0
    %503 = vmatprep.subr.mxu0 0.0
    %504 = vmatpush1.msra.mxu0 0.0
    %505 = vmatprep.subr.mxu0 0.0
    %506 = vmatpush1.msra.mxu0 0.0
    %507 = vmatprep.subr.mxu0 0.0
    %508 = vmatpush1.msra.mxu0 0.0
    %509 = vmatprep.subr.mxu0 0.0
    %510 = vmatpush1.msra.mxu0 0.0
    %511 = vmatprep.subr.mxu0 0.0
    %512 = vmatpush1.msra.mxu0 0.0
    %513 = vmatprep.subr.mxu0 0.0
    %514 = vmatpush1.msra.mxu0 0.0
    %515 = vmatprep.subr.mxu0 0.0
    %516 = vmatpush1.msra.mxu0 0.0
    %517 = vmatprep.subr.mxu0 0.0
    %518 = vmatpush1.msra.mxu0 0.0
    %519 = vmatprep.subr.mxu0 0.0
    %520 = vmatpush1.msra.mxu0 0.0
    %521 = vmatprep.subr.mxu0 0.0
    %522 = vmatpush1.msra.mxu0 0.0
    %523 = vmatprep.subr.mxu0 0.0
    %524 = vmatpush1.msra.mxu0 0.0
    %525 = vmatprep.subr.mxu0 0.0
    %526 = vmatpush1.msra.mxu0 0.0
    %527 = vmatprep.subr.mxu0 0.0
    %528 = vmatpush1.msra.mxu0 0.0
    %529 = vmatprep.subr.mxu0 0.0
    %530 = vmatpush1.msra.mxu0 0.0
    %531 = vmatprep.mubr.f32.mxu0 0.0
    %532 = vmatmul.mubr.f32.gmra.mrb[0].mxu0 %v465
    %v533 = vpop.f32.mrb[0].mxu0
    %v534 = vadd.f32 0.0, %v533
    %v535 = vpop.f32.mrb[0].mxu0
    %536 = vdwg.mxu0
    %537 = vrot.lane.b32.xlu0 %v191, 120
    %v538 = vpop.permute.xlu0 %537
    %539 = vrot.lane.b32.xlu0 %v191, 88
    %v540 = vpop.permute.xlu0 %539
    %v541 = vsel %vm207, %v538, 0
    %v543 = vsel %vm207, %v540, 0
    %545 = vmatprep.subr.mxu0 0.0
    %546 = vmatpush1.xpose.msra.mxu0 %v543
    %547 = vmatprep.subr.mxu0 0.0
    %548 = vmatpush1.xpose.msra.mxu0 0.0
    %549 = vmatprep.subr.mxu0 0.0
    %550 = vmatpush1.xpose.msra.mxu0 0.0
    %551 = vmatprep.subr.mxu0 0.0
    %552 = vmatpush1.xpose.msra.mxu0 0.0
    %553 = vmatprep.subr.mxu0 0.0
    %554 = vmatpush1.xpose.msra.mxu0 0.0
    %555 = vmatprep.subr.mxu0 0.0
    %556 = vmatpush1.xpose.msra.mxu0 0.0
    %557 = vmatprep.subr.mxu0 0.0
    %558 = vmatpush1.xpose.msra.mxu0 0.0
    %559 = vmatprep.subr.mxu0 0.0
    %560 = vmatpush1.xpose.msra.mxu0 0.0
    %561 = vmatprep.subr.mxu0 0.0
    %562 = vmatpush1.xpose.msra.mxu0 0.0
    %563 = vmatprep.subr.mxu0 0.0
    %564 = vmatpush1.xpose.msra.mxu0 0.0
    %565 = vmatprep.subr.mxu0 0.0
    %566 = vmatpush1.xpose.msra.mxu0 0.0
    %567 = vmatprep.subr.mxu0 0.0
    %568 = vmatpush1.xpose.msra.mxu0 0.0
    %569 = vmatprep.subr.mxu0 0.0
    %570 = vmatpush1.xpose.msra.mxu0 0.0
    %571 = vmatprep.subr.mxu0 0.0
    %572 = vmatpush1.xpose.msra.mxu0 0.0
    %573 = vmatprep.subr.mxu0 0.0
    %574 = vmatpush1.xpose.msra.mxu0 0.0
    %575 = vmatprep.subr.mxu0 0.0
    %576 = vmatpush1.xpose.msra.mxu0 0.0
    %577 = vmatprep.subr.mxu0 0.0
    %578 = vmatpush1.xpose.msra.mxu0 0.0
    %579 = vmatprep.subr.mxu0 0.0
    %580 = vmatpush1.xpose.msra.mxu0 0.0
    %581 = vmatprep.subr.mxu0 0.0
    %582 = vmatpush1.xpose.msra.mxu0 0.0
    %583 = vmatprep.subr.mxu0 0.0
    %584 = vmatpush1.xpose.msra.mxu0 0.0
    %585 = vmatprep.subr.mxu0 0.0
    %586 = vmatpush1.xpose.msra.mxu0 0.0
    %587 = vmatprep.subr.mxu0 0.0
    %588 = vmatpush1.xpose.msra.mxu0 0.0
    %589 = vmatprep.subr.mxu0 0.0
    %590 = vmatpush1.xpose.msra.mxu0 0.0
    %591 = vmatprep.subr.mxu0 0.0
    %592 = vmatpush1.xpose.msra.mxu0 0.0
    %593 = vmatprep.subr.mxu0 0.0
    %594 = vmatpush1.xpose.msra.mxu0 0.0
    %595 = vmatprep.subr.mxu0 0.0
    %596 = vmatpush1.xpose.msra.mxu0 0.0
    %597 = vmatprep.subr.mxu0 0.0
    %598 = vmatpush1.xpose.msra.mxu0 0.0
    %599 = vmatprep.subr.mxu0 0.0
    %600 = vmatpush1.xpose.msra.mxu0 0.0
    %601 = vmatprep.subr.mxu0 0.0
    %602 = vmatpush1.xpose.msra.mxu0 0.0
    %603 = vmatprep.subr.mxu0 0.0
    %604 = vmatpush1.xpose.msra.mxu0 0.0
    %605 = vmatprep.subr.mxu0 0.0
    %606 = vmatpush1.xpose.msra.mxu0 0.0
    %607 = vmatprep.subr.mxu0 0.0
    %608 = vmatpush1.xpose.msra.mxu0 0.0
    %609 = vmatprep.mubr.f32.mxu0 0.0
    %610 = vmatmul.mubr.f32.gmra.mrb[0].mxu0 %v541
    %v611 = vpop.f32.mrb[0].mxu0
    %v612 = vadd.f32 0.0, %v611
    %v613 = vpop.f32.mrb[0].mxu0
    %614 = vdwg.mxu0
    %615 = vrot.lane.b32.xlu0 %v196, 120
    %v616 = vpop.permute.xlu0 %615
    %617 = vrot.lane.b32.xlu0 %v196, 88
    %v618 = vpop.permute.xlu0 %617
    %v619 = vsel %vm207, %v616, 0
    %v621 = vsel %vm207, %v618, 0
    %623 = vmatprep.subr.mxu0 0.0
    %624 = vmatpush1.xpose.msra.mxu0 %v621
    %625 = vmatprep.subr.mxu0 0.0
    %626 = vmatpush1.xpose.msra.mxu0 0.0
    %627 = vmatprep.subr.mxu0 0.0
    %628 = vmatpush1.xpose.msra.mxu0 0.0
    %629 = vmatprep.subr.mxu0 0.0
    %630 = vmatpush1.xpose.msra.mxu0 0.0
    %631 = vmatprep.subr.mxu0 0.0
    %632 = vmatpush1.xpose.msra.mxu0 0.0
    %633 = vmatprep.subr.mxu0 0.0
    %634 = vmatpush1.xpose.msra.mxu0 0.0
    %635 = vmatprep.subr.mxu0 0.0
    %636 = vmatpush1.xpose.msra.mxu0 0.0
    %637 = vmatprep.subr.mxu0 0.0
    %638 = vmatpush1.xpose.msra.mxu0 0.0
    %639 = vmatprep.subr.mxu0 0.0
    %640 = vmatpush1.xpose.msra.mxu0 0.0
    %641 = vmatprep.subr.mxu0 0.0
    %642 = vmatpush1.xpose.msra.mxu0 0.0
    %643 = vmatprep.subr.mxu0 0.0
    %644 = vmatpush1.xpose.msra.mxu0 0.0
    %645 = vmatprep.subr.mxu0 0.0
    %646 = vmatpush1.xpose.msra.mxu0 0.0
    %647 = vmatprep.subr.mxu0 0.0
    %648 = vmatpush1.xpose.msra.mxu0 0.0
    %649 = vmatprep.subr.mxu0 0.0
    %650 = vmatpush1.xpose.msra.mxu0 0.0
    %651 = vmatprep.subr.mxu0 0.0
    %652 = vmatpush1.xpose.msra.mxu0 0.0
    %653 = vmatprep.subr.mxu0 0.0
    %654 = vmatpush1.xpose.msra.mxu0 0.0
    %655 = vmatprep.subr.mxu0 0.0
    %656 = vmatpush1.xpose.msra.mxu0 0.0
    %657 = vmatprep.subr.mxu0 0.0
    %658 = vmatpush1.xpose.msra.mxu0 0.0
    %659 = vmatprep.subr.mxu0 0.0
    %660 = vmatpush1.xpose.msra.mxu0 0.0
    %661 = vmatprep.subr.mxu0 0.0
    %662 = vmatpush1.xpose.msra.mxu0 0.0
    %663 = vmatprep.subr.mxu0 0.0
    %664 = vmatpush1.xpose.msra.mxu0 0.0
    %665 = vmatprep.subr.mxu0 0.0
    %666 = vmatpush1.xpose.msra.mxu0 0.0
    %667 = vmatprep.subr.mxu0 0.0
    %668 = vmatpush1.xpose.msra.mxu0 0.0
    %669 = vmatprep.subr.mxu0 0.0
    %670 = vmatpush1.xpose.msra.mxu0 0.0
    %671 = vmatprep.subr.mxu0 0.0
    %672 = vmatpush1.xpose.msra.mxu0 0.0
    %673 = vmatprep.subr.mxu0 0.0
    %674 = vmatpush1.xpose.msra.mxu0 0.0
    %675 = vmatprep.subr.mxu0 0.0
    %676 = vmatpush1.xpose.msra.mxu0 0.0
    %677 = vmatprep.subr.mxu0 0.0
    %678 = vmatpush1.xpose.msra.mxu0 0.0
    %679 = vmatprep.subr.mxu0 0.0
    %680 = vmatpush1.xpose.msra.mxu0 0.0
    %681 = vmatprep.subr.mxu0 0.0
    %682 = vmatpush1.xpose.msra.mxu0 0.0
    %683 = vmatprep.subr.mxu0 0.0
    %684 = vmatpush1.xpose.msra.mxu0 0.0
    %685 = vmatprep.subr.mxu0 0.0
    %686 = vmatpush1.xpose.msra.mxu0 0.0
    %687 = vmatprep.mubr.f32.mxu0 0.0
    %688 = vmatmul.mubr.f32.gmra.mrb[0].mxu0 %v619
    %v689 = vpop.f32.mrb[0].mxu0
    %v690 = vadd.f32 0.0, %v689
    %v691 = vpop.f32.mrb[0].mxu0
    %692 = vdwg.mxu0
    %v693 = vmul.f32 %v612, 0.35355338
    %v694 = vmul.f32 %v690, 0.35355338
    %v695 = vsel %vm47, -1e+09, %v693
    %v696 = vsel %vm48, -1e+09, %v694
    %v697 = vsel %vm207, %v695, -inf
    %698 = vmax.xlane.f32.xlu0 %v697
    %v699 = vpop.xlane.xlu0 %698
    %v700 = vsel %vm207, %v696, -inf
    %701 = vmax.xlane.f32.xlu0 %v700
    %v702 = vpop.xlane.xlu0 %701
    %v703 = vsub.f32 %v695, %v699
    %v704 = vsub.f32 %v696, %v702
    %v705 = vmul.f32 %v703, 1.442695
    %v706 = vpow.pop %v705
    %v707 = vmul.f32 %v704, 1.442695
    %v708 = vpow.pop %v707
    %v709 = vsel %vm207, %v706, 0.0
    %710 = vadd.xlane.f32.xlu0 %v709
    %v711 = vpop.xlane.xlu0 %710
    %v712 = vsel %vm207, %v708, 0.0
    %713 = vadd.xlane.f32.xlu0 %v712
    %v714 = vpop.xlane.xlu0 %713
    %v715 = vrcp.pop %v711
    %v716 = vrcp.pop %v714
    %v717 = vmul.f32 %v706, %v715
    %v718 = vmul.f32 %v708, %v716
    %719 = vrot.lane.b32.xlu0 %v191, 56
    %v720 = vpop.permute.xlu0 %719
    %v723 = vsel %vm207, %v717, 0
    %725 = vmatprep.subr.mxu0 0.0
    %726 = vmatpush1.msra.mxu0 %v720
    %727 = vmatprep.subr.mxu0 0.0
    %728 = vmatpush1.msra.mxu0 0.0
    %729 = vmatprep.subr.mxu0 0.0
    %730 = vmatpush1.msra.mxu0 0.0
    %731 = vmatprep.subr.mxu0 0.0
    %732 = vmatpush1.msra.mxu0 0.0
    %733 = vmatprep.subr.mxu0 0.0
    %734 = vmatpush1.msra.mxu0 0.0
    %735 = vmatprep.subr.mxu0 0.0
    %736 = vmatpush1.msra.mxu0 0.0
    %737 = vmatprep.subr.mxu0 0.0
    %738 = vmatpush1.msra.mxu0 0.0
    %739 = vmatprep.subr.mxu0 0.0
    %740 = vmatpush1.msra.mxu0 0.0
    %741 = vmatprep.subr.mxu0 0.0
    %742 = vmatpush1.msra.mxu0 0.0
    %743 = vmatprep.subr.mxu0 0.0
    %744 = vmatpush1.msra.mxu0 0.0
    %745 = vmatprep.subr.mxu0 0.0
    %746 = vmatpush1.msra.mxu0 0.0
    %747 = vmatprep.subr.mxu0 0.0
    %748 = vmatpush1.msra.mxu0 0.0
    %749 = vmatprep.subr.mxu0 0.0
    %750 = vmatpush1.msra.mxu0 0.0
    %751 = vmatprep.subr.mxu0 0.0
    %752 = vmatpush1.msra.mxu0 0.0
    %753 = vmatprep.subr.mxu0 0.0
    %754 = vmatpush1.msra.mxu0 0.0
    %755 = vmatprep.subr.mxu0 0.0
    %756 = vmatpush1.msra.mxu0 0.0
    %757 = vmatprep.subr.mxu0 0.0
    %758 = vmatpush1.msra.mxu0 0.0
    %759 = vmatprep.subr.mxu0 0.0
    %760 = vmatpush1.msra.mxu0 0.0
    %761 = vmatprep.subr.mxu0 0.0
    %762 = vmatpush1.msra.mxu0 0.0
    %763 = vmatprep.subr.mxu0 0.0
    %764 = vmatpush1.msra.mxu0 0.0
    %765 = vmatprep.subr.mxu0 0.0
    %766 = vmatpush1.msra.mxu0 0.0
    %767 = vmatprep.subr.mxu0 0.0
    %768 = vmatpush1.msra.mxu0 0.0
    %769 = vmatprep.subr.mxu0 0.0
    %770 = vmatpush1.msra.mxu0 0.0
    %771 = vmatprep.subr.mxu0 0.0
    %772 = vmatpush1.msra.mxu0 0.0
    %773 = vmatprep.subr.mxu0 0.0
    %774 = vmatpush1.msra.mxu0 0.0
    %775 = vmatprep.subr.mxu0 0.0
    %776 = vmatpush1.msra.mxu0 0.0
    %777 = vmatprep.subr.mxu0 0.0
    %778 = vmatpush1.msra.mxu0 0.0
    %779 = vmatprep.subr.mxu0 0.0
    %780 = vmatpush1.msra.mxu0 0.0
    %781 = vmatprep.subr.mxu0 0.0
    %782 = vmatpush1.msra.mxu0 0.0
    %783 = vmatprep.subr.mxu0 0.0
    %784 = vmatpush1.msra.mxu0 0.0
    %785 = vmatprep.subr.mxu0 0.0
    %786 = vmatpush1.msra.mxu0 0.0
    %787 = vmatprep.subr.mxu0 0.0
    %788 = vmatpush1.msra.mxu0 0.0
    %789 = vmatprep.mubr.f32.mxu0 0.0
    %790 = vmatmul.mubr.f32.gmra.mrb[0].mxu0 %v723
    %v791 = vpop.f32.mrb[0].mxu0
    %v792 = vadd.f32 0.0, %v791
    %v793 = vpop.f32.mrb[0].mxu0
    %794 = vdwg.mxu0
    %795 = vrot.lane.b32.xlu0 %v196, 56
    %v796 = vpop.permute.xlu0 %795
    %v799 = vsel %vm207, %v718, 0
    %801 = vmatprep.subr.mxu0 0.0
    %802 = vmatpush1.msra.mxu0 %v796
    %803 = vmatprep.subr.mxu0 0.0
    %804 = vmatpush1.msra.mxu0 0.0
    %805 = vmatprep.subr.mxu0 0.0
    %806 = vmatpush1.msra.mxu0 0.0
    %807 = vmatprep.subr.mxu0 0.0
    %808 = vmatpush1.msra.mxu0 0.0
    %809 = vmatprep.subr.mxu0 0.0
    %810 = vmatpush1.msra.mxu0 0.0
    %811 = vmatprep.subr.mxu0 0.0
    %812 = vmatpush1.msra.mxu0 0.0
    %813 = vmatprep.subr.mxu0 0.0
    %814 = vmatpush1.msra.mxu0 0.0
    %815 = vmatprep.subr.mxu0 0.0
    %816 = vmatpush1.msra.mxu0 0.0
    %817 = vmatprep.subr.mxu0 0.0
    %818 = vmatpush1.msra.mxu0 0.0
    %819 = vmatprep.subr.mxu0 0.0
    %820 = vmatpush1.msra.mxu0 0.0
    %821 = vmatprep.subr.mxu0 0.0
    %822 = vmatpush1.msra.mxu0 0.0
    %823 = vmatprep.subr.mxu0 0.0
    %824 = vmatpush1.msra.mxu0 0.0
    %825 = vmatprep.subr.mxu0 0.0
    %826 = vmatpush1.msra.mxu0 0.0
    %827 = vmatprep.subr.mxu0 0.0
    %828 = vmatpush1.msra.mxu0 0.0
    %829 = vmatprep.subr.mxu0 0.0
    %830 = vmatpush1.msra.mxu0 0.0
    %831 = vmatprep.subr.mxu0 0.0
    %832 = vmatpush1.msra.mxu0 0.0
    %833 = vmatprep.subr.mxu0 0.0
    %834 = vmatpush1.msra.mxu0 0.0
    %835 = vmatprep.subr.mxu0 0.0
    %836 = vmatpush1.msra.mxu0 0.0
    %837 = vmatprep.subr.mxu0 0.0
    %838 = vmatpush1.msra.mxu0 0.0
    %839 = vmatprep.subr.mxu0 0.0
    %840 = vmatpush1.msra.mxu0 0.0
    %841 = vmatprep.subr.mxu0 0.0
    %842 = vmatpush1.msra.mxu0 0.0
    %843 = vmatprep.subr.mxu0 0.0
    %844 = vmatpush1.msra.mxu0 0.0
    %845 = vmatprep.subr.mxu0 0.0
    %846 = vmatpush1.msra.mxu0 0.0
    %847 = vmatprep.subr.mxu0 0.0
    %848 = vmatpush1.msra.mxu0 0.0
    %849 = vmatprep.subr.mxu0 0.0
    %850 = vmatpush1.msra.mxu0 0.0
    %851 = vmatprep.subr.mxu0 0.0
    %852 = vmatpush1.msra.mxu0 0.0
    %853 = vmatprep.subr.mxu0 0.0
    %854 = vmatpush1.msra.mxu0 0.0
    %855 = vmatprep.subr.mxu0 0.0
    %856 = vmatpush1.msra.mxu0 0.0
    %857 = vmatprep.subr.mxu0 0.0
    %858 = vmatpush1.msra.mxu0 0.0
    %859 = vmatprep.subr.mxu0 0.0
    %860 = vmatpush1.msra.mxu0 0.0
    %861 = vmatprep.subr.mxu0 0.0
    %862 = vmatpush1.msra.mxu0 0.0
    %863 = vmatprep.subr.mxu0 0.0
    %864 = vmatpush1.msra.mxu0 0.0
    %865 = vmatprep.mubr.f32.mxu0 0.0
    %866 = vmatmul.mubr.f32.gmra.mrb[0].mxu0 %v799
    %v867 = vpop.f32.mrb[0].mxu0
    %v868 = vadd.f32 0.0, %v867
    %v869 = vpop.f32.mrb[0].mxu0
    %870 = vdwg.mxu0
    %871 = vrot.lane.b32.xlu0 %v191, 112
    %v872 = vpop.permute.xlu0 %871
    %873 = vrot.lane.b32.xlu0 %v191, 80
    %v874 = vpop.permute.xlu0 %873
    %v875 = vsel %vm207, %v872, 0
    %v877 = vsel %vm207, %v874, 0
    %879 = vmatprep.subr.mxu0 0.0
    %880 = vmatpush1.xpose.msra.mxu0 %v877
    %881 = vmatprep.subr.mxu0 0.0
    %882 = vmatpush1.xpose.msra.mxu0 0.0
    %883 = vmatprep.subr.mxu0 0.0
    %884 = vmatpush1.xpose.msra.mxu0 0.0
    %885 = vmatprep.subr.mxu0 0.0
    %886 = vmatpush1.xpose.msra.mxu0 0.0
    %887 = vmatprep.subr.mxu0 0.0
    %888 = vmatpush1.xpose.msra.mxu0 0.0
    %889 = vmatprep.subr.mxu0 0.0
    %890 = vmatpush1.xpose.msra.mxu0 0.0
    %891 = vmatprep.subr.mxu0 0.0
    %892 = vmatpush1.xpose.msra.mxu0 0.0
    %893 = vmatprep.subr.mxu0 0.0
    %894 = vmatpush1.xpose.msra.mxu0 0.0
    %895 = vmatprep.subr.mxu0 0.0
    %896 = vmatpush1.xpose.msra.mxu0 0.0
    %897 = vmatprep.subr.mxu0 0.0
    %898 = vmatpush1.xpose.msra.mxu0 0.0
    %899 = vmatprep.subr.mxu0 0.0
    %900 = vmatpush1.xpose.msra.mxu0 0.0
    %901 = vmatprep.subr.mxu0 0.0
    %902 = vmatpush1.xpose.msra.mxu0 0.0
    %903 = vmatprep.subr.mxu0 0.0
    %904 = vmatpush1.xpose.msra.mxu0 0.0
    %905 = vmatprep.subr.mxu0 0.0
    %906 = vmatpush1.xpose.msra.mxu0 0.0
    %907 = vmatprep.subr.mxu0 0.0
    %908 = vmatpush1.xpose.msra.mxu0 0.0
    %909 = vmatprep.subr.mxu0 0.0
    %910 = vmatpush1.xpose.msra.mxu0 0.0
    %911 = vmatprep.subr.mxu0 0.0
    %912 = vmatpush1.xpose.msra.mxu0 0.0
    %913 = vmatprep.subr.mxu0 0.0
    %914 = vmatpush1.xpose.msra.mxu0 0.0
    %915 = vmatprep.subr.mxu0 0.0
    %916 = vmatpush1.xpose.msra.mxu0 0.0
    %917 = vmatprep.subr.mxu0 0.0
    %918 = vmatpush1.xpose.msra.mxu0 0.0
    %919 = vmatprep.subr.mxu0 0.0
    %920 = vmatpush1.xpose.msra.mxu0 0.0
    %921 = vmatprep.subr.mxu0 0.0
    %922 = vmatpush1.xpose.msra.mxu0 0.0
    %923 = vmatprep.subr.mxu0 0.0
    %924 = vmatpush1.xpose.msra.mxu0 0.0
    %925 = vmatprep.subr.mxu0 0.0
    %926 = vmatpush1.xpose.msra.mxu0 0.0
    %927 = vmatprep.subr.mxu0 0.0
    %928 = vmatpush1.xpose.msra.mxu0 0.0
    %929 = vmatprep.subr.mxu0 0.0
    %930 = vmatpush1.xpose.msra.mxu0 0.0
    %931 = vmatprep.subr.mxu0 0.0
    %932 = vmatpush1.xpose.msra.mxu0 0.0
    %933 = vmatprep.subr.mxu0 0.0
    %934 = vmatpush1.xpose.msra.mxu0 0.0
    %935 = vmatprep.subr.mxu0 0.0
    %936 = vmatpush1.xpose.msra.mxu0 0.0
    %937 = vmatprep.subr.mxu0 0.0
    %938 = vmatpush1.xpose.msra.mxu0 0.0
    %939 = vmatprep.subr.mxu0 0.0
    %940 = vmatpush1.xpose.msra.mxu0 0.0
    %941 = vmatprep.subr.mxu0 0.0
    %942 = vmatpush1.xpose.msra.mxu0 0.0
    %943 = vmatprep.mubr.f32.mxu0 0.0
    %944 = vmatmul.mubr.f32.gmra.mrb[0].mxu0 %v875
    %v945 = vpop.f32.mrb[0].mxu0
    %v946 = vadd.f32 0.0, %v945
    %v947 = vpop.f32.mrb[0].mxu0
    %948 = vdwg.mxu0
    %949 = vrot.lane.b32.xlu0 %v196, 112
    %v950 = vpop.permute.xlu0 %949
    %951 = vrot.lane.b32.xlu0 %v196, 80
    %v952 = vpop.permute.xlu0 %951
    %v953 = vsel %vm207, %v950, 0
    %v955 = vsel %vm207, %v952, 0
    %957 = vmatprep.subr.mxu0 0.0
    %958 = vmatpush1.xpose.msra.mxu0 %v955
    %959 = vmatprep.subr.mxu0 0.0
    %960 = vmatpush1.xpose.msra.mxu0 0.0
    %961 = vmatprep.subr.mxu0 0.0
    %962 = vmatpush1.xpose.msra.mxu0 0.0
    %963 = vmatprep.subr.mxu0 0.0
    %964 = vmatpush1.xpose.msra.mxu0 0.0
    %965 = vmatprep.subr.mxu0 0.0
    %966 = vmatpush1.xpose.msra.mxu0 0.0
    %967 = vmatprep.subr.mxu0 0.0
    %968 = vmatpush1.xpose.msra.mxu0 0.0
    %969 = vmatprep.subr.mxu0 0.0
    %970 = vmatpush1.xpose.msra.mxu0 0.0
    %971 = vmatprep.subr.mxu0 0.0
    %972 = vmatpush1.xpose.msra.mxu0 0.0
    %973 = vmatprep.subr.mxu0 0.0
    %974 = vmatpush1.xpose.msra.mxu0 0.0
    %975 = vmatprep.subr.mxu0 0.0
    %976 = vmatpush1.xpose.msra.mxu0 0.0
    %977 = vmatprep.subr.mxu0 0.0
    %978 = vmatpush1.xpose.msra.mxu0 0.0
    %979 = vmatprep.subr.mxu0 0.0
    %980 = vmatpush1.xpose.msra.mxu0 0.0
    %981 = vmatprep.subr.mxu0 0.0
    %982 = vmatpush1.xpose.msra.mxu0 0.0
    %983 = vmatprep.subr.mxu0 0.0
    %984 = vmatpush1.xpose.msra.mxu0 0.0
    %985 = vmatprep.subr.mxu0 0.0
    %986 = vmatpush1.xpose.msra.mxu0 0.0
    %987 = vmatprep.subr.mxu0 0.0
    %988 = vmatpush1.xpose.msra.mxu0 0.0
    %989 = vmatprep.subr.mxu0 0.0
    %990 = vmatpush1.xpose.msra.mxu0 0.0
    %991 = vmatprep.subr.mxu0 0.0
    %992 = vmatpush1.xpose.msra.mxu0 0.0
    %993 = vmatprep.subr.mxu0 0.0
    %994 = vmatpush1.xpose.msra.mxu0 0.0
    %995 = vmatprep.subr.mxu0 0.0
    %996 = vmatpush1.xpose.msra.mxu0 0.0
    %997 = vmatprep.subr.mxu0 0.0
    %998 = vmatpush1.xpose.msra.mxu0 0.0
    %999 = vmatprep.subr.mxu0 0.0
    %1000 = vmatpush1.xpose.msra.mxu0 0.0
    %1001 = vmatprep.subr.mxu0 0.0
    %1002 = vmatpush1.xpose.msra.mxu0 0.0
    %1003 = vmatprep.subr.mxu0 0.0
    %1004 = vmatpush1.xpose.msra.mxu0 0.0
    %1005 = vmatprep.subr.mxu0 0.0
    %1006 = vmatpush1.xpose.msra.mxu0 0.0
    %1007 = vmatprep.subr.mxu0 0.0
    %1008 = vmatpush1.xpose.msra.mxu0 0.0
    %1009 = vmatprep.subr.mxu0 0.0
    %1010 = vmatpush1.xpose.msra.mxu0 0.0
    %1011 = vmatprep.subr.mxu0 0.0
    %1012 = vmatpush1.xpose.msra.mxu0 0.0
    %1013 = vmatprep.subr.mxu0 0.0
    %1014 = vmatpush1.xpose.msra.mxu0 0.0
    %1015 = vmatprep.subr.mxu0 0.0
    %1016 = vmatpush1.xpose.msra.mxu0 0.0
    %1017 = vmatprep.subr.mxu0 0.0
    %1018 = vmatpush1.xpose.msra.mxu0 0.0
    %1019 = vmatprep.subr.mxu0 0.0
    %1020 = vmatpush1.xpose.msra.mxu0 0.0
    %1021 = vmatprep.mubr.f32.mxu0 0.0
    %1022 = vmatmul.mubr.f32.gmra.mrb[0].mxu0 %v953
    %v1023 = vpop.f32.mrb[0].mxu0
    %v1024 = vadd.f32 0.0, %v1023
    %v1025 = vpop.f32.mrb[0].mxu0
    %1026 = vdwg.mxu0
    %v1027 = vmul.f32 %v946, 0.35355338
    %v1028 = vmul.f32 %v1024, 0.35355338
    %v1029 = vsel %vm47, -1e+09, %v1027
    %v1030 = vsel %vm48, -1e+09, %v1028
    %v1031 = vsel %vm207, %v1029, -inf
    %1032 = vmax.xlane.f32.xlu0 %v1031
    %v1033 = vpop.xlane.xlu0 %1032
    %v1034 = vsel %vm207, %v1030, -inf
    %1035 = vmax.xlane.f32.xlu0 %v1034
    %v1036 = vpop.xlane.xlu0 %1035
    %v1037 = vsub.f32 %v1029, %v1033
    %v1038 = vsub.f32 %v1030, %v1036
    %v1039 = vmul.f32 %v1037, 1.442695
    %v1040 = vpow.pop %v1039
    %v1041 = vmul.f32 %v1038, 1.442695
    %v1042 = vpow.pop %v1041
    %v1043 = vsel %vm207, %v1040, 0.0
    %1044 = vadd.xlane.f32.xlu0 %v1043
    %v1045 = vpop.xlane.xlu0 %1044
    %v1046 = vsel %vm207, %v1042, 0.0
    %1047 = vadd.xlane.f32.xlu0 %v1046
    %v1048 = vpop.xlane.xlu0 %1047
    %v1049 = vrcp.pop %v1045
    %v1050 = vrcp.pop %v1048
    %v1051 = vmul.f32 %v1040, %v1049
    %v1052 = vmul.f32 %v1042, %v1050
    %1053 = vrot.lane.b32.xlu0 %v191, 48
    %v1054 = vpop.permute.xlu0 %1053
    %v1057 = vsel %vm207, %v1051, 0
    %1059 = vmatprep.subr.mxu0 0.0
    %1060 = vmatpush1.msra.mxu0 %v1054
    %1061 = vmatprep.subr.mxu0 0.0
    %1062 = vmatpush1.msra.mxu0 0.0
    %1063 = vmatprep.subr.mxu0 0.0
    %1064 = vmatpush1.msra.mxu0 0.0
    %1065 = vmatprep.subr.mxu0 0.0
    %1066 = vmatpush1.msra.mxu0 0.0
    %1067 = vmatprep.subr.mxu0 0.0
    %1068 = vmatpush1.msra.mxu0 0.0
    %1069 = vmatprep.subr.mxu0 0.0
    %1070 = vmatpush1.msra.mxu0 0.0
    %1071 = vmatprep.subr.mxu0 0.0
    %1072 = vmatpush1.msra.mxu0 0.0
    %1073 = vmatprep.subr.mxu0 0.0
    %1074 = vmatpush1.msra.mxu0 0.0
    %1075 = vmatprep.subr.mxu0 0.0
    %1076 = vmatpush1.msra.mxu0 0.0
    %1077 = vmatprep.subr.mxu0 0.0
    %1078 = vmatpush1.msra.mxu0 0.0
    %1079 = vmatprep.subr.mxu0 0.0
    %1080 = vmatpush1.msra.mxu0 0.0
    %1081 = vmatprep.subr.mxu0 0.0
    %1082 = vmatpush1.msra.mxu0 0.0
    %1083 = vmatprep.subr.mxu0 0.0
    %1084 = vmatpush1.msra.mxu0 0.0
    %1085 = vmatprep.subr.mxu0 0.0
    %1086 = vmatpush1.msra.mxu0 0.0
    %1087 = vmatprep.subr.mxu0 0.0
    %1088 = vmatpush1.msra.mxu0 0.0
    %1089 = vmatprep.subr.mxu0 0.0
    %1090 = vmatpush1.msra.mxu0 0.0
    %1091 = vmatprep.subr.mxu0 0.0
    %1092 = vmatpush1.msra.mxu0 0.0
    %1093 = vmatprep.subr.mxu0 0.0
    %1094 = vmatpush1.msra.mxu0 0.0
    %1095 = vmatprep.subr.mxu0 0.0
    %1096 = vmatpush1.msra.mxu0 0.0
    %1097 = vmatprep.subr.mxu0 0.0
    %1098 = vmatpush1.msra.mxu0 0.0
    %1099 = vmatprep.subr.mxu0 0.0
    %1100 = vmatpush1.msra.mxu0 0.0
    %1101 = vmatprep.subr.mxu0 0.0
    %1102 = vmatpush1.msra.mxu0 0.0
    %1103 = vmatprep.subr.mxu0 0.0
    %1104 = vmatpush1.msra.mxu0 0.0
    %1105 = vmatprep.subr.mxu0 0.0
    %1106 = vmatpush1.msra.mxu0 0.0
    %1107 = vmatprep.subr.mxu0 0.0
    %1108 = vmatpush1.msra.mxu0 0.0
    %1109 = vmatprep.subr.mxu0 0.0
    %1110 = vmatpush1.msra.mxu0 0.0
    %1111 = vmatprep.subr.mxu0 0.0
    %1112 = vmatpush1.msra.mxu0 0.0
    %1113 = vmatprep.subr.mxu0 0.0
    %1114 = vmatpush1.msra.mxu0 0.0
    %1115 = vmatprep.subr.mxu0 0.0
    %1116 = vmatpush1.msra.mxu0 0.0
    %1117 = vmatprep.subr.mxu0 0.0
    %1118 = vmatpush1.msra.mxu0 0.0
    %1119 = vmatprep.subr.mxu0 0.0
    %1120 = vmatpush1.msra.mxu0 0.0
    %1121 = vmatprep.subr.mxu0 0.0
    %1122 = vmatpush1.msra.mxu0 0.0
    %1123 = vmatprep.mubr.f32.mxu0 0.0
    %1124 = vmatmul.mubr.f32.gmra.mrb[0].mxu0 %v1057
    %v1125 = vpop.f32.mrb[0].mxu0
    %v1126 = vadd.f32 0.0, %v1125
    %v1127 = vpop.f32.mrb[0].mxu0
    %1128 = vdwg.mxu0
    %1129 = vrot.lane.b32.xlu0 %v196, 48
    %v1130 = vpop.permute.xlu0 %1129
    %v1133 = vsel %vm207, %v1052, 0
    %1135 = vmatprep.subr.mxu0 0.0
    %1136 = vmatpush1.msra.mxu0 %v1130
    %1137 = vmatprep.subr.mxu0 0.0
    %1138 = vmatpush1.msra.mxu0 0.0
    %1139 = vmatprep.subr.mxu0 0.0
    %1140 = vmatpush1.msra.mxu0 0.0
    %1141 = vmatprep.subr.mxu0 0.0
    %1142 = vmatpush1.msra.mxu0 0.0
    %1143 = vmatprep.subr.mxu0 0.0
    %1144 = vmatpush1.msra.mxu0 0.0
    %1145 = vmatprep.subr.mxu0 0.0
    %1146 = vmatpush1.msra.mxu0 0.0
    %1147 = vmatprep.subr.mxu0 0.0
    %1148 = vmatpush1.msra.mxu0 0.0
    %1149 = vmatprep.subr.mxu0 0.0
    %1150 = vmatpush1.msra.mxu0 0.0
    %1151 = vmatprep.subr.mxu0 0.0
    %1152 = vmatpush1.msra.mxu0 0.0
    %1153 = vmatprep.subr.mxu0 0.0
    %1154 = vmatpush1.msra.mxu0 0.0
    %1155 = vmatprep.subr.mxu0 0.0
    %1156 = vmatpush1.msra.mxu0 0.0
    %1157 = vmatprep.subr.mxu0 0.0
    %1158 = vmatpush1.msra.mxu0 0.0
    %1159 = vmatprep.subr.mxu0 0.0
    %1160 = vmatpush1.msra.mxu0 0.0
    %1161 = vmatprep.subr.mxu0 0.0
    %1162 = vmatpush1.msra.mxu0 0.0
    %1163 = vmatprep.subr.mxu0 0.0
    %1164 = vmatpush1.msra.mxu0 0.0
    %1165 = vmatprep.subr.mxu0 0.0
    %1166 = vmatpush1.msra.mxu0 0.0
    %1167 = vmatprep.subr.mxu0 0.0
    %1168 = vmatpush1.msra.mxu0 0.0
    %1169 = vmatprep.subr.mxu0 0.0
    %1170 = vmatpush1.msra.mxu0 0.0
    %1171 = vmatprep.subr.mxu0 0.0
    %1172 = vmatpush1.msra.mxu0 0.0
    %1173 = vmatprep.subr.mxu0 0.0
    %1174 = vmatpush1.msra.mxu0 0.0
    %1175 = vmatprep.subr.mxu0 0.0
    %1176 = vmatpush1.msra.mxu0 0.0
    %1177 = vmatprep.subr.mxu0 0.0
    %1178 = vmatpush1.msra.mxu0 0.0
    %1179 = vmatprep.subr.mxu0 0.0
    %1180 = vmatpush1.msra.mxu0 0.0
    %1181 = vmatprep.subr.mxu0 0.0
    %1182 = vmatpush1.msra.mxu0 0.0
    %1183 = vmatprep.subr.mxu0 0.0
    %1184 = vmatpush1.msra.mxu0 0.0
    %1185 = vmatprep.subr.mxu0 0.0
    %1186 = vmatpush1.msra.mxu0 0.0
    %1187 = vmatprep.subr.mxu0 0.0
    %1188 = vmatpush1.msra.mxu0 0.0
    %1189 = vmatprep.subr.mxu0 0.0
    %1190 = vmatpush1.msra.mxu0 0.0
    %1191 = vmatprep.subr.mxu0 0.0
    %1192 = vmatpush1.msra.mxu0 0.0
    %1193 = vmatprep.subr.mxu0 0.0
    %1194 = vmatpush1.msra.mxu0 0.0
    %1195 = vmatprep.subr.mxu0 0.0
    %1196 = vmatpush1.msra.mxu0 0.0
    %1197 = vmatprep.subr.mxu0 0.0
    %1198 = vmatpush1.msra.mxu0 0.0
    %1199 = vmatprep.mubr.f32.mxu0 0.0
    %1200 = vmatmul.mubr.f32.gmra.mrb[0].mxu0 %v1133
    %v1201 = vpop.f32.mrb[0].mxu0
    %v1202 = vadd.f32 0.0, %v1201
    %v1203 = vpop.f32.mrb[0].mxu0
    %1204 = vdwg.mxu0
    %1205 = vrot.lane.b32.xlu0 %v191, 104
    %v1206 = vpop.permute.xlu0 %1205
    %1207 = vrot.lane.b32.xlu0 %v191, 72
    %v1208 = vpop.permute.xlu0 %1207
    %v1209 = vsel %vm207, %v1206, 0
    %v1211 = vsel %vm207, %v1208, 0
    %1213 = vmatprep.subr.mxu0 0.0
    %1214 = vmatpush1.xpose.msra.mxu0 %v1211
    %1215 = vmatprep.subr.mxu0 0.0
    %1216 = vmatpush1.xpose.msra.mxu0 0.0
    %1217 = vmatprep.subr.mxu0 0.0
    %1218 = vmatpush1.xpose.msra.mxu0 0.0
    %1219 = vmatprep.subr.mxu0 0.0
    %1220 = vmatpush1.xpose.msra.mxu0 0.0
    %1221 = vmatprep.subr.mxu0 0.0
    %1222 = vmatpush1.xpose.msra.mxu0 0.0
    %1223 = vmatprep.subr.mxu0 0.0
    %1224 = vmatpush1.xpose.msra.mxu0 0.0
    %1225 = vmatprep.subr.mxu0 0.0
    %1226 = vmatpush1.xpose.msra.mxu0 0.0
    %1227 = vmatprep.subr.mxu0 0.0
    %1228 = vmatpush1.xpose.msra.mxu0 0.0
    %1229 = vmatprep.subr.mxu0 0.0
    %1230 = vmatpush1.xpose.msra.mxu0 0.0
    %1231 = vmatprep.subr.mxu0 0.0
    %1232 = vmatpush1.xpose.msra.mxu0 0.0
    %1233 = vmatprep.subr.mxu0 0.0
    %1234 = vmatpush1.xpose.msra.mxu0 0.0
    %1235 = vmatprep.subr.mxu0 0.0
    %1236 = vmatpush1.xpose.msra.mxu0 0.0
    %1237 = vmatprep.subr.mxu0 0.0
    %1238 = vmatpush1.xpose.msra.mxu0 0.0
    %1239 = vmatprep.subr.mxu0 0.0
    %1240 = vmatpush1.xpose.msra.mxu0 0.0
    %1241 = vmatprep.subr.mxu0 0.0
    %1242 = vmatpush1.xpose.msra.mxu0 0.0
    %1243 = vmatprep.subr.mxu0 0.0
    %1244 = vmatpush1.xpose.msra.mxu0 0.0
    %1245 = vmatprep.subr.mxu0 0.0
    %1246 = vmatpush1.xpose.msra.mxu0 0.0
    %1247 = vmatprep.subr.mxu0 0.0
    %1248 = vmatpush1.xpose.msra.mxu0 0.0
    %1249 = vmatprep.subr.mxu0 0.0
    %1250 = vmatpush1.xpose.msra.mxu0 0.0
    %1251 = vmatprep.subr.mxu0 0.0
    %1252 = vmatpush1.xpose.msra.mxu0 0.0
    %1253 = vmatprep.subr.mxu0 0.0
    %1254 = vmatpush1.xpose.msra.mxu0 0.0
    %1255 = vmatprep.subr.mxu0 0.0
    %1256 = vmatpush1.xpose.msra.mxu0 0.0
    %1257 = vmatprep.subr.mxu0 0.0
    %1258 = vmatpush1.xpose.msra.mxu0 0.0
    %1259 = vmatprep.subr.mxu0 0.0
    %1260 = vmatpush1.xpose.msra.mxu0 0.0
    %1261 = vmatprep.subr.mxu0 0.0
    %1262 = vmatpush1.xpose.msra.mxu0 0.0
    %1263 = vmatprep.subr.mxu0 0.0
    %1264 = vmatpush1.xpose.msra.mxu0 0.0
    %1265 = vmatprep.subr.mxu0 0.0
    %1266 = vmatpush1.xpose.msra.mxu0 0.0
    %1267 = vmatprep.subr.mxu0 0.0
    %1268 = vmatpush1.xpose.msra.mxu0 0.0
    %1269 = vmatprep.subr.mxu0 0.0
    %1270 = vmatpush1.xpose.msra.mxu0 0.0
    %1271 = vmatprep.subr.mxu0 0.0
    %1272 = vmatpush1.xpose.msra.mxu0 0.0
    %1273 = vmatprep.subr.mxu0 0.0
    %1274 = vmatpush1.xpose.msra.mxu0 0.0
    %1275 = vmatprep.subr.mxu0 0.0
    %1276 = vmatpush1.xpose.msra.mxu0 0.0
    %1277 = vmatprep.mubr.f32.mxu0 0.0
    %1278 = vmatmul.mubr.f32.gmra.mrb[0].mxu0 %v1209
    %v1279 = vpop.f32.mrb[0].mxu0
    %v1280 = vadd.f32 0.0, %v1279
    %v1281 = vpop.f32.mrb[0].mxu0
    %1282 = vdwg.mxu0
    %1283 = vrot.lane.b32.xlu0 %v196, 104
    %v1284 = vpop.permute.xlu0 %1283
    %1285 = vrot.lane.b32.xlu0 %v196, 72
    %v1286 = vpop.permute.xlu0 %1285
    %v1287 = vsel %vm207, %v1284, 0
    %v1289 = vsel %vm207, %v1286, 0
    %1291 = vmatprep.subr.mxu0 0.0
    %1292 = vmatpush1.xpose.msra.mxu0 %v1289
    %1293 = vmatprep.subr.mxu0 0.0
    %1294 = vmatpush1.xpose.msra.mxu0 0.0
    %1295 = vmatprep.subr.mxu0 0.0
    %1296 = vmatpush1.xpose.msra.mxu0 0.0
    %1297 = vmatprep.subr.mxu0 0.0
    %1298 = vmatpush1.xpose.msra.mxu0 0.0
    %1299 = vmatprep.subr.mxu0 0.0
    %1300 = vmatpush1.xpose.msra.mxu0 0.0
    %1301 = vmatprep.subr.mxu0 0.0
    %1302 = vmatpush1.xpose.msra.mxu0 0.0
    %1303 = vmatprep.subr.mxu0 0.0
    %1304 = vmatpush1.xpose.msra.mxu0 0.0
    %1305 = vmatprep.subr.mxu0 0.0
    %1306 = vmatpush1.xpose.msra.mxu0 0.0
    %1307 = vmatprep.subr.mxu0 0.0
    %1308 = vmatpush1.xpose.msra.mxu0 0.0
    %1309 = vmatprep.subr.mxu0 0.0
    %1310 = vmatpush1.xpose.msra.mxu0 0.0
    %1311 = vmatprep.subr.mxu0 0.0
    %1312 = vmatpush1.xpose.msra.mxu0 0.0
    %1313 = vmatprep.subr.mxu0 0.0
    %1314 = vmatpush1.xpose.msra.mxu0 0.0
    %1315 = vmatprep.subr.mxu0 0.0
    %1316 = vmatpush1.xpose.msra.mxu0 0.0
    %1317 = vmatprep.subr.mxu0 0.0
    %1318 = vmatpush1.xpose.msra.mxu0 0.0
    %1319 = vmatprep.subr.mxu0 0.0
    %1320 = vmatpush1.xpose.msra.mxu0 0.0
    %1321 = vmatprep.subr.mxu0 0.0
    %1322 = vmatpush1.xpose.msra.mxu0 0.0
    %1323 = vmatprep.subr.mxu0 0.0
    %1324 = vmatpush1.xpose.msra.mxu0 0.0
    %1325 = vmatprep.subr.mxu0 0.0
    %1326 = vmatpush1.xpose.msra.mxu0 0.0
    %1327 = vmatprep.subr.mxu0 0.0
    %1328 = vmatpush1.xpose.msra.mxu0 0.0
    %1329 = vmatprep.subr.mxu0 0.0
    %1330 = vmatpush1.xpose.msra.mxu0 0.0
    %1331 = vmatprep.subr.mxu0 0.0
    %1332 = vmatpush1.xpose.msra.mxu0 0.0
    %1333 = vmatprep.subr.mxu0 0.0
    %1334 = vmatpush1.xpose.msra.mxu0 0.0
    %1335 = vmatprep.subr.mxu0 0.0
    %1336 = vmatpush1.xpose.msra.mxu0 0.0
    %1337 = vmatprep.subr.mxu0 0.0
    %1338 = vmatpush1.xpose.msra.mxu0 0.0
    %1339 = vmatprep.subr.mxu0 0.0
    %1340 = vmatpush1.xpose.msra.mxu0 0.0
    %1341 = vmatprep.subr.mxu0 0.0
    %1342 = vmatpush1.xpose.msra.mxu0 0.0
    %1343 = vmatprep.subr.mxu0 0.0
    %1344 = vmatpush1.xpose.msra.mxu0 0.0
    %1345 = vmatprep.subr.mxu0 0.0
    %1346 = vmatpush1.xpose.msra.mxu0 0.0
    %1347 = vmatprep.subr.mxu0 0.0
    %1348 = vmatpush1.xpose.msra.mxu0 0.0
    %1349 = vmatprep.subr.mxu0 0.0
    %1350 = vmatpush1.xpose.msra.mxu0 0.0
    %1351 = vmatprep.subr.mxu0 0.0
    %1352 = vmatpush1.xpose.msra.mxu0 0.0
    %1353 = vmatprep.subr.mxu0 0.0
    %1354 = vmatpush1.xpose.msra.mxu0 0.0
    %1355 = vmatprep.mubr.f32.mxu0 0.0
    %1356 = vmatmul.mubr.f32.gmra.mrb[0].mxu0 %v1287
    %v1357 = vpop.f32.mrb[0].mxu0
    %v1358 = vadd.f32 0.0, %v1357
    %v1359 = vpop.f32.mrb[0].mxu0
    %1360 = vdwg.mxu0
    %v1361 = vmul.f32 %v1280, 0.35355338
    %v1362 = vmul.f32 %v1358, 0.35355338
    %v1363 = vsel %vm47, -1e+09, %v1361
    %v1364 = vsel %vm48, -1e+09, %v1362
    %v1365 = vsel %vm207, %v1363, -inf
    %1366 = vmax.xlane.f32.xlu0 %v1365
    %v1367 = vpop.xlane.xlu0 %1366
    %v1368 = vsel %vm207, %v1364, -inf
    %1369 = vmax.xlane.f32.xlu0 %v1368
    %v1370 = vpop.xlane.xlu0 %1369
    %v1371 = vsub.f32 %v1363, %v1367
    %v1372 = vsub.f32 %v1364, %v1370
    %v1373 = vmul.f32 %v1371, 1.442695
    %v1374 = vpow.pop %v1373
    %v1375 = vmul.f32 %v1372, 1.442695
    %v1376 = vpow.pop %v1375
    %v1377 = vsel %vm207, %v1374, 0.0
    %1378 = vadd.xlane.f32.xlu0 %v1377
    %v1379 = vpop.xlane.xlu0 %1378
    %v1380 = vsel %vm207, %v1376, 0.0
    %1381 = vadd.xlane.f32.xlu0 %v1380
    %v1382 = vpop.xlane.xlu0 %1381
    %v1383 = vrcp.pop %v1379
    %v1384 = vrcp.pop %v1382
    %v1385 = vmul.f32 %v1374, %v1383
    %v1386 = vmul.f32 %v1376, %v1384
    %1387 = vrot.lane.b32.xlu0 %v191, 40
    %v1388 = vpop.permute.xlu0 %1387
    %v1391 = vsel %vm207, %v1385, 0
    %1393 = vmatprep.subr.mxu0 0.0
    %1394 = vmatpush1.msra.mxu0 %v1388
    %1395 = vmatprep.subr.mxu0 0.0
    %1396 = vmatpush1.msra.mxu0 0.0
    %1397 = vmatprep.subr.mxu0 0.0
    %1398 = vmatpush1.msra.mxu0 0.0
    %1399 = vmatprep.subr.mxu0 0.0
    %1400 = vmatpush1.msra.mxu0 0.0
    %1401 = vmatprep.subr.mxu0 0.0
    %1402 = vmatpush1.msra.mxu0 0.0
    %1403 = vmatprep.subr.mxu0 0.0
    %1404 = vmatpush1.msra.mxu0 0.0
    %1405 = vmatprep.subr.mxu0 0.0
    %1406 = vmatpush1.msra.mxu0 0.0
    %1407 = vmatprep.subr.mxu0 0.0
    %1408 = vmatpush1.msra.mxu0 0.0
    %1409 = vmatprep.subr.mxu0 0.0
    %1410 = vmatpush1.msra.mxu0 0.0
    %1411 = vmatprep.subr.mxu0 0.0
    %1412 = vmatpush1.msra.mxu0 0.0
    %1413 = vmatprep.subr.mxu0 0.0
    %1414 = vmatpush1.msra.mxu0 0.0
    %1415 = vmatprep.subr.mxu0 0.0
    %1416 = vmatpush1.msra.mxu0 0.0
    %1417 = vmatprep.subr.mxu0 0.0
    %1418 = vmatpush1.msra.mxu0 0.0
    %1419 = vmatprep.subr.mxu0 0.0
    %1420 = vmatpush1.msra.mxu0 0.0
    %1421 = vmatprep.subr.mxu0 0.0
    %1422 = vmatpush1.msra.mxu0 0.0
    %1423 = vmatprep.subr.mxu0 0.0
    %1424 = vmatpush1.msra.mxu0 0.0
    %1425 = vmatprep.subr.mxu0 0.0
    %1426 = vmatpush1.msra.mxu0 0.0
    %1427 = vmatprep.subr.mxu0 0.0
    %1428 = vmatpush1.msra.mxu0 0.0
    %1429 = vmatprep.subr.mxu0 0.0
    %1430 = vmatpush1.msra.mxu0 0.0
    %1431 = vmatprep.subr.mxu0 0.0
    %1432 = vmatpush1.msra.mxu0 0.0
    %1433 = vmatprep.subr.mxu0 0.0
    %1434 = vmatpush1.msra.mxu0 0.0
    %1435 = vmatprep.subr.mxu0 0.0
    %1436 = vmatpush1.msra.mxu0 0.0
    %1437 = vmatprep.subr.mxu0 0.0
    %1438 = vmatpush1.msra.mxu0 0.0
    %1439 = vmatprep.subr.mxu0 0.0
    %1440 = vmatpush1.msra.mxu0 0.0
    %1441 = vmatprep.subr.mxu0 0.0
    %1442 = vmatpush1.msra.mxu0 0.0
    %1443 = vmatprep.subr.mxu0 0.0
    %1444 = vmatpush1.msra.mxu0 0.0
    %1445 = vmatprep.subr.mxu0 0.0
    %1446 = vmatpush1.msra.mxu0 0.0
    %1447 = vmatprep.subr.mxu0 0.0
    %1448 = vmatpush1.msra.mxu0 0.0
    %1449 = vmatprep.subr.mxu0 0.0
    %1450 = vmatpush1.msra.mxu0 0.0
    %1451 = vmatprep.subr.mxu0 0.0
    %1452 = vmatpush1.msra.mxu0 0.0
    %1453 = vmatprep.subr.mxu0 0.0
    %1454 = vmatpush1.msra.mxu0 0.0
    %1455 = vmatprep.subr.mxu0 0.0
    %1456 = vmatpush1.msra.mxu0 0.0
    %1457 = vmatprep.mubr.f32.mxu0 0.0
    %1458 = vmatmul.mubr.f32.gmra.mrb[0].mxu0 %v1391
    %v1459 = vpop.f32.mrb[0].mxu0
    %v1460 = vadd.f32 0.0, %v1459
    %v1461 = vpop.f32.mrb[0].mxu0
    %1462 = vdwg.mxu0
    %1463 = vrot.lane.b32.xlu0 %v196, 40
    %v1464 = vpop.permute.xlu0 %1463
    %v1467 = vsel %vm207, %v1386, 0
    %1469 = vmatprep.subr.mxu0 0.0
    %1470 = vmatpush1.msra.mxu0 %v1464
    %1471 = vmatprep.subr.mxu0 0.0
    %1472 = vmatpush1.msra.mxu0 0.0
    %1473 = vmatprep.subr.mxu0 0.0
    %1474 = vmatpush1.msra.mxu0 0.0
    %1475 = vmatprep.subr.mxu0 0.0
    %1476 = vmatpush1.msra.mxu0 0.0
    %1477 = vmatprep.subr.mxu0 0.0
    %1478 = vmatpush1.msra.mxu0 0.0
    %1479 = vmatprep.subr.mxu0 0.0
    %1480 = vmatpush1.msra.mxu0 0.0
    %1481 = vmatprep.subr.mxu0 0.0
    %1482 = vmatpush1.msra.mxu0 0.0
    %1483 = vmatprep.subr.mxu0 0.0
    %1484 = vmatpush1.msra.mxu0 0.0
    %1485 = vmatprep.subr.mxu0 0.0
    %1486 = vmatpush1.msra.mxu0 0.0
    %1487 = vmatprep.subr.mxu0 0.0
    %1488 = vmatpush1.msra.mxu0 0.0
    %1489 = vmatprep.subr.mxu0 0.0
    %1490 = vmatpush1.msra.mxu0 0.0
    %1491 = vmatprep.subr.mxu0 0.0
    %1492 = vmatpush1.msra.mxu0 0.0
    %1493 = vmatprep.subr.mxu0 0.0
    %1494 = vmatpush1.msra.mxu0 0.0
    %1495 = vmatprep.subr.mxu0 0.0
    %1496 = vmatpush1.msra.mxu0 0.0
    %1497 = vmatprep.subr.mxu0 0.0
    %1498 = vmatpush1.msra.mxu0 0.0
    %1499 = vmatprep.subr.mxu0 0.0
    %1500 = vmatpush1.msra.mxu0 0.0
    %1501 = vmatprep.subr.mxu0 0.0
    %1502 = vmatpush1.msra.mxu0 0.0
    %1503 = vmatprep.subr.mxu0 0.0
    %1504 = vmatpush1.msra.mxu0 0.0
    %1505 = vmatprep.subr.mxu0 0.0
    %1506 = vmatpush1.msra.mxu0 0.0
    %1507 = vmatprep.subr.mxu0 0.0
    %1508 = vmatpush1.msra.mxu0 0.0
    %1509 = vmatprep.subr.mxu0 0.0
    %1510 = vmatpush1.msra.mxu0 0.0
    %1511 = vmatprep.subr.mxu0 0.0
    %1512 = vmatpush1.msra.mxu0 0.0
    %1513 = vmatprep.subr.mxu0 0.0
    %1514 = vmatpush1.msra.mxu0 0.0
    %1515 = vmatprep.subr.mxu0 0.0
    %1516 = vmatpush1.msra.mxu0 0.0
    %1517 = vmatprep.subr.mxu0 0.0
    %1518 = vmatpush1.msra.mxu0 0.0
    %1519 = vmatprep.subr.mxu0 0.0
    %1520 = vmatpush1.msra.mxu0 0.0
    %1521 = vmatprep.subr.mxu0 0.0
    %1522 = vmatpush1.msra.mxu0 0.0
    %1523 = vmatprep.subr.mxu0 0.0
    %1524 = vmatpush1.msra.mxu0 0.0
    %1525 = vmatprep.subr.mxu0 0.0
    %1526 = vmatpush1.msra.mxu0 0.0
    %1527 = vmatprep.subr.mxu0 0.0
    %1528 = vmatpush1.msra.mxu0 0.0
    %1529 = vmatprep.subr.mxu0 0.0
    %1530 = vmatpush1.msra.mxu0 0.0
    %1531 = vmatprep.subr.mxu0 0.0
    %1532 = vmatpush1.msra.mxu0 0.0
    %1533 = vmatprep.mubr.f32.mxu0 0.0
    %1534 = vmatmul.mubr.f32.gmra.mrb[0].mxu0 %v1467
    %v1535 = vpop.f32.mrb[0].mxu0
    %v1536 = vadd.f32 0.0, %v1535
    %v1537 = vpop.f32.mrb[0].mxu0
    %1538 = vdwg.mxu0
    %1541 = vrot.lane.b32.xlu0 %v792, 8
    %v1542 = vpop.permute.xlu0 %1541
    %1543 = vrot.lane.b32.xlu0 %v868, 8
    %v1544 = vpop.permute.xlu0 %1543
    %1549 = vrot.lane.b32.xlu0 %v1126, 16
    %v1550 = vpop.permute.xlu0 %1549
    %1551 = vrot.lane.b32.xlu0 %v1202, 16
    %v1552 = vpop.permute.xlu0 %1551
    %1557 = vrot.lane.b32.xlu0 %v1460, 24
    %v1558 = vpop.permute.xlu0 %1557
    %1559 = vrot.lane.b32.xlu0 %v1536, 24
    %v1560 = vpop.permute.xlu0 %1559
    %v1563 = vsel %vm207, %v458, %v1542
    %v1564 = vsel %vm207, %v534, %v1544
    %vm1565 = vcmask 130048
    %v1566 = vsel %vm1565, %v1563, %v1550
    %v1567 = vsel %vm1565, %v1564, %v1552
    %vm1568 = vcmask 195584
    %v1569 = vsel %vm1568, %v1566, %v1558
    %v1570 = vsel %vm1568, %v1567, %v1560
    %v1571 = vlaneseq
    %v1572 = vshrl.u32 %v1571, 7
    %v1573 = vsub.s32 0, %v1572
    %v1574 = vrot.slane %v203, %v1573
    %v1576 = vsel %vm55, %v1569, 0
    %v1579 = vsel %vm55, %v1570, 0
    %1581 = vmatprep.subr.mxu0 0.0
    %1582 = vmatpush1.msra.mxu0 %v199
    %1583 = vmatprep.subr.mxu0 0.0
    %1584 = vmatpush1.msra.mxu0 %v200
    %1585 = vmatprep.subr.mxu0 0.0
    %1586 = vmatpush1.msra.mxu0 %v201
    %1587 = vmatprep.subr.mxu0 0.0
    %1588 = vmatpush1.msra.mxu0 %v202
    %1589 = vmatprep.subr.mxu0 0.0
    %1590 = vmatpush1.msra.mxu0 0.0
    %1591 = vmatprep.subr.mxu0 0.0
    %1592 = vmatpush1.msra.mxu0 0.0
    %1593 = vmatprep.subr.mxu0 0.0
    %1594 = vmatpush1.msra.mxu0 0.0
    %1595 = vmatprep.subr.mxu0 0.0
    %1596 = vmatpush1.msra.mxu0 0.0
    %1597 = vmatprep.subr.mxu0 0.0
    %1598 = vmatpush1.msra.mxu0 0.0
    %1599 = vmatprep.subr.mxu0 0.0
    %1600 = vmatpush1.msra.mxu0 0.0
    %1601 = vmatprep.subr.mxu0 0.0
    %1602 = vmatpush1.msra.mxu0 0.0
    %1603 = vmatprep.subr.mxu0 0.0
    %1604 = vmatpush1.msra.mxu0 0.0
    %1605 = vmatprep.subr.mxu0 0.0
    %1606 = vmatpush1.msra.mxu0 0.0
    %1607 = vmatprep.subr.mxu0 0.0
    %1608 = vmatpush1.msra.mxu0 0.0
    %1609 = vmatprep.subr.mxu0 0.0
    %1610 = vmatpush1.msra.mxu0 0.0
    %1611 = vmatprep.subr.mxu0 0.0
    %1612 = vmatpush1.msra.mxu0 0.0
    %1613 = vmatprep.subr.mxu0 0.0
    %1614 = vmatpush1.msra.mxu0 0.0
    %1615 = vmatprep.subr.mxu0 0.0
    %1616 = vmatpush1.msra.mxu0 0.0
    %1617 = vmatprep.subr.mxu0 0.0
    %1618 = vmatpush1.msra.mxu0 0.0
    %1619 = vmatprep.subr.mxu0 0.0
    %1620 = vmatpush1.msra.mxu0 0.0
    %1621 = vmatprep.subr.mxu0 0.0
    %1622 = vmatpush1.msra.mxu0 0.0
    %1623 = vmatprep.subr.mxu0 0.0
    %1624 = vmatpush1.msra.mxu0 0.0
    %1625 = vmatprep.subr.mxu0 0.0
    %1626 = vmatpush1.msra.mxu0 0.0
    %1627 = vmatprep.subr.mxu0 0.0
    %1628 = vmatpush1.msra.mxu0 0.0
    %1629 = vmatprep.subr.mxu0 0.0
    %1630 = vmatpush1.msra.mxu0 0.0
    %1631 = vmatprep.subr.mxu0 0.0
    %1632 = vmatpush1.msra.mxu0 0.0
    %1633 = vmatprep.subr.mxu0 0.0
    %1634 = vmatpush1.msra.mxu0 0.0
    %1635 = vmatprep.subr.mxu0 0.0
    %1636 = vmatpush1.msra.mxu0 0.0
    %1637 = vmatprep.subr.mxu0 0.0
    %1638 = vmatpush1.msra.mxu0 0.0
    %1639 = vmatprep.subr.mxu0 0.0
    %1640 = vmatpush1.msra.mxu0 0.0
    %1641 = vmatprep.subr.mxu0 0.0
    %1642 = vmatpush1.msra.mxu0 0.0
    %1643 = vmatprep.subr.mxu0 0.0
    %1644 = vmatpush1.msra.mxu0 0.0
    %1645 = vmatprep.mubr.f32.mxu0 0.0
    %1646 = vmatmul.mubr.f32.gmra.mrb[0].mxu0 %v1576
    %v1647 = vpop.f32.mrb[0].mxu0
    %v1648 = vadd.f32 %v1574, %v1647
    %v1649 = vpop.f32.mrb[0].mxu0
    %1650 = vmatprep.mubr.f32.mxu0 0.0
    %1651 = vmatmul.mubr.f32.gmra.mrb[0].mxu0 %v1579
    %v1652 = vpop.f32.mrb[0].mxu0
    %v1653 = vadd.f32 %v1574, %v1652
    %v1654 = vpop.f32.mrb[0].mxu0
    %1655 = vdwg.mxu0
    %v1656 = vadd.f32 %v41, %v1648
    %v1657 = vadd.f32 %v42, %v1653
    %v1658 = vld [vmem:[%s6 + $0x9] sm:$0x1]
    %v1659 = vld [vmem:[%s6 + $0xa] sm:$0x1]
    %v1660 = vsel %vm55, %v1656, 0.0
    %1661 = vadd.xlane.f32.xlu0 %v1660
    %v1662 = vpop.xlane.xlu0 %1661
    %v1663 = vsel %vm55, %v1657, 0.0
    %1664 = vadd.xlane.f32.xlu0 %v1663
    %v1665 = vpop.xlane.xlu0 %1664
    %v1666 = vmul.f32 %v1662, %v62
    %v1667 = vmul.f32 %v1665, %v62
    %v1668 = vsub.f32 %v1656, %v1666
    %v1669 = vsub.f32 %v1657, %v1667
    %v1670 = vmul.f32 %v1668, %v1668
    %v1671 = vmul.f32 %v1669, %v1669
    %v1672 = vsel %vm55, %v1670, 0.0
    %1673 = vadd.xlane.f32.xlu0 %v1672
    %v1674 = vpop.xlane.xlu0 %1673
    %v1675 = vsel %vm55, %v1671, 0.0
    %1676 = vadd.xlane.f32.xlu0 %v1675
    %v1677 = vpop.xlane.xlu0 %1676
    %v1678 = vmul.f32 %v1674, 0.032258064
    %v1679 = vmul.f32 %v1677, 0.032258064
    %v1680 = vrsqrt.pop %v1678
    %v1681 = vmul.f32 %v1678, %v1680
    %vm1682 = vcmp.eq.f32.partialorder %v1678, inf
    %v1683 = vsel %vm1682, %v1678, %v1681
    %vm1684 = vcmp.eq.f32.partialorder %v1678, 0.0
    %v1685 = vand.u32 %v1678, 2147483648
    %v1686 = vsel %vm1684, %v1685, %v1683
    %v1687 = vrsqrt.pop %v1679
    %v1688 = vmul.f32 %v1679, %v1687
    %vm1689 = vcmp.eq.f32.partialorder %v1679, inf
    %v1690 = vsel %vm1689, %v1679, %v1688
    %vm1691 = vcmp.eq.f32.partialorder %v1679, 0.0
    %v1692 = vand.u32 %v1679, 2147483648
    %v1693 = vsel %vm1691, %v1692, %v1690
    %v1694 = vadd.f32 %v1686, 1e-06
    %v1695 = vadd.f32 %v1693, 1e-06
    %v1696 = vrcp.pop %v1694
    %v1697 = vrcp.pop %v1695
    %v1698 = vlaneseq
    %v1699 = vshrl.u32 %v1698, 7
    %v1700 = vsub.s32 0, %v1699
    %v1701 = vrot.slane %v1658, %v1700
    %v1702 = vmul.f32 %v1701, %v1668
    %v1703 = vmul.f32 %v1701, %v1669
    %v1704 = vmul.f32 %v1702, %v1696
    %v1705 = vmul.f32 %v1703, %v1697
    %v1706 = vlaneseq
    %v1707 = vshrl.u32 %v1706, 7
    %v1708 = vsub.s32 0, %v1707
    %v1709 = vrot.slane %v1659, %v1708
    %v1710 = vadd.f32 %v1704, %v1709
    %v1711 = vadd.f32 %v1705, %v1709
    %v1712 = vld [vmem:[#allocation2 + $0x8] sm:$0xff]
    %v1713 = vld [vmem:[#allocation2 + $0x38] sm:$0xff]
    %v1714 = vld [vmem:[#allocation2 + $0x68] sm:$0xff]
    %v1715 = vld [vmem:[#allocation2 + $0x98] sm:$0xff]
    %v1716 = vld [vmem:[%s6 + $0x1] sm:$0x1]
    %v1717 = vlaneseq
    %v1718 = vshrl.u32 %v1717, 7
    %v1719 = vsub.s32 0, %v1718
    %v1720 = vrot.slane %v1716, %v1719
    %v1722 = vsel %vm55, %v1710, 0
    %v1725 = vsel %vm55, %v1711, 0
    %1727 = vmatprep.subr.mxu0 0.0
    %1728 = vmatpush1.msra.mxu0 %v1712
    %1729 = vmatprep.subr.mxu0 0.0
    %1730 = vmatpush1.msra.mxu0 %v1713
    %1731 = vmatprep.subr.mxu0 0.0
    %1732 = vmatpush1.msra.mxu0 %v1714
    %1733 = vmatprep.subr.mxu0 0.0
    %1734 = vmatpush1.msra.mxu0 %v1715
    %1735 = vmatprep.subr.mxu0 0.0
    %1736 = vmatpush1.msra.mxu0 0.0
    %1737 = vmatprep.subr.mxu0 0.0
    %1738 = vmatpush1.msra.mxu0 0.0
    %1739 = vmatprep.subr.mxu0 0.0
    %1740 = vmatpush1.msra.mxu0 0.0
    %1741 = vmatprep.subr.mxu0 0.0
    %1742 = vmatpush1.msra.mxu0 0.0
    %1743 = vmatprep.subr.mxu0 0.0
    %1744 = vmatpush1.msra.mxu0 0.0
    %1745 = vmatprep.subr.mxu0 0.0
    %1746 = vmatpush1.msra.mxu0 0.0
    %1747 = vmatprep.subr.mxu0 0.0
    %1748 = vmatpush1.msra.mxu0 0.0
    %1749 = vmatprep.subr.mxu0 0.0
    %1750 = vmatpush1.msra.mxu0 0.0
    %1751 = vmatprep.subr.mxu0 0.0
    %1752 = vmatpush1.msra.mxu0 0.0
    %1753 = vmatprep.subr.mxu0 0.0
    %1754 = vmatpush1.msra.mxu0 0.0
    %1755 = vmatprep.subr.mxu0 0.0
    %1756 = vmatpush1.msra.mxu0 0.0
    %1757 = vmatprep.subr.mxu0 0.0
    %1758 = vmatpush1.msra.mxu0 0.0
    %1759 = vmatprep.subr.mxu0 0.0
    %1760 = vmatpush1.msra.mxu0 0.0
    %1761 = vmatprep.subr.mxu0 0.0
    %1762 = vmatpush1.msra.mxu0 0.0
    %1763 = vmatprep.subr.mxu0 0.0
    %1764 = vmatpush1.msra.mxu0 0.0
    %1765 = vmatprep.subr.mxu0 0.0
    %1766 = vmatpush1.msra.mxu0 0.0
    %1767 = vmatprep.subr.mxu0 0.0
    %1768 = vmatpush1.msra.mxu0 0.0
    %1769 = vmatprep.subr.mxu0 0.0
    %1770 = vmatpush1.msra.mxu0 0.0
    %1771 = vmatprep.subr.mxu0 0.0
    %1772 = vmatpush1.msra.mxu0 0.0
    %1773 = vmatprep.subr.mxu0 0.0
    %1774 = vmatpush1.msra.mxu0 0.0
    %1775 = vmatprep.subr.mxu0 0.0
    %1776 = vmatpush1.msra.mxu0 0.0
    %1777 = vmatprep.subr.mxu0 0.0
    %1778 = vmatpush1.msra.mxu0 0.0
    %1779 = vmatprep.subr.mxu0 0.0
    %1780 = vmatpush1.msra.mxu0 0.0
    %1781 = vmatprep.subr.mxu0 0.0
    %1782 = vmatpush1.msra.mxu0 0.0
    %1783 = vmatprep.subr.mxu0 0.0
    %1784 = vmatpush1.msra.mxu0 0.0
    %1785 = vmatprep.subr.mxu0 0.0
    %1786 = vmatpush1.msra.mxu0 0.0
    %1787 = vmatprep.subr.mxu0 0.0
    %1788 = vmatpush1.msra.mxu0 0.0
    %1789 = vmatprep.subr.mxu0 0.0
    %1790 = vmatpush1.msra.mxu0 0.0
    %1791 = vmatprep.mubr.f32.mxu0 0.0
    %1792 = vmatmul.mubr.f32.gmra.mrb[0].mxu0 %v1722
    %v1793 = vpop.f32.mrb[0].mxu0
    %v1794 = vadd.f32 %v1720, %v1793
    %v1795 = vpop.f32.mrb[0].mxu0
    %1796 = vmatprep.mubr.f32.mxu0 0.0
    %1797 = vmatmul.mubr.f32.gmra.mrb[0].mxu0 %v1725
    %v1798 = vpop.f32.mrb[0].mxu0
    %v1799 = vadd.f32 %v1720, %v1798
    %v1800 = vpop.f32.mrb[0].mxu0
    %1801 = vdwg.mxu0
    %v1802 = vld [vmem:[#allocation2 + $0x10] sm:$0xff]
    %v1803 = vld [vmem:[#allocation2 + $0x40] sm:$0xff]
    %v1804 = vld [vmem:[#allocation2 + $0x70] sm:$0xff]
    %v1805 = vld [vmem:[#allocation2 + $0xa0] sm:$0xff]
    %v1806 = vld [vmem:[%s6 + $0x2] sm:$0x1]
    %v1807 = vlaneseq
    %v1808 = vshrl.u32 %v1807, 7
    %v1809 = vsub.s32 0, %v1808
    %v1810 = vrot.slane %v1806, %v1809
    %v1812 = vsel %vm55, %v43, 0
    %v1815 = vsel %vm55, %v44, 0
    %1817 = vmatprep.subr.mxu0 0.0
    %1818 = vmatpush1.msra.mxu0 %v1802
    %1819 = vmatprep.subr.mxu0 0.0
    %1820 = vmatpush1.msra.mxu0 %v1803
    %1821 = vmatprep.subr.mxu0 0.0
    %1822 = vmatpush1.msra.mxu0 %v1804
    %1823 = vmatprep.subr.mxu0 0.0
    %1824 = vmatpush1.msra.mxu0 %v1805
    %1825 = vmatprep.subr.mxu0 0.0
    %1826 = vmatpush1.msra.mxu0 0.0
    %1827 = vmatprep.subr.mxu0 0.0
    %1828 = vmatpush1.msra.mxu0 0.0
    %1829 = vmatprep.subr.mxu0 0.0
    %1830 = vmatpush1.msra.mxu0 0.0
    %1831 = vmatprep.subr.mxu0 0.0
    %1832 = vmatpush1.msra.mxu0 0.0
    %1833 = vmatprep.subr.mxu0 0.0
    %1834 = vmatpush1.msra.mxu0 0.0
    %1835 = vmatprep.subr.mxu0 0.0
    %1836 = vmatpush1.msra.mxu0 0.0
    %1837 = vmatprep.subr.mxu0 0.0
    %1838 = vmatpush1.msra.mxu0 0.0
    %1839 = vmatprep.subr.mxu0 0.0
    %1840 = vmatpush1.msra.mxu0 0.0
    %1841 = vmatprep.subr.mxu0 0.0
    %1842 = vmatpush1.msra.mxu0 0.0
    %1843 = vmatprep.subr.mxu0 0.0
    %1844 = vmatpush1.msra.mxu0 0.0
    %1845 = vmatprep.subr.mxu0 0.0
    %1846 = vmatpush1.msra.mxu0 0.0
    %1847 = vmatprep.subr.mxu0 0.0
    %1848 = vmatpush1.msra.mxu0 0.0
    %1849 = vmatprep.subr.mxu0 0.0
    %1850 = vmatpush1.msra.mxu0 0.0
    %1851 = vmatprep.subr.mxu0 0.0
    %1852 = vmatpush1.msra.mxu0 0.0
    %1853 = vmatprep.subr.mxu0 0.0
    %1854 = vmatpush1.msra.mxu0 0.0
    %1855 = vmatprep.subr.mxu0 0.0
    %1856 = vmatpush1.msra.mxu0 0.0
    %1857 = vmatprep.subr.mxu0 0.0
    %1858 = vmatpush1.msra.mxu0 0.0
    %1859 = vmatprep.subr.mxu0 0.0
    %1860 = vmatpush1.msra.mxu0 0.0
    %1861 = vmatprep.subr.mxu0 0.0
    %1862 = vmatpush1.msra.mxu0 0.0
    %1863 = vmatprep.subr.mxu0 0.0
    %1864 = vmatpush1.msra.mxu0 0.0
    %1865 = vmatprep.subr.mxu0 0.0
    %1866 = vmatpush1.msra.mxu0 0.0
    %1867 = vmatprep.subr.mxu0 0.0
    %1868 = vmatpush1.msra.mxu0 0.0
    %1869 = vmatprep.subr.mxu0 0.0
    %1870 = vmatpush1.msra.mxu0 0.0
    %1871 = vmatprep.subr.mxu0 0.0
    %1872 = vmatpush1.msra.mxu0 0.0
    %1873 = vmatprep.subr.mxu0 0.0
    %1874 = vmatpush1.msra.mxu0 0.0
    %1875 = vmatprep.subr.mxu0 0.0
    %1876 = vmatpush1.msra.mxu0 0.0
    %1877 = vmatprep.subr.mxu0 0.0
    %1878 = vmatpush1.msra.mxu0 0.0
    %1879 = vmatprep.subr.mxu0 0.0
    %1880 = vmatpush1.msra.mxu0 0.0
    %1881 = vmatprep.mubr.f32.mxu0 0.0
    %1882 = vmatmul.mubr.f32.gmra.mrb[0].mxu0 %v1812
    %v1883 = vpop.f32.mrb[0].mxu0
    %v1884 = vadd.f32 %v1810, %v1883
    %v1885 = vpop.f32.mrb[0].mxu0
    %1886 = vmatprep.mubr.f32.mxu0 0.0
    %1887 = vmatmul.mubr.f32.gmra.mrb[0].mxu0 %v1815
    %v1888 = vpop.f32.mrb[0].mxu0
    %v1889 = vadd.f32 %v1810, %v1888
    %v1890 = vpop.f32.mrb[0].mxu0
    %1891 = vdwg.mxu0
    %v1892 = vld [vmem:[#allocation2 + $0x20] sm:$0xff]
    %v1893 = vld [vmem:[#allocation2 + $0x50] sm:$0xff]
    %v1894 = vld [vmem:[#allocation2 + $0x80] sm:$0xff]
    %v1895 = vld [vmem:[#allocation2 + $0xb0] sm:$0xff]
    %v1896 = vld [vmem:[%s6 + $0x4] sm:$0x1]
    %v1898 = vsel %vm207, %v1794, 0
    %v1901 = vsel %vm207, %v1884, 0
    %1903 = vmatprep.subr.mxu0 0.0
    %1904 = vmatpush1.xpose.msra.mxu0 %v1901
    %1905 = vmatprep.subr.mxu0 0.0
    %1906 = vmatpush1.xpose.msra.mxu0 0.0
    %1907 = vmatprep.subr.mxu0 0.0
    %1908 = vmatpush1.xpose.msra.mxu0 0.0
    %1909 = vmatprep.subr.mxu0 0.0
    %1910 = vmatpush1.xpose.msra.mxu0 0.0
    %1911 = vmatprep.subr.mxu0 0.0
    %1912 = vmatpush1.xpose.msra.mxu0 0.0
    %1913 = vmatprep.subr.mxu0 0.0
    %1914 = vmatpush1.xpose.msra.mxu0 0.0
    %1915 = vmatprep.subr.mxu0 0.0
    %1916 = vmatpush1.xpose.msra.mxu0 0.0
    %1917 = vmatprep.subr.mxu0 0.0
    %1918 = vmatpush1.xpose.msra.mxu0 0.0
    %1919 = vmatprep.subr.mxu0 0.0
    %1920 = vmatpush1.xpose.msra.mxu0 0.0
    %1921 = vmatprep.subr.mxu0 0.0
    %1922 = vmatpush1.xpose.msra.mxu0 0.0
    %1923 = vmatprep.subr.mxu0 0.0
    %1924 = vmatpush1.xpose.msra.mxu0 0.0
    %1925 = vmatprep.subr.mxu0 0.0
    %1926 = vmatpush1.xpose.msra.mxu0 0.0
    %1927 = vmatprep.subr.mxu0 0.0
    %1928 = vmatpush1.xpose.msra.mxu0 0.0
    %1929 = vmatprep.subr.mxu0 0.0
    %1930 = vmatpush1.xpose.msra.mxu0 0.0
    %1931 = vmatprep.subr.mxu0 0.0
    %1932 = vmatpush1.xpose.msra.mxu0 0.0
    %1933 = vmatprep.subr.mxu0 0.0
    %1934 = vmatpush1.xpose.msra.mxu0 0.0
    %1935 = vmatprep.subr.mxu0 0.0
    %1936 = vmatpush1.xpose.msra.mxu0 0.0
    %1937 = vmatprep.subr.mxu0 0.0
    %1938 = vmatpush1.xpose.msra.mxu0 0.0
    %1939 = vmatprep.subr.mxu0 0.0
    %1940 = vmatpush1.xpose.msra.mxu0 0.0
    %1941 = vmatprep.subr.mxu0 0.0
    %1942 = vmatpush1.xpose.msra.mxu0 0.0
    %1943 = vmatprep.subr.mxu0 0.0
    %1944 = vmatpush1.xpose.msra.mxu0 0.0
    %1945 = vmatprep.subr.mxu0 0.0
    %1946 = vmatpush1.xpose.msra.mxu0 0.0
    %1947 = vmatprep.subr.mxu0 0.0
    %1948 = vmatpush1.xpose.msra.mxu0 0.0
    %1949 = vmatprep.subr.mxu0 0.0
    %1950 = vmatpush1.xpose.msra.mxu0 0.0
    %1951 = vmatprep.subr.mxu0 0.0
    %1952 = vmatpush1.xpose.msra.mxu0 0.0
    %1953 = vmatprep.subr.mxu0 0.0
    %1954 = vmatpush1.xpose.msra.mxu0 0.0
    %1955 = vmatprep.subr.mxu0 0.0
    %1956 = vmatpush1.xpose.msra.mxu0 0.0
    %1957 = vmatprep.subr.mxu0 0.0
    %1958 = vmatpush1.xpose.msra.mxu0 0.0
    %1959 = vmatprep.subr.mxu0 0.0
    %1960 = vmatpush1.xpose.msra.mxu0 0.0
    %1961 = vmatprep.subr.mxu0 0.0
    %1962 = vmatpush1.xpose.msra.mxu0 0.0
    %1963 = vmatprep.subr.mxu0 0.0
    %1964 = vmatpush1.xpose.msra.mxu0 0.0
    %1965 = vmatprep.subr.mxu0 0.0
    %1966 = vmatpush1.xpose.msra.mxu0 0.0
    %1967 = vmatprep.mubr.f32.mxu0 0.0
    %1968 = vmatmul.mubr.f32.gmra.mrb[0].mxu0 %v1898
    %v1969 = vpop.f32.mrb[0].mxu0
    %v1970 = vadd.f32 0.0, %v1969
    %v1971 = vpop.f32.mrb[0].mxu0
    %1972 = vdwg.mxu0
    %v1974 = vsel %vm207, %v1799, 0
    %v1977 = vsel %vm207, %v1889, 0
    %1979 = vmatprep.subr.mxu0 0.0
    %1980 = vmatpush1.xpose.msra.mxu0 %v1977
    %1981 = vmatprep.subr.mxu0 0.0
    %1982 = vmatpush1.xpose.msra.mxu0 0.0
    %1983 = vmatprep.subr.mxu0 0.0
    %1984 = vmatpush1.xpose.msra.mxu0 0.0
    %1985 = vmatprep.subr.mxu0 0.0
    %1986 = vmatpush1.xpose.msra.mxu0 0.0
    %1987 = vmatprep.subr.mxu0 0.0
    %1988 = vmatpush1.xpose.msra.mxu0 0.0
    %1989 = vmatprep.subr.mxu0 0.0
    %1990 = vmatpush1.xpose.msra.mxu0 0.0
    %1991 = vmatprep.subr.mxu0 0.0
    %1992 = vmatpush1.xpose.msra.mxu0 0.0
    %1993 = vmatprep.subr.mxu0 0.0
    %1994 = vmatpush1.xpose.msra.mxu0 0.0
    %1995 = vmatprep.subr.mxu0 0.0
    %1996 = vmatpush1.xpose.msra.mxu0 0.0
    %1997 = vmatprep.subr.mxu0 0.0
    %1998 = vmatpush1.xpose.msra.mxu0 0.0
    %1999 = vmatprep.subr.mxu0 0.0
    %2000 = vmatpush1.xpose.msra.mxu0 0.0
    %2001 = vmatprep.subr.mxu0 0.0
    %2002 = vmatpush1.xpose.msra.mxu0 0.0
    %2003 = vmatprep.subr.mxu0 0.0
    %2004 = vmatpush1.xpose.msra.mxu0 0.0
    %2005 = vmatprep.subr.mxu0 0.0
    %2006 = vmatpush1.xpose.msra.mxu0 0.0
    %2007 = vmatprep.subr.mxu0 0.0
    %2008 = vmatpush1.xpose.msra.mxu0 0.0
    %2009 = vmatprep.subr.mxu0 0.0
    %2010 = vmatpush1.xpose.msra.mxu0 0.0
    %2011 = vmatprep.subr.mxu0 0.0
    %2012 = vmatpush1.xpose.msra.mxu0 0.0
    %2013 = vmatprep.subr.mxu0 0.0
    %2014 = vmatpush1.xpose.msra.mxu0 0.0
    %2015 = vmatprep.subr.mxu0 0.0
    %2016 = vmatpush1.xpose.msra.mxu0 0.0
    %2017 = vmatprep.subr.mxu0 0.0
    %2018 = vmatpush1.xpose.msra.mxu0 0.0
    %2019 = vmatprep.subr.mxu0 0.0
    %2020 = vmatpush1.xpose.msra.mxu0 0.0
    %2021 = vmatprep.subr.mxu0 0.0
    %2022 = vmatpush1.xpose.msra.mxu0 0.0
    %2023 = vmatprep.subr.mxu0 0.0
    %2024 = vmatpush1.xpose.msra.mxu0 0.0
    %2025 = vmatprep.subr.mxu0 0.0
    %2026 = vmatpush1.xpose.msra.mxu0 0.0
    %2027 = vmatprep.subr.mxu0 0.0
    %2028 = vmatpush1.xpose.msra.mxu0 0.0
    %2029 = vmatprep.subr.mxu0 0.0
    %2030 = vmatpush1.xpose.msra.mxu0 0.0
    %2031 = vmatprep.subr.mxu0 0.0
    %2032 = vmatpush1.xpose.msra.mxu0 0.0
    %2033 = vmatprep.subr.mxu0 0.0
    %2034 = vmatpush1.xpose.msra.mxu0 0.0
    %2035 = vmatprep.subr.mxu0 0.0
    %2036 = vmatpush1.xpose.msra.mxu0 0.0
    %2037 = vmatprep.subr.mxu0 0.0
    %2038 = vmatpush1.xpose.msra.mxu0 0.0
    %2039 = vmatprep.subr.mxu0 0.0
    %2040 = vmatpush1.xpose.msra.mxu0 0.0
    %2041 = vmatprep.subr.mxu0 0.0
    %2042 = vmatpush1.xpose.msra.mxu0 0.0
    %2043 = vmatprep.mubr.f32.mxu0 0.0
    %2044 = vmatmul.mubr.f32.gmra.mrb[0].mxu0 %v1974
    %v2045 = vpop.f32.mrb[0].mxu0
    %v2046 = vadd.f32 0.0, %v2045
    %v2047 = vpop.f32.mrb[0].mxu0
    %2048 = vdwg.mxu0
    %v2049 = vmul.f32 %v1970, 0.35355338
    %v2050 = vmul.f32 %v2046, 0.35355338
    %v2051 = vsel %vm51, -1e+09, %v2049
    %v2052 = vsel %vm52, -1e+09, %v2050
    %v2053 = vsel %vm207, %v2051, -inf
    %2054 = vmax.xlane.f32.xlu0 %v2053
    %v2055 = vpop.xlane.xlu0 %2054
    %v2056 = vsel %vm207, %v2052, -inf
    %2057 = vmax.xlane.f32.xlu0 %v2056
    %v2058 = vpop.xlane.xlu0 %2057
    %v2059 = vsub.f32 %v2051, %v2055
    %v2060 = vsub.f32 %v2052, %v2058
    %v2061 = vmul.f32 %v2059, 1.442695
    %v2062 = vpow.pop %v2061
    %v2063 = vmul.f32 %v2060, 1.442695
    %v2064 = vpow.pop %v2063
    %v2065 = vsel %vm207, %v2062, 0.0
    %2066 = vadd.xlane.f32.xlu0 %v2065
    %v2067 = vpop.xlane.xlu0 %2066
    %v2068 = vsel %vm207, %v2064, 0.0
    %2069 = vadd.xlane.f32.xlu0 %v2068
    %v2070 = vpop.xlane.xlu0 %2069
    %v2071 = vrcp.pop %v2067
    %v2072 = vrcp.pop %v2070
    %v2073 = vmul.f32 %v2062, %v2071
    %v2074 = vmul.f32 %v2064, %v2072
    %2075 = vrot.lane.b32.xlu0 %v1884, 96
    %v2076 = vpop.permute.xlu0 %2075
    %v2079 = vsel %vm207, %v2073, 0
    %2081 = vmatprep.subr.mxu0 0.0
    %2082 = vmatpush1.msra.mxu0 %v2076
    %2083 = vmatprep.subr.mxu0 0.0
    %2084 = vmatpush1.msra.mxu0 0.0
    %2085 = vmatprep.subr.mxu0 0.0
    %2086 = vmatpush1.msra.mxu0 0.0
    %2087 = vmatprep.subr.mxu0 0.0
    %2088 = vmatpush1.msra.mxu0 0.0
    %2089 = vmatprep.subr.mxu0 0.0
    %2090 = vmatpush1.msra.mxu0 0.0
    %2091 = vmatprep.subr.mxu0 0.0
    %2092 = vmatpush1.msra.mxu0 0.0
    %2093 = vmatprep.subr.mxu0 0.0
    %2094 = vmatpush1.msra.mxu0 0.0
    %2095 = vmatprep.subr.mxu0 0.0
    %2096 = vmatpush1.msra.mxu0 0.0
    %2097 = vmatprep.subr.mxu0 0.0
    %2098 = vmatpush1.msra.mxu0 0.0
    %2099 = vmatprep.subr.mxu0 0.0
    %2100 = vmatpush1.msra.mxu0 0.0
    %2101 = vmatprep.subr.mxu0 0.0
    %2102 = vmatpush1.msra.mxu0 0.0
    %2103 = vmatprep.subr.mxu0 0.0
    %2104 = vmatpush1.msra.mxu0 0.0
    %2105 = vmatprep.subr.mxu0 0.0
    %2106 = vmatpush1.msra.mxu0 0.0
    %2107 = vmatprep.subr.mxu0 0.0
    %2108 = vmatpush1.msra.mxu0 0.0
    %2109 = vmatprep.subr.mxu0 0.0
    %2110 = vmatpush1.msra.mxu0 0.0
    %2111 = vmatprep.subr.mxu0 0.0
    %2112 = vmatpush1.msra.mxu0 0.0
    %2113 = vmatprep.subr.mxu0 0.0
    %2114 = vmatpush1.msra.mxu0 0.0
    %2115 = vmatprep.subr.mxu0 0.0
    %2116 = vmatpush1.msra.mxu0 0.0
    %2117 = vmatprep.subr.mxu0 0.0
    %2118 = vmatpush1.msra.mxu0 0.0
    %2119 = vmatprep.subr.mxu0 0.0
    %2120 = vmatpush1.msra.mxu0 0.0
    %2121 = vmatprep.subr.mxu0 0.0
    %2122 = vmatpush1.msra.mxu0 0.0
    %2123 = vmatprep.subr.mxu0 0.0
    %2124 = vmatpush1.msra.mxu0 0.0
    %2125 = vmatprep.subr.mxu0 0.0
    %2126 = vmatpush1.msra.mxu0 0.0
    %2127 = vmatprep.subr.mxu0 0.0
    %2128 = vmatpush1.msra.mxu0 0.0
    %2129 = vmatprep.subr.mxu0 0.0
    %2130 = vmatpush1.msra.mxu0 0.0
    %2131 = vmatprep.subr.mxu0 0.0
    %2132 = vmatpush1.msra.mxu0 0.0
    %2133 = vmatprep.subr.mxu0 0.0
    %2134 = vmatpush1.msra.mxu0 0.0
    %2135 = vmatprep.subr.mxu0 0.0
    %2136 = vmatpush1.msra.mxu0 0.0
    %2137 = vmatprep.subr.mxu0 0.0
    %2138 = vmatpush1.msra.mxu0 0.0
    %2139 = vmatprep.subr.mxu0 0.0
    %2140 = vmatpush1.msra.mxu0 0.0
    %2141 = vmatprep.subr.mxu0 0.0
    %2142 = vmatpush1.msra.mxu0 0.0
    %2143 = vmatprep.subr.mxu0 0.0
    %2144 = vmatpush1.msra.mxu0 0.0
    %2145 = vmatprep.mubr.f32.mxu0 0.0
    %2146 = vmatmul.mubr.f32.gmra.mrb[0].mxu0 %v2079
    %v2147 = vpop.f32.mrb[0].mxu0
    %v2148 = vadd.f32 0.0, %v2147
    %v2149 = vpop.f32.mrb[0].mxu0
    %2150 = vdwg.mxu0
    %2151 = vrot.lane.b32.xlu0 %v1889, 96
    %v2152 = vpop.permute.xlu0 %2151
    %v2155 = vsel %vm207, %v2074, 0
    %2157 = vmatprep.subr.mxu0 0.0
    %2158 = vmatpush1.msra.mxu0 %v2152
    %2159 = vmatprep.subr.mxu0 0.0
    %2160 = vmatpush1.msra.mxu0 0.0
    %2161 = vmatprep.subr.mxu0 0.0
    %2162 = vmatpush1.msra.mxu0 0.0
    %2163 = vmatprep.subr.mxu0 0.0
    %2164 = vmatpush1.msra.mxu0 0.0
    %2165 = vmatprep.subr.mxu0 0.0
    %2166 = vmatpush1.msra.mxu0 0.0
    %2167 = vmatprep.subr.mxu0 0.0
    %2168 = vmatpush1.msra.mxu0 0.0
    %2169 = vmatprep.subr.mxu0 0.0
    %2170 = vmatpush1.msra.mxu0 0.0
    %2171 = vmatprep.subr.mxu0 0.0
    %2172 = vmatpush1.msra.mxu0 0.0
    %2173 = vmatprep.subr.mxu0 0.0
    %2174 = vmatpush1.msra.mxu0 0.0
    %2175 = vmatprep.subr.mxu0 0.0
    %2176 = vmatpush1.msra.mxu0 0.0
    %2177 = vmatprep.subr.mxu0 0.0
    %2178 = vmatpush1.msra.mxu0 0.0
    %2179 = vmatprep.subr.mxu0 0.0
    %2180 = vmatpush1.msra.mxu0 0.0
    %2181 = vmatprep.subr.mxu0 0.0
    %2182 = vmatpush1.msra.mxu0 0.0
    %2183 = vmatprep.subr.mxu0 0.0
    %2184 = vmatpush1.msra.mxu0 0.0
    %2185 = vmatprep.subr.mxu0 0.0
    %2186 = vmatpush1.msra.mxu0 0.0
    %2187 = vmatprep.subr.mxu0 0.0
    %2188 = vmatpush1.msra.mxu0 0.0
    %2189 = vmatprep.subr.mxu0 0.0
    %2190 = vmatpush1.msra.mxu0 0.0
    %2191 = vmatprep.subr.mxu0 0.0
    %2192 = vmatpush1.msra.mxu0 0.0
    %2193 = vmatprep.subr.mxu0 0.0
    %2194 = vmatpush1.msra.mxu0 0.0
    %2195 = vmatprep.subr.mxu0 0.0
    %2196 = vmatpush1.msra.mxu0 0.0
    %2197 = vmatprep.subr.mxu0 0.0
    %2198 = vmatpush1.msra.mxu0 0.0
    %2199 = vmatprep.subr.mxu0 0.0
    %2200 = vmatpush1.msra.mxu0 0.0
    %2201 = vmatprep.subr.mxu0 0.0
    %2202 = vmatpush1.msra.mxu0 0.0
    %2203 = vmatprep.subr.mxu0 0.0
    %2204 = vmatpush1.msra.mxu0 0.0
    %2205 = vmatprep.subr.mxu0 0.0
    %2206 = vmatpush1.msra.mxu0 0.0
    %2207 = vmatprep.subr.mxu0 0.0
    %2208 = vmatpush1.msra.mxu0 0.0
    %2209 = vmatprep.subr.mxu0 0.0
    %2210 = vmatpush1.msra.mxu0 0.0
    %2211 = vmatprep.subr.mxu0 0.0
    %2212 = vmatpush1.msra.mxu0 0.0
    %2213 = vmatprep.subr.mxu0 0.0
    %2214 = vmatpush1.msra.mxu0 0.0
    %2215 = vmatprep.subr.mxu0 0.0
    %2216 = vmatpush1.msra.mxu0 0.0
    %2217 = vmatprep.subr.mxu0 0.0
    %2218 = vmatpush1.msra.mxu0 0.0
    %2219 = vmatprep.subr.mxu0 0.0
    %2220 = vmatpush1.msra.mxu0 0.0
    %2221 = vmatprep.mubr.f32.mxu0 0.0
    %2222 = vmatmul.mubr.f32.gmra.mrb[0].mxu0 %v2155
    %v2223 = vpop.f32.mrb[0].mxu0
    %v2224 = vadd.f32 0.0, %v2223
    %v2225 = vpop.f32.mrb[0].mxu0
    %2226 = vdwg.mxu0
    %2227 = vrot.lane.b32.xlu0 %v1794, 120
    %v2228 = vpop.permute.xlu0 %2227
    %2229 = vrot.lane.b32.xlu0 %v1884, 120
    %v2230 = vpop.permute.xlu0 %2229
    %v2231 = vsel %vm207, %v2228, 0
    %v2233 = vsel %vm207, %v2230, 0
    %2235 = vmatprep.subr.mxu0 0.0
    %2236 = vmatpush1.xpose.msra.mxu0 %v2233
    %2237 = vmatprep.subr.mxu0 0.0
    %2238 = vmatpush1.xpose.msra.mxu0 0.0
    %2239 = vmatprep.subr.mxu0 0.0
    %2240 = vmatpush1.xpose.msra.mxu0 0.0
    %2241 = vmatprep.subr.mxu0 0.0
    %2242 = vmatpush1.xpose.msra.mxu0 0.0
    %2243 = vmatprep.subr.mxu0 0.0
    %2244 = vmatpush1.xpose.msra.mxu0 0.0
    %2245 = vmatprep.subr.mxu0 0.0
    %2246 = vmatpush1.xpose.msra.mxu0 0.0
    %2247 = vmatprep.subr.mxu0 0.0
    %2248 = vmatpush1.xpose.msra.mxu0 0.0
    %2249 = vmatprep.subr.mxu0 0.0
    %2250 = vmatpush1.xpose.msra.mxu0 0.0
    %2251 = vmatprep.subr.mxu0 0.0
    %2252 = vmatpush1.xpose.msra.mxu0 0.0
    %2253 = vmatprep.subr.mxu0 0.0
    %2254 = vmatpush1.xpose.msra.mxu0 0.0
    %2255 = vmatprep.subr.mxu0 0.0
    %2256 = vmatpush1.xpose.msra.mxu0 0.0
    %2257 = vmatprep.subr.mxu0 0.0
    %2258 = vmatpush1.xpose.msra.mxu0 0.0
    %2259 = vmatprep.subr.mxu0 0.0
    %2260 = vmatpush1.xpose.msra.mxu0 0.0
    %2261 = vmatprep.subr.mxu0 0.0
    %2262 = vmatpush1.xpose.msra.mxu0 0.0
    %2263 = vmatprep.subr.mxu0 0.0
    %2264 = vmatpush1.xpose.msra.mxu0 0.0
    %2265 = vmatprep.subr.mxu0 0.0
    %2266 = vmatpush1.xpose.msra.mxu0 0.0
    %2267 = vmatprep.subr.mxu0 0.0
    %2268 = vmatpush1.xpose.msra.mxu0 0.0
    %2269 = vmatprep.subr.mxu0 0.0
    %2270 = vmatpush1.xpose.msra.mxu0 0.0
    %2271 = vmatprep.subr.mxu0 0.0
    %2272 = vmatpush1.xpose.msra.mxu0 0.0
    %2273 = vmatprep.subr.mxu0 0.0
    %2274 = vmatpush1.xpose.msra.mxu0 0.0
    %2275 = vmatprep.subr.mxu0 0.0
    %2276 = vmatpush1.xpose.msra.mxu0 0.0
    %2277 = vmatprep.subr.mxu0 0.0
    %2278 = vmatpush1.xpose.msra.mxu0 0.0
    %2279 = vmatprep.subr.mxu0 0.0
    %2280 = vmatpush1.xpose.msra.mxu0 0.0
    %2281 = vmatprep.subr.mxu0 0.0
    %2282 = vmatpush1.xpose.msra.mxu0 0.0
    %2283 = vmatprep.subr.mxu0 0.0
    %2284 = vmatpush1.xpose.msra.mxu0 0.0
    %2285 = vmatprep.subr.mxu0 0.0
    %2286 = vmatpush1.xpose.msra.mxu0 0.0
    %2287 = vmatprep.subr.mxu0 0.0
    %2288 = vmatpush1.xpose.msra.mxu0 0.0
    %2289 = vmatprep.subr.mxu0 0.0
    %2290 = vmatpush1.xpose.msra.mxu0 0.0
    %2291 = vmatprep.subr.mxu0 0.0
    %2292 = vmatpush1.xpose.msra.mxu0 0.0
    %2293 = vmatprep.subr.mxu0 0.0
    %2294 = vmatpush1.xpose.msra.mxu0 0.0
    %2295 = vmatprep.subr.mxu0 0.0
    %2296 = vmatpush1.xpose.msra.mxu0 0.0
    %2297 = vmatprep.subr.mxu0 0.0
    %2298 = vmatpush1.xpose.msra.mxu0 0.0
    %2299 = vmatprep.mubr.f32.mxu0 0.0
    %2300 = vmatmul.mubr.f32.gmra.mrb[0].mxu0 %v2231
    %v2301 = vpop.f32.mrb[0].mxu0
    %v2302 = vadd.f32 0.0, %v2301
    %v2303 = vpop.f32.mrb[0].mxu0
    %2304 = vdwg.mxu0
    %2305 = vrot.lane.b32.xlu0 %v1799, 120
    %v2306 = vpop.permute.xlu0 %2305
    %2307 = vrot.lane.b32.xlu0 %v1889, 120
    %v2308 = vpop.permute.xlu0 %2307
    %v2309 = vsel %vm207, %v2306, 0
    %v2311 = vsel %vm207, %v2308, 0
    %2313 = vmatprep.subr.mxu0 0.0
    %2314 = vmatpush1.xpose.msra.mxu0 %v2311
    %2315 = vmatprep.subr.mxu0 0.0
    %2316 = vmatpush1.xpose.msra.mxu0 0.0
    %2317 = vmatprep.subr.mxu0 0.0
    %2318 = vmatpush1.xpose.msra.mxu0 0.0
    %2319 = vmatprep.subr.mxu0 0.0
    %2320 = vmatpush1.xpose.msra.mxu0 0.0
    %2321 = vmatprep.subr.mxu0 0.0
    %2322 = vmatpush1.xpose.msra.mxu0 0.0
    %2323 = vmatprep.subr.mxu0 0.0
    %2324 = vmatpush1.xpose.msra.mxu0 0.0
    %2325 = vmatprep.subr.mxu0 0.0
    %2326 = vmatpush1.xpose.msra.mxu0 0.0
    %2327 = vmatprep.subr.mxu0 0.0
    %2328 = vmatpush1.xpose.msra.mxu0 0.0
    %2329 = vmatprep.subr.mxu0 0.0
    %2330 = vmatpush1.xpose.msra.mxu0 0.0
    %2331 = vmatprep.subr.mxu0 0.0
    %2332 = vmatpush1.xpose.msra.mxu0 0.0
    %2333 = vmatprep.subr.mxu0 0.0
    %2334 = vmatpush1.xpose.msra.mxu0 0.0
    %2335 = vmatprep.subr.mxu0 0.0
    %2336 = vmatpush1.xpose.msra.mxu0 0.0
    %2337 = vmatprep.subr.mxu0 0.0
    %2338 = vmatpush1.xpose.msra.mxu0 0.0
    %2339 = vmatprep.subr.mxu0 0.0
    %2340 = vmatpush1.xpose.msra.mxu0 0.0
    %2341 = vmatprep.subr.mxu0 0.0
    %2342 = vmatpush1.xpose.msra.mxu0 0.0
    %2343 = vmatprep.subr.mxu0 0.0
    %2344 = vmatpush1.xpose.msra.mxu0 0.0
    %2345 = vmatprep.subr.mxu0 0.0
    %2346 = vmatpush1.xpose.msra.mxu0 0.0
    %2347 = vmatprep.subr.mxu0 0.0
    %2348 = vmatpush1.xpose.msra.mxu0 0.0
    %2349 = vmatprep.subr.mxu0 0.0
    %2350 = vmatpush1.xpose.msra.mxu0 0.0
    %2351 = vmatprep.subr.mxu0 0.0
    %2352 = vmatpush1.xpose.msra.mxu0 0.0
    %2353 = vmatprep.subr.mxu0 0.0
    %2354 = vmatpush1.xpose.msra.mxu0 0.0
    %2355 = vmatprep.subr.mxu0 0.0
    %2356 = vmatpush1.xpose.msra.mxu0 0.0
    %2357 = vmatprep.subr.mxu0 0.0
    %2358 = vmatpush1.xpose.msra.mxu0 0.0
    %2359 = vmatprep.subr.mxu0 0.0
    %2360 = vmatpush1.xpose.msra.mxu0 0.0
    %2361 = vmatprep.subr.mxu0 0.0
    %2362 = vmatpush1.xpose.msra.mxu0 0.0
    %2363 = vmatprep.subr.mxu0 0.0
    %2364 = vmatpush1.xpose.msra.mxu0 0.0
    %2365 = vmatprep.subr.mxu0 0.0
    %2366 = vmatpush1.xpose.msra.mxu0 0.0
    %2367 = vmatprep.subr.mxu0 0.0
    %2368 = vmatpush1.xpose.msra.mxu0 0.0
    %2369 = vmatprep.subr.mxu0 0.0
    %2370 = vmatpush1.xpose.msra.mxu0 0.0
    %2371 = vmatprep.subr.mxu0 0.0
    %2372 = vmatpush1.xpose.msra.mxu0 0.0
    %2373 = vmatprep.subr.mxu0 0.0
    %2374 = vmatpush1.xpose.msra.mxu0 0.0
    %2375 = vmatprep.subr.mxu0 0.0
    %2376 = vmatpush1.xpose.msra.mxu0 0.0
    %2377 = vmatprep.mubr.f32.mxu0 0.0
    %2378 = vmatmul.mubr.f32.gmra.mrb[0].mxu0 %v2309
    %v2379 = vpop.f32.mrb[0].mxu0
    %v2380 = vadd.f32 0.0, %v2379
    %v2381 = vpop.f32.mrb[0].mxu0
    %2382 = vdwg.mxu0
    %v2383 = vmul.f32 %v2302, 0.35355338
    %v2384 = vmul.f32 %v2380, 0.35355338
    %v2385 = vsel %vm51, -1e+09, %v2383
    %v2386 = vsel %vm52, -1e+09, %v2384
    %v2387 = vsel %vm207, %v2385, -inf
    %2388 = vmax.xlane.f32.xlu0 %v2387
    %v2389 = vpop.xlane.xlu0 %2388
    %v2390 = vsel %vm207, %v2386, -inf
    %2391 = vmax.xlane.f32.xlu0 %v2390
    %v2392 = vpop.xlane.xlu0 %2391
    %v2393 = vsub.f32 %v2385, %v2389
    %v2394 = vsub.f32 %v2386, %v2392
    %v2395 = vmul.f32 %v2393, 1.442695
    %v2396 = vpow.pop %v2395
    %v2397 = vmul.f32 %v2394, 1.442695
    %v2398 = vpow.pop %v2397
    %v2399 = vsel %vm207, %v2396, 0.0
    %2400 = vadd.xlane.f32.xlu0 %v2399
    %v2401 = vpop.xlane.xlu0 %2400
    %v2402 = vsel %vm207, %v2398, 0.0
    %2403 = vadd.xlane.f32.xlu0 %v2402
    %v2404 = vpop.xlane.xlu0 %2403
    %v2405 = vrcp.pop %v2401
    %v2406 = vrcp.pop %v2404
    %v2407 = vmul.f32 %v2396, %v2405
    %v2408 = vmul.f32 %v2398, %v2406
    %2409 = vrot.lane.b32.xlu0 %v1884, 88
    %v2410 = vpop.permute.xlu0 %2409
    %v2413 = vsel %vm207, %v2407, 0
    %2415 = vmatprep.subr.mxu0 0.0
    %2416 = vmatpush1.msra.mxu0 %v2410
    %2417 = vmatprep.subr.mxu0 0.0
    %2418 = vmatpush1.msra.mxu0 0.0
    %2419 = vmatprep.subr.mxu0 0.0
    %2420 = vmatpush1.msra.mxu0 0.0
    %2421 = vmatprep.subr.mxu0 0.0
    %2422 = vmatpush1.msra.mxu0 0.0
    %2423 = vmatprep.subr.mxu0 0.0
    %2424 = vmatpush1.msra.mxu0 0.0
    %2425 = vmatprep.subr.mxu0 0.0
    %2426 = vmatpush1.msra.mxu0 0.0
    %2427 = vmatprep.subr.mxu0 0.0
    %2428 = vmatpush1.msra.mxu0 0.0
    %2429 = vmatprep.subr.mxu0 0.0
    %2430 = vmatpush1.msra.mxu0 0.0
    %2431 = vmatprep.subr.mxu0 0.0
    %2432 = vmatpush1.msra.mxu0 0.0
    %2433 = vmatprep.subr.mxu0 0.0
    %2434 = vmatpush1.msra.mxu0 0.0
    %2435 = vmatprep.subr.mxu0 0.0
    %2436 = vmatpush1.msra.mxu0 0.0
    %2437 = vmatprep.subr.mxu0 0.0
    %2438 = vmatpush1.msra.mxu0 0.0
    %2439 = vmatprep.subr.mxu0 0.0
    %2440 = vmatpush1.msra.mxu0 0.0
    %2441 = vmatprep.subr.mxu0 0.0
    %2442 = vmatpush1.msra.mxu0 0.0
    %2443 = vmatprep.subr.mxu0 0.0
    %2444 = vmatpush1.msra.mxu0 0.0
    %2445 = vmatprep.subr.mxu0 0.0
    %2446 = vmatpush1.msra.mxu0 0.0
    %2447 = vmatprep.subr.mxu0 0.0
    %2448 = vmatpush1.msra.mxu0 0.0
    %2449 = vmatprep.subr.mxu0 0.0
    %2450 = vmatpush1.msra.mxu0 0.0
    %2451 = vmatprep.subr.mxu0 0.0
    %2452 = vmatpush1.msra.mxu0 0.0
    %2453 = vmatprep.subr.mxu0 0.0
    %2454 = vmatpush1.msra.mxu0 0.0
    %2455 = vmatprep.subr.mxu0 0.0
    %2456 = vmatpush1.msra.mxu0 0.0
    %2457 = vmatprep.subr.mxu0 0.0
    %2458 = vmatpush1.msra.mxu0 0.0
    %2459 = vmatprep.subr.mxu0 0.0
    %2460 = vmatpush1.msra.mxu0 0.0
    %2461 = vmatprep.subr.mxu0 0.0
    %2462 = vmatpush1.msra.mxu0 0.0
    %2463 = vmatprep.subr.mxu0 0.0
    %2464 = vmatpush1.msra.mxu0 0.0
    %2465 = vmatprep.subr.mxu0 0.0
    %2466 = vmatpush1.msra.mxu0 0.0
    %2467 = vmatprep.subr.mxu0 0.0
    %2468 = vmatpush1.msra.mxu0 0.0
    %2469 = vmatprep.subr.mxu0 0.0
    %2470 = vmatpush1.msra.mxu0 0.0
    %2471 = vmatprep.subr.mxu0 0.0
    %2472 = vmatpush1.msra.mxu0 0.0
    %2473 = vmatprep.subr.mxu0 0.0
    %2474 = vmatpush1.msra.mxu0 0.0
    %2475 = vmatprep.subr.mxu0 0.0
    %2476 = vmatpush1.msra.mxu0 0.0
    %2477 = vmatprep.subr.mxu0 0.0
    %2478 = vmatpush1.msra.mxu0 0.0
    %2479 = vmatprep.mubr.f32.mxu0 0.0
    %2480 = vmatmul.mubr.f32.gmra.mrb[0].mxu0 %v2413
    %v2481 = vpop.f32.mrb[0].mxu0
    %v2482 = vadd.f32 0.0, %v2481
    %v2483 = vpop.f32.mrb[0].mxu0
    %2484 = vdwg.mxu0
    %2485 = vrot.lane.b32.xlu0 %v1889, 88
    %v2486 = vpop.permute.xlu0 %2485
    %v2489 = vsel %vm207, %v2408, 0
    %2491 = vmatprep.subr.mxu0 0.0
    %2492 = vmatpush1.msra.mxu0 %v2486
    %2493 = vmatprep.subr.mxu0 0.0
    %2494 = vmatpush1.msra.mxu0 0.0
    %2495 = vmatprep.subr.mxu0 0.0
    %2496 = vmatpush1.msra.mxu0 0.0
    %2497 = vmatprep.subr.mxu0 0.0
    %2498 = vmatpush1.msra.mxu0 0.0
    %2499 = vmatprep.subr.mxu0 0.0
    %2500 = vmatpush1.msra.mxu0 0.0
    %2501 = vmatprep.subr.mxu0 0.0
    %2502 = vmatpush1.msra.mxu0 0.0
    %2503 = vmatprep.subr.mxu0 0.0
    %2504 = vmatpush1.msra.mxu0 0.0
    %2505 = vmatprep.subr.mxu0 0.0
    %2506 = vmatpush1.msra.mxu0 0.0
    %2507 = vmatprep.subr.mxu0 0.0
    %2508 = vmatpush1.msra.mxu0 0.0
    %2509 = vmatprep.subr.mxu0 0.0
    %2510 = vmatpush1.msra.mxu0 0.0
    %2511 = vmatprep.subr.mxu0 0.0
    %2512 = vmatpush1.msra.mxu0 0.0
    %2513 = vmatprep.subr.mxu0 0.0
    %2514 = vmatpush1.msra.mxu0 0.0
    %2515 = vmatprep.subr.mxu0 0.0
    %2516 = vmatpush1.msra.mxu0 0.0
    %2517 = vmatprep.subr.mxu0 0.0
    %2518 = vmatpush1.msra.mxu0 0.0
    %2519 = vmatprep.subr.mxu0 0.0
    %2520 = vmatpush1.msra.mxu0 0.0
    %2521 = vmatprep.subr.mxu0 0.0
    %2522 = vmatpush1.msra.mxu0 0.0
    %2523 = vmatprep.subr.mxu0 0.0
    %2524 = vmatpush1.msra.mxu0 0.0
    %2525 = vmatprep.subr.mxu0 0.0
    %2526 = vmatpush1.msra.mxu0 0.0
    %2527 = vmatprep.subr.mxu0 0.0
    %2528 = vmatpush1.msra.mxu0 0.0
    %2529 = vmatprep.subr.mxu0 0.0
    %2530 = vmatpush1.msra.mxu0 0.0
    %2531 = vmatprep.subr.mxu0 0.0
    %2532 = vmatpush1.msra.mxu0 0.0
    %2533 = vmatprep.subr.mxu0 0.0
    %2534 = vmatpush1.msra.mxu0 0.0
    %2535 = vmatprep.subr.mxu0 0.0
    %2536 = vmatpush1.msra.mxu0 0.0
    %2537 = vmatprep.subr.mxu0 0.0
    %2538 = vmatpush1.msra.mxu0 0.0
    %2539 = vmatprep.subr.mxu0 0.0
    %2540 = vmatpush1.msra.mxu0 0.0
    %2541 = vmatprep.subr.mxu0 0.0
    %2542 = vmatpush1.msra.mxu0 0.0
    %2543 = vmatprep.subr.mxu0 0.0
    %2544 = vmatpush1.msra.mxu0 0.0
    %2545 = vmatprep.subr.mxu0 0.0
    %2546 = vmatpush1.msra.mxu0 0.0
    %2547 = vmatprep.subr.mxu0 0.0
    %2548 = vmatpush1.msra.mxu0 0.0
    %2549 = vmatprep.subr.mxu0 0.0
    %2550 = vmatpush1.msra.mxu0 0.0
    %2551 = vmatprep.subr.mxu0 0.0
    %2552 = vmatpush1.msra.mxu0 0.0
    %2553 = vmatprep.subr.mxu0 0.0
    %2554 = vmatpush1.msra.mxu0 0.0
    %2555 = vmatprep.mubr.f32.mxu0 0.0
    %2556 = vmatmul.mubr.f32.gmra.mrb[0].mxu0 %v2489
    %v2557 = vpop.f32.mrb[0].mxu0
    %v2558 = vadd.f32 0.0, %v2557
    %v2559 = vpop.f32.mrb[0].mxu0
    %2560 = vdwg.mxu0
    %2561 = vrot.lane.b32.xlu0 %v1794, 112
    %v2562 = vpop.permute.xlu0 %2561
    %2563 = vrot.lane.b32.xlu0 %v1884, 112
    %v2564 = vpop.permute.xlu0 %2563
    %v2565 = vsel %vm207, %v2562, 0
    %v2567 = vsel %vm207, %v2564, 0
    %2569 = vmatprep.subr.mxu0 0.0
    %2570 = vmatpush1.xpose.msra.mxu0 %v2567
    %2571 = vmatprep.subr.mxu0 0.0
    %2572 = vmatpush1.xpose.msra.mxu0 0.0
    %2573 = vmatprep.subr.mxu0 0.0
    %2574 = vmatpush1.xpose.msra.mxu0 0.0
    %2575 = vmatprep.subr.mxu0 0.0
    %2576 = vmatpush1.xpose.msra.mxu0 0.0
    %2577 = vmatprep.subr.mxu0 0.0
    %2578 = vmatpush1.xpose.msra.mxu0 0.0
    %2579 = vmatprep.subr.mxu0 0.0
    %2580 = vmatpush1.xpose.msra.mxu0 0.0
    %2581 = vmatprep.subr.mxu0 0.0
    %2582 = vmatpush1.xpose.msra.mxu0 0.0
    %2583 = vmatprep.subr.mxu0 0.0
    %2584 = vmatpush1.xpose.msra.mxu0 0.0
    %2585 = vmatprep.subr.mxu0 0.0
    %2586 = vmatpush1.xpose.msra.mxu0 0.0
    %2587 = vmatprep.subr.mxu0 0.0
    %2588 = vmatpush1.xpose.msra.mxu0 0.0
    %2589 = vmatprep.subr.mxu0 0.0
    %2590 = vmatpush1.xpose.msra.mxu0 0.0
    %2591 = vmatprep.subr.mxu0 0.0
    %2592 = vmatpush1.xpose.msra.mxu0 0.0
    %2593 = vmatprep.subr.mxu0 0.0
    %2594 = vmatpush1.xpose.msra.mxu0 0.0
    %2595 = vmatprep.subr.mxu0 0.0
    %2596 = vmatpush1.xpose.msra.mxu0 0.0
    %2597 = vmatprep.subr.mxu0 0.0
    %2598 = vmatpush1.xpose.msra.mxu0 0.0
    %2599 = vmatprep.subr.mxu0 0.0
    %2600 = vmatpush1.xpose.msra.mxu0 0.0
    %2601 = vmatprep.subr.mxu0 0.0
    %2602 = vmatpush1.xpose.msra.mxu0 0.0
    %2603 = vmatprep.subr.mxu0 0.0
    %2604 = vmatpush1.xpose.msra.mxu0 0.0
    %2605 = vmatprep.subr.mxu0 0.0
    %2606 = vmatpush1.xpose.msra.mxu0 0.0
    %2607 = vmatprep.subr.mxu0 0.0
    %2608 = vmatpush1.xpose.msra.mxu0 0.0
    %2609 = vmatprep.subr.mxu0 0.0
    %2610 = vmatpush1.xpose.msra.mxu0 0.0
    %2611 = vmatprep.subr.mxu0 0.0
    %2612 = vmatpush1.xpose.msra.mxu0 0.0
    %2613 = vmatprep.subr.mxu0 0.0
    %2614 = vmatpush1.xpose.msra.mxu0 0.0
    %2615 = vmatprep.subr.mxu0 0.0
    %2616 = vmatpush1.xpose.msra.mxu0 0.0
    %2617 = vmatprep.subr.mxu0 0.0
    %2618 = vmatpush1.xpose.msra.mxu0 0.0
    %2619 = vmatprep.subr.mxu0 0.0
    %2620 = vmatpush1.xpose.msra.mxu0 0.0
    %2621 = vmatprep.subr.mxu0 0.0
    %2622 = vmatpush1.xpose.msra.mxu0 0.0
    %2623 = vmatprep.subr.mxu0 0.0
    %2624 = vmatpush1.xpose.msra.mxu0 0.0
    %2625 = vmatprep.subr.mxu0 0.0
    %2626 = vmatpush1.xpose.msra.mxu0 0.0
    %2627 = vmatprep.subr.mxu0 0.0
    %2628 = vmatpush1.xpose.msra.mxu0 0.0
    %2629 = vmatprep.subr.mxu0 0.0
    %2630 = vmatpush1.xpose.msra.mxu0 0.0
    %2631 = vmatprep.subr.mxu0 0.0
    %2632 = vmatpush1.xpose.msra.mxu0 0.0
    %2633 = vmatprep.mubr.f32.mxu0 0.0
    %2634 = vmatmul.mubr.f32.gmra.mrb[0].mxu0 %v2565
    %v2635 = vpop.f32.mrb[0].mxu0
    %v2636 = vadd.f32 0.0, %v2635
    %v2637 = vpop.f32.mrb[0].mxu0
    %2638 = vdwg.mxu0
    %2639 = vrot.lane.b32.xlu0 %v1799, 112
    %v2640 = vpop.permute.xlu0 %2639
    %2641 = vrot.lane.b32.xlu0 %v1889, 112
    %v2642 = vpop.permute.xlu0 %2641
    %v2643 = vsel %vm207, %v2640, 0
    %v2645 = vsel %vm207, %v2642, 0
    %2647 = vmatprep.subr.mxu0 0.0
    %2648 = vmatpush1.xpose.msra.mxu0 %v2645
    %2649 = vmatprep.subr.mxu0 0.0
    %2650 = vmatpush1.xpose.msra.mxu0 0.0
    %2651 = vmatprep.subr.mxu0 0.0
    %2652 = vmatpush1.xpose.msra.mxu0 0.0
    %2653 = vmatprep.subr.mxu0 0.0
    %2654 = vmatpush1.xpose.msra.mxu0 0.0
    %2655 = vmatprep.subr.mxu0 0.0
    %2656 = vmatpush1.xpose.msra.mxu0 0.0
    %2657 = vmatprep.subr.mxu0 0.0
    %2658 = vmatpush1.xpose.msra.mxu0 0.0
    %2659 = vmatprep.subr.mxu0 0.0
    %2660 = vmatpush1.xpose.msra.mxu0 0.0
    %2661 = vmatprep.subr.mxu0 0.0
    %2662 = vmatpush1.xpose.msra.mxu0 0.0
    %2663 = vmatprep.subr.mxu0 0.0
    %2664 = vmatpush1.xpose.msra.mxu0 0.0
    %2665 = vmatprep.subr.mxu0 0.0
    %2666 = vmatpush1.xpose.msra.mxu0 0.0
    %2667 = vmatprep.subr.mxu0 0.0
    %2668 = vmatpush1.xpose.msra.mxu0 0.0
    %2669 = vmatprep.subr.mxu0 0.0
    %2670 = vmatpush1.xpose.msra.mxu0 0.0
    %2671 = vmatprep.subr.mxu0 0.0
    %2672 = vmatpush1.xpose.msra.mxu0 0.0
    %2673 = vmatprep.subr.mxu0 0.0
    %2674 = vmatpush1.xpose.msra.mxu0 0.0
    %2675 = vmatprep.subr.mxu0 0.0
    %2676 = vmatpush1.xpose.msra.mxu0 0.0
    %2677 = vmatprep.subr.mxu0 0.0
    %2678 = vmatpush1.xpose.msra.mxu0 0.0
    %2679 = vmatprep.subr.mxu0 0.0
    %2680 = vmatpush1.xpose.msra.mxu0 0.0
    %2681 = vmatprep.subr.mxu0 0.0
    %2682 = vmatpush1.xpose.msra.mxu0 0.0
    %2683 = vmatprep.subr.mxu0 0.0
    %2684 = vmatpush1.xpose.msra.mxu0 0.0
    %2685 = vmatprep.subr.mxu0 0.0
    %2686 = vmatpush1.xpose.msra.mxu0 0.0
    %2687 = vmatprep.subr.mxu0 0.0
    %2688 = vmatpush1.xpose.msra.mxu0 0.0
    %2689 = vmatprep.subr.mxu0 0.0
    %2690 = vmatpush1.xpose.msra.mxu0 0.0
    %2691 = vmatprep.subr.mxu0 0.0
    %2692 = vmatpush1.xpose.msra.mxu0 0.0
    %2693 = vmatprep.subr.mxu0 0.0
    %2694 = vmatpush1.xpose.msra.mxu0 0.0
    %2695 = vmatprep.subr.mxu0 0.0
    %2696 = vmatpush1.xpose.msra.mxu0 0.0
    %2697 = vmatprep.subr.mxu0 0.0
    %2698 = vmatpush1.xpose.msra.mxu0 0.0
    %2699 = vmatprep.subr.mxu0 0.0
    %2700 = vmatpush1.xpose.msra.mxu0 0.0
    %2701 = vmatprep.subr.mxu0 0.0
    %2702 = vmatpush1.xpose.msra.mxu0 0.0
    %2703 = vmatprep.subr.mxu0 0.0
    %2704 = vmatpush1.xpose.msra.mxu0 0.0
    %2705 = vmatprep.subr.mxu0 0.0
    %2706 = vmatpush1.xpose.msra.mxu0 0.0
    %2707 = vmatprep.subr.mxu0 0.0
    %2708 = vmatpush1.xpose.msra.mxu0 0.0
    %2709 = vmatprep.subr.mxu0 0.0
    %2710 = vmatpush1.xpose.msra.mxu0 0.0
    %2711 = vmatprep.mubr.f32.mxu0 0.0
    %2712 = vmatmul.mubr.f32.gmra.mrb[0].mxu0 %v2643
    %v2713 = vpop.f32.mrb[0].mxu0
    %v2714 = vadd.f32 0.0, %v2713
    %v2715 = vpop.f32.mrb[0].mxu0
    %2716 = vdwg.mxu0
    %v2717 = vmul.f32 %v2636, 0.35355338
    %v2718 = vmul.f32 %v2714, 0.35355338
    %v2719 = vsel %vm51, -1e+09, %v2717
    %v2720 = vsel %vm52, -1e+09, %v2718
    %v2721 = vsel %vm207, %v2719, -inf
    %2722 = vmax.xlane.f32.xlu0 %v2721
    %v2723 = vpop.xlane.xlu0 %2722
    %v2724 = vsel %vm207, %v2720, -inf
    %2725 = vmax.xlane.f32.xlu0 %v2724
    %v2726 = vpop.xlane.xlu0 %2725
    %v2727 = vsub.f32 %v2719, %v2723
    %v2728 = vsub.f32 %v2720, %v2726
    %v2729 = vmul.f32 %v2727, 1.442695
    %v2730 = vpow.pop %v2729
    %v2731 = vmul.f32 %v2728, 1.442695
    %v2732 = vpow.pop %v2731
    %v2733 = vsel %vm207, %v2730, 0.0
    %2734 = vadd.xlane.f32.xlu0 %v2733
    %v2735 = vpop.xlane.xlu0 %2734
    %v2736 = vsel %vm207, %v2732, 0.0
    %2737 = vadd.xlane.f32.xlu0 %v2736
    %v2738 = vpop.xlane.xlu0 %2737
    %v2739 = vrcp.pop %v2735
    %v2740 = vrcp.pop %v2738
    %v2741 = vmul.f32 %v2730, %v2739
    %v2742 = vmul.f32 %v2732, %v2740
    %2743 = vrot.lane.b32.xlu0 %v1884, 80
    %v2744 = vpop.permute.xlu0 %2743
    %v2747 = vsel %vm207, %v2741, 0
    %2749 = vmatprep.subr.mxu0 0.0
    %2750 = vmatpush1.msra.mxu0 %v2744
    %2751 = vmatprep.subr.mxu0 0.0
    %2752 = vmatpush1.msra.mxu0 0.0
    %2753 = vmatprep.subr.mxu0 0.0
    %2754 = vmatpush1.msra.mxu0 0.0
    %2755 = vmatprep.subr.mxu0 0.0
    %2756 = vmatpush1.msra.mxu0 0.0
    %2757 = vmatprep.subr.mxu0 0.0
    %2758 = vmatpush1.msra.mxu0 0.0
    %2759 = vmatprep.subr.mxu0 0.0
    %2760 = vmatpush1.msra.mxu0 0.0
    %2761 = vmatprep.subr.mxu0 0.0
    %2762 = vmatpush1.msra.mxu0 0.0
    %2763 = vmatprep.subr.mxu0 0.0
    %2764 = vmatpush1.msra.mxu0 0.0
    %2765 = vmatprep.subr.mxu0 0.0
    %2766 = vmatpush1.msra.mxu0 0.0
    %2767 = vmatprep.subr.mxu0 0.0
    %2768 = vmatpush1.msra.mxu0 0.0
    %2769 = vmatprep.subr.mxu0 0.0
    %2770 = vmatpush1.msra.mxu0 0.0
    %2771 = vmatprep.subr.mxu0 0.0
    %2772 = vmatpush1.msra.mxu0 0.0
    %2773 = vmatprep.subr.mxu0 0.0
    %2774 = vmatpush1.msra.mxu0 0.0
    %2775 = vmatprep.subr.mxu0 0.0
    %2776 = vmatpush1.msra.mxu0 0.0
    %2777 = vmatprep.subr.mxu0 0.0
    %2778 = vmatpush1.msra.mxu0 0.0
    %2779 = vmatprep.subr.mxu0 0.0
    %2780 = vmatpush1.msra.mxu0 0.0
    %2781 = vmatprep.subr.mxu0 0.0
    %2782 = vmatpush1.msra.mxu0 0.0
    %2783 = vmatprep.subr.mxu0 0.0
    %2784 = vmatpush1.msra.mxu0 0.0
    %2785 = vmatprep.subr.mxu0 0.0
    %2786 = vmatpush1.msra.mxu0 0.0
    %2787 = vmatprep.subr.mxu0 0.0
    %2788 = vmatpush1.msra.mxu0 0.0
    %2789 = vmatprep.subr.mxu0 0.0
    %2790 = vmatpush1.msra.mxu0 0.0
    %2791 = vmatprep.subr.mxu0 0.0
    %2792 = vmatpush1.msra.mxu0 0.0
    %2793 = vmatprep.subr.mxu0 0.0
    %2794 = vmatpush1.msra.mxu0 0.0
    %2795 = vmatprep.subr.mxu0 0.0
    %2796 = vmatpush1.msra.mxu0 0.0
    %2797 = vmatprep.subr.mxu0 0.0
    %2798 = vmatpush1.msra.mxu0 0.0
    %2799 = vmatprep.subr.mxu0 0.0
    %2800 = vmatpush1.msra.mxu0 0.0
    %2801 = vmatprep.subr.mxu0 0.0
    %2802 = vmatpush1.msra.mxu0 0.0
    %2803 = vmatprep.subr.mxu0 0.0
    %2804 = vmatpush1.msra.mxu0 0.0
    %2805 = vmatprep.subr.mxu0 0.0
    %2806 = vmatpush1.msra.mxu0 0.0
    %2807 = vmatprep.subr.mxu0 0.0
    %2808 = vmatpush1.msra.mxu0 0.0
    %2809 = vmatprep.subr.mxu0 0.0
    %2810 = vmatpush1.msra.mxu0 0.0
    %2811 = vmatprep.subr.mxu0 0.0
    %2812 = vmatpush1.msra.mxu0 0.0
    %2813 = vmatprep.mubr.f32.mxu0 0.0
    %2814 = vmatmul.mubr.f32.gmra.mrb[0].mxu0 %v2747
    %v2815 = vpop.f32.mrb[0].mxu0
    %v2816 = vadd.f32 0.0, %v2815
    %v2817 = vpop.f32.mrb[0].mxu0
    %2818 = vdwg.mxu0
    %2819 = vrot.lane.b32.xlu0 %v1889, 80
    %v2820 = vpop.permute.xlu0 %2819
    %v2823 = vsel %vm207, %v2742, 0
    %2825 = vmatprep.subr.mxu0 0.0
    %2826 = vmatpush1.msra.mxu0 %v2820
    %2827 = vmatprep.subr.mxu0 0.0
    %2828 = vmatpush1.msra.mxu0 0.0
    %2829 = vmatprep.subr.mxu0 0.0
    %2830 = vmatpush1.msra.mxu0 0.0
    %2831 = vmatprep.subr.mxu0 0.0
    %2832 = vmatpush1.msra.mxu0 0.0
    %2833 = vmatprep.subr.mxu0 0.0
    %2834 = vmatpush1.msra.mxu0 0.0
    %2835 = vmatprep.subr.mxu0 0.0
    %2836 = vmatpush1.msra.mxu0 0.0
    %2837 = vmatprep.subr.mxu0 0.0
    %2838 = vmatpush1.msra.mxu0 0.0
    %2839 = vmatprep.subr.mxu0 0.0
    %2840 = vmatpush1.msra.mxu0 0.0
    %2841 = vmatprep.subr.mxu0 0.0
    %2842 = vmatpush1.msra.mxu0 0.0
    %2843 = vmatprep.subr.mxu0 0.0
    %2844 = vmatpush1.msra.mxu0 0.0
    %2845 = vmatprep.subr.mxu0 0.0
    %2846 = vmatpush1.msra.mxu0 0.0
    %2847 = vmatprep.subr.mxu0 0.0
    %2848 = vmatpush1.msra.mxu0 0.0
    %2849 = vmatprep.subr.mxu0 0.0
    %2850 = vmatpush1.msra.mxu0 0.0
    %2851 = vmatprep.subr.mxu0 0.0
    %2852 = vmatpush1.msra.mxu0 0.0
    %2853 = vmatprep.subr.mxu0 0.0
    %2854 = vmatpush1.msra.mxu0 0.0
    %2855 = vmatprep.subr.mxu0 0.0
    %2856 = vmatpush1.msra.mxu0 0.0
    %2857 = vmatprep.subr.mxu0 0.0
    %2858 = vmatpush1.msra.mxu0 0.0
    %2859 = vmatprep.subr.mxu0 0.0
    %2860 = vmatpush1.msra.mxu0 0.0
    %2861 = vmatprep.subr.mxu0 0.0
    %2862 = vmatpush1.msra.mxu0 0.0
    %2863 = vmatprep.subr.mxu0 0.0
    %2864 = vmatpush1.msra.mxu0 0.0
    %2865 = vmatprep.subr.mxu0 0.0
    %2866 = vmatpush1.msra.mxu0 0.0
    %2867 = vmatprep.subr.mxu0 0.0
    %2868 = vmatpush1.msra.mxu0 0.0
    %2869 = vmatprep.subr.mxu0 0.0
    %2870 = vmatpush1.msra.mxu0 0.0
    %2871 = vmatprep.subr.mxu0 0.0
    %2872 = vmatpush1.msra.mxu0 0.0
    %2873 = vmatprep.subr.mxu0 0.0
    %2874 = vmatpush1.msra.mxu0 0.0
    %2875 = vmatprep.subr.mxu0 0.0
    %2876 = vmatpush1.msra.mxu0 0.0
    %2877 = vmatprep.subr.mxu0 0.0
    %2878 = vmatpush1.msra.mxu0 0.0
    %2879 = vmatprep.subr.mxu0 0.0
    %2880 = vmatpush1.msra.mxu0 0.0
    %2881 = vmatprep.subr.mxu0 0.0
    %2882 = vmatpush1.msra.mxu0 0.0
    %2883 = vmatprep.subr.mxu0 0.0
    %2884 = vmatpush1.msra.mxu0 0.0
    %2885 = vmatprep.subr.mxu0 0.0
    %2886 = vmatpush1.msra.mxu0 0.0
    %2887 = vmatprep.subr.mxu0 0.0
    %2888 = vmatpush1.msra.mxu0 0.0
    %2889 = vmatprep.mubr.f32.mxu0 0.0
    %2890 = vmatmul.mubr.f32.gmra.mrb[0].mxu0 %v2823
    %v2891 = vpop.f32.mrb[0].mxu0
    %v2892 = vadd.f32 0.0, %v2891
    %v2893 = vpop.f32.mrb[0].mxu0
    %2894 = vdwg.mxu0
    %2895 = vrot.lane.b32.xlu0 %v1794, 104
    %v2896 = vpop.permute.xlu0 %2895
    %2897 = vrot.lane.b32.xlu0 %v1884, 104
    %v2898 = vpop.permute.xlu0 %2897
    %v2899 = vsel %vm207, %v2896, 0
    %v2901 = vsel %vm207, %v2898, 0
    %2903 = vmatprep.subr.mxu0 0.0
    %2904 = vmatpush1.xpose.msra.mxu0 %v2901
    %2905 = vmatprep.subr.mxu0 0.0
    %2906 = vmatpush1.xpose.msra.mxu0 0.0
    %2907 = vmatprep.subr.mxu0 0.0
    %2908 = vmatpush1.xpose.msra.mxu0 0.0
    %2909 = vmatprep.subr.mxu0 0.0
    %2910 = vmatpush1.xpose.msra.mxu0 0.0
    %2911 = vmatprep.subr.mxu0 0.0
    %2912 = vmatpush1.xpose.msra.mxu0 0.0
    %2913 = vmatprep.subr.mxu0 0.0
    %2914 = vmatpush1.xpose.msra.mxu0 0.0
    %2915 = vmatprep.subr.mxu0 0.0
    %2916 = vmatpush1.xpose.msra.mxu0 0.0
    %2917 = vmatprep.subr.mxu0 0.0
    %2918 = vmatpush1.xpose.msra.mxu0 0.0
    %2919 = vmatprep.subr.mxu0 0.0
    %2920 = vmatpush1.xpose.msra.mxu0 0.0
    %2921 = vmatprep.subr.mxu0 0.0
    %2922 = vmatpush1.xpose.msra.mxu0 0.0
    %2923 = vmatprep.subr.mxu0 0.0
    %2924 = vmatpush1.xpose.msra.mxu0 0.0
    %2925 = vmatprep.subr.mxu0 0.0
    %2926 = vmatpush1.xpose.msra.mxu0 0.0
    %2927 = vmatprep.subr.mxu0 0.0
    %2928 = vmatpush1.xpose.msra.mxu0 0.0
    %2929 = vmatprep.subr.mxu0 0.0
    %2930 = vmatpush1.xpose.msra.mxu0 0.0
    %2931 = vmatprep.subr.mxu0 0.0
    %2932 = vmatpush1.xpose.msra.mxu0 0.0
    %2933 = vmatprep.subr.mxu0 0.0
    %2934 = vmatpush1.xpose.msra.mxu0 0.0
    %2935 = vmatprep.subr.mxu0 0.0
    %2936 = vmatpush1.xpose.msra.mxu0 0.0
    %2937 = vmatprep.subr.mxu0 0.0
    %2938 = vmatpush1.xpose.msra.mxu0 0.0
    %2939 = vmatprep.subr.mxu0 0.0
    %2940 = vmatpush1.xpose.msra.mxu0 0.0
    %2941 = vmatprep.subr.mxu0 0.0
    %2942 = vmatpush1.xpose.msra.mxu0 0.0
    %2943 = vmatprep.subr.mxu0 0.0
    %2944 = vmatpush1.xpose.msra.mxu0 0.0
    %2945 = vmatprep.subr.mxu0 0.0
    %2946 = vmatpush1.xpose.msra.mxu0 0.0
    %2947 = vmatprep.subr.mxu0 0.0
    %2948 = vmatpush1.xpose.msra.mxu0 0.0
    %2949 = vmatprep.subr.mxu0 0.0
    %2950 = vmatpush1.xpose.msra.mxu0 0.0
    %2951 = vmatprep.subr.mxu0 0.0
    %2952 = vmatpush1.xpose.msra.mxu0 0.0
    %2953 = vmatprep.subr.mxu0 0.0
    %2954 = vmatpush1.xpose.msra.mxu0 0.0
    %2955 = vmatprep.subr.mxu0 0.0
    %2956 = vmatpush1.xpose.msra.mxu0 0.0
    %2957 = vmatprep.subr.mxu0 0.0
    %2958 = vmatpush1.xpose.msra.mxu0 0.0
    %2959 = vmatprep.subr.mxu0 0.0
    %2960 = vmatpush1.xpose.msra.mxu0 0.0
    %2961 = vmatprep.subr.mxu0 0.0
    %2962 = vmatpush1.xpose.msra.mxu0 0.0
    %2963 = vmatprep.subr.mxu0 0.0
    %2964 = vmatpush1.xpose.msra.mxu0 0.0
    %2965 = vmatprep.subr.mxu0 0.0
    %2966 = vmatpush1.xpose.msra.mxu0 0.0
    %2967 = vmatprep.mubr.f32.mxu0 0.0
    %2968 = vmatmul.mubr.f32.gmra.mrb[0].mxu0 %v2899
    %v2969 = vpop.f32.mrb[0].mxu0
    %v2970 = vadd.f32 0.0, %v2969
    %v2971 = vpop.f32.mrb[0].mxu0
    %2972 = vdwg.mxu0
    %2973 = vrot.lane.b32.xlu0 %v1799, 104
    %v2974 = vpop.permute.xlu0 %2973
    %2975 = vrot.lane.b32.xlu0 %v1889, 104
    %v2976 = vpop.permute.xlu0 %2975
    %v2977 = vsel %vm207, %v2974, 0
    %v2979 = vsel %vm207, %v2976, 0
    %2981 = vmatprep.subr.mxu0 0.0
    %2982 = vmatpush1.xpose.msra.mxu0 %v2979
    %2983 = vmatprep.subr.mxu0 0.0
    %2984 = vmatpush1.xpose.msra.mxu0 0.0
    %2985 = vmatprep.subr.mxu0 0.0
    %2986 = vmatpush1.xpose.msra.mxu0 0.0
    %2987 = vmatprep.subr.mxu0 0.0
    %2988 = vmatpush1.xpose.msra.mxu0 0.0
    %2989 = vmatprep.subr.mxu0 0.0
    %2990 = vmatpush1.xpose.msra.mxu0 0.0
    %2991 = vmatprep.subr.mxu0 0.0
    %2992 = vmatpush1.xpose.msra.mxu0 0.0
    %2993 = vmatprep.subr.mxu0 0.0
    %2994 = vmatpush1.xpose.msra.mxu0 0.0
    %2995 = vmatprep.subr.mxu0 0.0
    %2996 = vmatpush1.xpose.msra.mxu0 0.0
    %2997 = vmatprep.subr.mxu0 0.0
    %2998 = vmatpush1.xpose.msra.mxu0 0.0
    %2999 = vmatprep.subr.mxu0 0.0
    %3000 = vmatpush1.xpose.msra.mxu0 0.0
    %3001 = vmatprep.subr.mxu0 0.0
    %3002 = vmatpush1.xpose.msra.mxu0 0.0
    %3003 = vmatprep.subr.mxu0 0.0
    %3004 = vmatpush1.xpose.msra.mxu0 0.0
    %3005 = vmatprep.subr.mxu0 0.0
    %3006 = vmatpush1.xpose.msra.mxu0 0.0
    %3007 = vmatprep.subr.mxu0 0.0
    %3008 = vmatpush1.xpose.msra.mxu0 0.0
    %3009 = vmatprep.subr.mxu0 0.0
    %3010 = vmatpush1.xpose.msra.mxu0 0.0
    %3011 = vmatprep.subr.mxu0 0.0
    %3012 = vmatpush1.xpose.msra.mxu0 0.0
    %3013 = vmatprep.subr.mxu0 0.0
    %3014 = vmatpush1.xpose.msra.mxu0 0.0
    %3015 = vmatprep.subr.mxu0 0.0
    %3016 = vmatpush1.xpose.msra.mxu0 0.0
    %3017 = vmatprep.subr.mxu0 0.0
    %3018 = vmatpush1.xpose.msra.mxu0 0.0
    %3019 = vmatprep.subr.mxu0 0.0
    %3020 = vmatpush1.xpose.msra.mxu0 0.0
    %3021 = vmatprep.subr.mxu0 0.0
    %3022 = vmatpush1.xpose.msra.mxu0 0.0
    %3023 = vmatprep.subr.mxu0 0.0
    %3024 = vmatpush1.xpose.msra.mxu0 0.0
    %3025 = vmatprep.subr.mxu0 0.0
    %3026 = vmatpush1.xpose.msra.mxu0 0.0
    %3027 = vmatprep.subr.mxu0 0.0
    %3028 = vmatpush1.xpose.msra.mxu0 0.0
    %3029 = vmatprep.subr.mxu0 0.0
    %3030 = vmatpush1.xpose.msra.mxu0 0.0
    %3031 = vmatprep.subr.mxu0 0.0
    %3032 = vmatpush1.xpose.msra.mxu0 0.0
    %3033 = vmatprep.subr.mxu0 0.0
    %3034 = vmatpush1.xpose.msra.mxu0 0.0
    %3035 = vmatprep.subr.mxu0 0.0
    %3036 = vmatpush1.xpose.msra.mxu0 0.0
    %3037 = vmatprep.subr.mxu0 0.0
    %3038 = vmatpush1.xpose.msra.mxu0 0.0
    %3039 = vmatprep.subr.mxu0 0.0
    %3040 = vmatpush1.xpose.msra.mxu0 0.0
    %3041 = vmatprep.subr.mxu0 0.0
    %3042 = vmatpush1.xpose.msra.mxu0 0.0
    %3043 = vmatprep.subr.mxu0 0.0
    %3044 = vmatpush1.xpose.msra.mxu0 0.0
    %3045 = vmatprep.mubr.f32.mxu0 0.0
    %3046 = vmatmul.mubr.f32.gmra.mrb[0].mxu0 %v2977
    %v3047 = vpop.f32.mrb[0].mxu0
    %v3048 = vadd.f32 0.0, %v3047
    %v3049 = vpop.f32.mrb[0].mxu0
    %3050 = vdwg.mxu0
    %v3051 = vmul.f32 %v2970, 0.35355338
    %v3052 = vmul.f32 %v3048, 0.35355338
    %v3053 = vsel %vm51, -1e+09, %v3051
    %v3054 = vsel %vm52, -1e+09, %v3052
    %v3055 = vsel %vm207, %v3053, -inf
    %3056 = vmax.xlane.f32.xlu0 %v3055
    %v3057 = vpop.xlane.xlu0 %3056
    %v3058 = vsel %vm207, %v3054, -inf
    %3059 = vmax.xlane.f32.xlu0 %v3058
    %v3060 = vpop.xlane.xlu0 %3059
    %v3061 = vsub.f32 %v3053, %v3057
    %v3062 = vsub.f32 %v3054, %v3060
    %v3063 = vmul.f32 %v3061, 1.442695
    %v3064 = vpow.pop %v3063
    %v3065 = vmul.f32 %v3062, 1.442695
    %v3066 = vpow.pop %v3065
    %v3067 = vsel %vm207, %v3064, 0.0
    %3068 = vadd.xlane.f32.xlu0 %v3067
    %v3069 = vpop.xlane.xlu0 %3068
    %v3070 = vsel %vm207, %v3066, 0.0
    %3071 = vadd.xlane.f32.xlu0 %v3070
    %v3072 = vpop.xlane.xlu0 %3071
    %v3073 = vrcp.pop %v3069
    %v3074 = vrcp.pop %v3072
    %v3075 = vmul.f32 %v3064, %v3073
    %v3076 = vmul.f32 %v3066, %v3074
    %3077 = vrot.lane.b32.xlu0 %v1884, 72
    %v3078 = vpop.permute.xlu0 %3077
    %v3081 = vsel %vm207, %v3075, 0
    %3083 = vmatprep.subr.mxu0 0.0
    %3084 = vmatpush1.msra.mxu0 %v3078
    %3085 = vmatprep.subr.mxu0 0.0
    %3086 = vmatpush1.msra.mxu0 0.0
    %3087 = vmatprep.subr.mxu0 0.0
    %3088 = vmatpush1.msra.mxu0 0.0
    %3089 = vmatprep.subr.mxu0 0.0
    %3090 = vmatpush1.msra.mxu0 0.0
    %3091 = vmatprep.subr.mxu0 0.0
    %3092 = vmatpush1.msra.mxu0 0.0
    %3093 = vmatprep.subr.mxu0 0.0
    %3094 = vmatpush1.msra.mxu0 0.0
    %3095 = vmatprep.subr.mxu0 0.0
    %3096 = vmatpush1.msra.mxu0 0.0
    %3097 = vmatprep.subr.mxu0 0.0
    %3098 = vmatpush1.msra.mxu0 0.0
    %3099 = vmatprep.subr.mxu0 0.0
    %3100 = vmatpush1.msra.mxu0 0.0
    %3101 = vmatprep.subr.mxu0 0.0
    %3102 = vmatpush1.msra.mxu0 0.0
    %3103 = vmatprep.subr.mxu0 0.0
    %3104 = vmatpush1.msra.mxu0 0.0
    %3105 = vmatprep.subr.mxu0 0.0
    %3106 = vmatpush1.msra.mxu0 0.0
    %3107 = vmatprep.subr.mxu0 0.0
    %3108 = vmatpush1.msra.mxu0 0.0
    %3109 = vmatprep.subr.mxu0 0.0
    %3110 = vmatpush1.msra.mxu0 0.0
    %3111 = vmatprep.subr.mxu0 0.0
    %3112 = vmatpush1.msra.mxu0 0.0
    %3113 = vmatprep.subr.mxu0 0.0
    %3114 = vmatpush1.msra.mxu0 0.0
    %3115 = vmatprep.subr.mxu0 0.0
    %3116 = vmatpush1.msra.mxu0 0.0
    %3117 = vmatprep.subr.mxu0 0.0
    %3118 = vmatpush1.msra.mxu0 0.0
    %3119 = vmatprep.subr.mxu0 0.0
    %3120 = vmatpush1.msra.mxu0 0.0
    %3121 = vmatprep.subr.mxu0 0.0
    %3122 = vmatpush1.msra.mxu0 0.0
    %3123 = vmatprep.subr.mxu0 0.0
    %3124 = vmatpush1.msra.mxu0 0.0
    %3125 = vmatprep.subr.mxu0 0.0
    %3126 = vmatpush1.msra.mxu0 0.0
    %3127 = vmatprep.subr.mxu0 0.0
    %3128 = vmatpush1.msra.mxu0 0.0
    %3129 = vmatprep.subr.mxu0 0.0
    %3130 = vmatpush1.msra.mxu0 0.0
    %3131 = vmatprep.subr.mxu0 0.0
    %3132 = vmatpush1.msra.mxu0 0.0
    %3133 = vmatprep.subr.mxu0 0.0
    %3134 = vmatpush1.msra.mxu0 0.0
    %3135 = vmatprep.subr.mxu0 0.0
    %3136 = vmatpush1.msra.mxu0 0.0
    %3137 = vmatprep.subr.mxu0 0.0
    %3138 = vmatpush1.msra.mxu0 0.0
    %3139 = vmatprep.subr.mxu0 0.0
    %3140 = vmatpush1.msra.mxu0 0.0
    %3141 = vmatprep.subr.mxu0 0.0
    %3142 = vmatpush1.msra.mxu0 0.0
    %3143 = vmatprep.subr.mxu0 0.0
    %3144 = vmatpush1.msra.mxu0 0.0
    %3145 = vmatprep.subr.mxu0 0.0
    %3146 = vmatpush1.msra.mxu0 0.0
    %3147 = vmatprep.mubr.f32.mxu0 0.0
    %3148 = vmatmul.mubr.f32.gmra.mrb[0].mxu0 %v3081
    %v3149 = vpop.f32.mrb[0].mxu0
    %v3150 = vadd.f32 0.0, %v3149
    %v3151 = vpop.f32.mrb[0].mxu0
    %3152 = vdwg.mxu0
    %3153 = vrot.lane.b32.xlu0 %v1889, 72
    %v3154 = vpop.permute.xlu0 %3153
    %v3157 = vsel %vm207, %v3076, 0
    %3159 = vmatprep.subr.mxu0 0.0
    %3160 = vmatpush1.msra.mxu0 %v3154
    %3161 = vmatprep.subr.mxu0 0.0
    %3162 = vmatpush1.msra.mxu0 0.0
    %3163 = vmatprep.subr.mxu0 0.0
    %3164 = vmatpush1.msra.mxu0 0.0
    %3165 = vmatprep.subr.mxu0 0.0
    %3166 = vmatpush1.msra.mxu0 0.0
    %3167 = vmatprep.subr.mxu0 0.0
    %3168 = vmatpush1.msra.mxu0 0.0
    %3169 = vmatprep.subr.mxu0 0.0
    %3170 = vmatpush1.msra.mxu0 0.0
    %3171 = vmatprep.subr.mxu0 0.0
    %3172 = vmatpush1.msra.mxu0 0.0
    %3173 = vmatprep.subr.mxu0 0.0
    %3174 = vmatpush1.msra.mxu0 0.0
    %3175 = vmatprep.subr.mxu0 0.0
    %3176 = vmatpush1.msra.mxu0 0.0
    %3177 = vmatprep.subr.mxu0 0.0
    %3178 = vmatpush1.msra.mxu0 0.0
    %3179 = vmatprep.subr.mxu0 0.0
    %3180 = vmatpush1.msra.mxu0 0.0
    %3181 = vmatprep.subr.mxu0 0.0
    %3182 = vmatpush1.msra.mxu0 0.0
    %3183 = vmatprep.subr.mxu0 0.0
    %3184 = vmatpush1.msra.mxu0 0.0
    %3185 = vmatprep.subr.mxu0 0.0
    %3186 = vmatpush1.msra.mxu0 0.0
    %3187 = vmatprep.subr.mxu0 0.0
    %3188 = vmatpush1.msra.mxu0 0.0
    %3189 = vmatprep.subr.mxu0 0.0
    %3190 = vmatpush1.msra.mxu0 0.0
    %3191 = vmatprep.subr.mxu0 0.0
    %3192 = vmatpush1.msra.mxu0 0.0
    %3193 = vmatprep.subr.mxu0 0.0
    %3194 = vmatpush1.msra.mxu0 0.0
    %3195 = vmatprep.subr.mxu0 0.0
    %3196 = vmatpush1.msra.mxu0 0.0
    %3197 = vmatprep.subr.mxu0 0.0
    %3198 = vmatpush1.msra.mxu0 0.0
    %3199 = vmatprep.subr.mxu0 0.0
    %3200 = vmatpush1.msra.mxu0 0.0
    %3201 = vmatprep.subr.mxu0 0.0
    %3202 = vmatpush1.msra.mxu0 0.0
    %3203 = vmatprep.subr.mxu0 0.0
    %3204 = vmatpush1.msra.mxu0 0.0
    %3205 = vmatprep.subr.mxu0 0.0
    %3206 = vmatpush1.msra.mxu0 0.0
    %3207 = vmatprep.subr.mxu0 0.0
    %3208 = vmatpush1.msra.mxu0 0.0
    %3209 = vmatprep.subr.mxu0 0.0
    %3210 = vmatpush1.msra.mxu0 0.0
    %3211 = vmatprep.subr.mxu0 0.0
    %3212 = vmatpush1.msra.mxu0 0.0
    %3213 = vmatprep.subr.mxu0 0.0
    %3214 = vmatpush1.msra.mxu0 0.0
    %3215 = vmatprep.subr.mxu0 0.0
    %3216 = vmatpush1.msra.mxu0 0.0
    %3217 = vmatprep.subr.mxu0 0.0
    %3218 = vmatpush1.msra.mxu0 0.0
    %3219 = vmatprep.subr.mxu0 0.0
    %3220 = vmatpush1.msra.mxu0 0.0
    %3221 = vmatprep.subr.mxu0 0.0
    %3222 = vmatpush1.msra.mxu0 0.0
    %3223 = vmatprep.mubr.f32.mxu0 0.0
    %3224 = vmatmul.mubr.f32.gmra.mrb[0].mxu0 %v3157
    %v3225 = vpop.f32.mrb[0].mxu0
    %v3226 = vadd.f32 0.0, %v3225
    %v3227 = vpop.f32.mrb[0].mxu0
    %3228 = vdwg.mxu0
    %3231 = vrot.lane.b32.xlu0 %v2482, 8
    %v3232 = vpop.permute.xlu0 %3231
    %3233 = vrot.lane.b32.xlu0 %v2558, 8
    %v3234 = vpop.permute.xlu0 %3233
    %3239 = vrot.lane.b32.xlu0 %v2816, 16
    %v3240 = vpop.permute.xlu0 %3239
    %3241 = vrot.lane.b32.xlu0 %v2892, 16
    %v3242 = vpop.permute.xlu0 %3241
    %3247 = vrot.lane.b32.xlu0 %v3150, 24
    %v3248 = vpop.permute.xlu0 %3247
    %3249 = vrot.lane.b32.xlu0 %v3226, 24
    %v3250 = vpop.permute.xlu0 %3249
    %v3253 = vsel %vm207, %v2148, %v3232
    %v3254 = vsel %vm207, %v2224, %v3234
    %v3255 = vsel %vm1565, %v3253, %v3240
    %v3256 = vsel %vm1565, %v3254, %v3242
    %v3257 = vsel %vm1568, %v3255, %v3248
    %v3258 = vsel %vm1568, %v3256, %v3250
    %v3259 = vlaneseq
    %v3260 = vshrl.u32 %v3259, 7
    %v3261 = vsub.s32 0, %v3260
    %v3262 = vrot.slane %v1896, %v3261
    %v3264 = vsel %vm55, %v3257, 0
    %v3267 = vsel %vm55, %v3258, 0
    %3269 = vmatprep.subr.mxu0 0.0
    %3270 = vmatpush1.msra.mxu0 %v1892
    %3271 = vmatprep.subr.mxu0 0.0
    %3272 = vmatpush1.msra.mxu0 %v1893
    %3273 = vmatprep.subr.mxu0 0.0
    %3274 = vmatpush1.msra.mxu0 %v1894
    %3275 = vmatprep.subr.mxu0 0.0
    %3276 = vmatpush1.msra.mxu0 %v1895
    %3277 = vmatprep.subr.mxu0 0.0
    %3278 = vmatpush1.msra.mxu0 0.0
    %3279 = vmatprep.subr.mxu0 0.0
    %3280 = vmatpush1.msra.mxu0 0.0
    %3281 = vmatprep.subr.mxu0 0.0
    %3282 = vmatpush1.msra.mxu0 0.0
    %3283 = vmatprep.subr.mxu0 0.0
    %3284 = vmatpush1.msra.mxu0 0.0
    %3285 = vmatprep.subr.mxu0 0.0
    %3286 = vmatpush1.msra.mxu0 0.0
    %3287 = vmatprep.subr.mxu0 0.0
    %3288 = vmatpush1.msra.mxu0 0.0
    %3289 = vmatprep.subr.mxu0 0.0
    %3290 = vmatpush1.msra.mxu0 0.0
    %3291 = vmatprep.subr.mxu0 0.0
    %3292 = vmatpush1.msra.mxu0 0.0
    %3293 = vmatprep.subr.mxu0 0.0
    %3294 = vmatpush1.msra.mxu0 0.0
    %3295 = vmatprep.subr.mxu0 0.0
    %3296 = vmatpush1.msra.mxu0 0.0
    %3297 = vmatprep.subr.mxu0 0.0
    %3298 = vmatpush1.msra.mxu0 0.0
    %3299 = vmatprep.subr.mxu0 0.0
    %3300 = vmatpush1.msra.mxu0 0.0
    %3301 = vmatprep.subr.mxu0 0.0
    %3302 = vmatpush1.msra.mxu0 0.0
    %3303 = vmatprep.subr.mxu0 0.0
    %3304 = vmatpush1.msra.mxu0 0.0
    %3305 = vmatprep.subr.mxu0 0.0
    %3306 = vmatpush1.msra.mxu0 0.0
    %3307 = vmatprep.subr.mxu0 0.0
    %3308 = vmatpush1.msra.mxu0 0.0
    %3309 = vmatprep.subr.mxu0 0.0
    %3310 = vmatpush1.msra.mxu0 0.0
    %3311 = vmatprep.subr.mxu0 0.0
    %3312 = vmatpush1.msra.mxu0 0.0
    %3313 = vmatprep.subr.mxu0 0.0
    %3314 = vmatpush1.msra.mxu0 0.0
    %3315 = vmatprep.subr.mxu0 0.0
    %3316 = vmatpush1.msra.mxu0 0.0
    %3317 = vmatprep.subr.mxu0 0.0
    %3318 = vmatpush1.msra.mxu0 0.0
    %3319 = vmatprep.subr.mxu0 0.0
    %3320 = vmatpush1.msra.mxu0 0.0
    %3321 = vmatprep.subr.mxu0 0.0
    %3322 = vmatpush1.msra.mxu0 0.0
    %3323 = vmatprep.subr.mxu0 0.0
    %3324 = vmatpush1.msra.mxu0 0.0
    %3325 = vmatprep.subr.mxu0 0.0
    %3326 = vmatpush1.msra.mxu0 0.0
    %3327 = vmatprep.subr.mxu0 0.0
    %3328 = vmatpush1.msra.mxu0 0.0
    %3329 = vmatprep.subr.mxu0 0.0
    %3330 = vmatpush1.msra.mxu0 0.0
    %3331 = vmatprep.subr.mxu0 0.0
    %3332 = vmatpush1.msra.mxu0 0.0
    %3333 = vmatprep.mubr.f32.mxu0 0.0
    %3334 = vmatmul.mubr.f32.gmra.mrb[0].mxu0 %v3264
    %v3335 = vpop.f32.mrb[0].mxu0
    %v3336 = vadd.f32 %v3262, %v3335
    %v3337 = vpop.f32.mrb[0].mxu0
    %3338 = vmatprep.mubr.f32.mxu0 0.0
    %3339 = vmatmul.mubr.f32.gmra.mrb[0].mxu0 %v3267
    %v3340 = vpop.f32.mrb[0].mxu0
    %v3341 = vadd.f32 %v3262, %v3340
    %v3342 = vpop.f32.mrb[0].mxu0
    %3343 = vdwg.mxu0
    %v3344 = vadd.f32 %v1656, %v3336
    %v3345 = vadd.f32 %v1657, %v3341
    %v3346 = vld [vmem:[%s6 + $0xb] sm:$0x1]
    %v3347 = vld [vmem:[%s6 + $0xc] sm:$0x1]
    %v3348 = vsel %vm55, %v3344, 0.0
    %3349 = vadd.xlane.f32.xlu0 %v3348
    %v3350 = vpop.xlane.xlu0 %3349
    %v3351 = vsel %vm55, %v3345, 0.0
    %3352 = vadd.xlane.f32.xlu0 %v3351
    %v3353 = vpop.xlane.xlu0 %3352
    %v3354 = vmul.f32 %v3350, %v62
    %v3355 = vmul.f32 %v3353, %v62
    %v3356 = vsub.f32 %v3344, %v3354
    %v3357 = vsub.f32 %v3345, %v3355
    %v3358 = vmul.f32 %v3356, %v3356
    %v3359 = vmul.f32 %v3357, %v3357
    %v3360 = vsel %vm55, %v3358, 0.0
    %3361 = vadd.xlane.f32.xlu0 %v3360
    %v3362 = vpop.xlane.xlu0 %3361
    %v3363 = vsel %vm55, %v3359, 0.0
    %3364 = vadd.xlane.f32.xlu0 %v3363
    %v3365 = vpop.xlane.xlu0 %3364
    %v3366 = vmul.f32 %v3362, 0.032258064
    %v3367 = vmul.f32 %v3365, 0.032258064
    %v3368 = vrsqrt.pop %v3366
    %v3369 = vmul.f32 %v3366, %v3368
    %vm3370 = vcmp.eq.f32.partialorder %v3366, inf
    %v3371 = vsel %vm3370, %v3366, %v3369
    %vm3372 = vcmp.eq.f32.partialorder %v3366, 0.0
    %v3373 = vand.u32 %v3366, 2147483648
    %v3374 = vsel %vm3372, %v3373, %v3371
    %v3375 = vrsqrt.pop %v3367
    %v3376 = vmul.f32 %v3367, %v3375
    %vm3377 = vcmp.eq.f32.partialorder %v3367, inf
    %v3378 = vsel %vm3377, %v3367, %v3376
    %vm3379 = vcmp.eq.f32.partialorder %v3367, 0.0
    %v3380 = vand.u32 %v3367, 2147483648
    %v3381 = vsel %vm3379, %v3380, %v3378
    %v3382 = vadd.f32 %v3374, 1e-06
    %v3383 = vadd.f32 %v3381, 1e-06
    %v3384 = vrcp.pop %v3382
    %v3385 = vrcp.pop %v3383
    %v3386 = vlaneseq
    %v3387 = vshrl.u32 %v3386, 7
    %v3388 = vsub.s32 0, %v3387
    %v3389 = vrot.slane %v3346, %v3388
    %v3390 = vmul.f32 %v3389, %v3356
    %v3391 = vmul.f32 %v3389, %v3357
    %v3392 = vmul.f32 %v3390, %v3384
    %v3393 = vmul.f32 %v3391, %v3385
    %v3394 = vlaneseq
    %v3395 = vshrl.u32 %v3394, 7
    %v3396 = vsub.s32 0, %v3395
    %v3397 = vrot.slane %v3347, %v3396
    %v3398 = vadd.f32 %v3392, %v3397
    %v3399 = vadd.f32 %v3393, %v3397
    %v3400 = vld [vmem:[#allocation2 + $0x28] sm:$0xff]
    %v3401 = vld [vmem:[#allocation2 + $0x58] sm:$0xff]
    %v3402 = vld [vmem:[#allocation2 + $0x88] sm:$0xff]
    %v3403 = vld [vmem:[#allocation2 + $0xb8] sm:$0xff]
    %v3404 = vld [vmem:[%s6 + $0x5] sm:$0x1]
    %v3405 = vlaneseq
    %v3406 = vshrl.u32 %v3405, 7
    %v3407 = vsub.s32 0, %v3406
    %v3408 = vrot.slane %v3404, %v3407
    %v3410 = vsel %vm55, %v3398, 0
    %v3413 = vsel %vm55, %v3399, 0
    %3415 = vmatprep.subr.mxu0 0.0
    %3416 = vmatpush1.msra.mxu0 %v3400
    %3417 = vmatprep.subr.mxu0 0.0
    %3418 = vmatpush1.msra.mxu0 %v3401
    %3419 = vmatprep.subr.mxu0 0.0
    %3420 = vmatpush1.msra.mxu0 %v3402
    %3421 = vmatprep.subr.mxu0 0.0
    %3422 = vmatpush1.msra.mxu0 %v3403
    %3423 = vmatprep.subr.mxu0 0.0
    %3424 = vmatpush1.msra.mxu0 0.0
    %3425 = vmatprep.subr.mxu0 0.0
    %3426 = vmatpush1.msra.mxu0 0.0
    %3427 = vmatprep.subr.mxu0 0.0
    %3428 = vmatpush1.msra.mxu0 0.0
    %3429 = vmatprep.subr.mxu0 0.0
    %3430 = vmatpush1.msra.mxu0 0.0
    %3431 = vmatprep.subr.mxu0 0.0
    %3432 = vmatpush1.msra.mxu0 0.0
    %3433 = vmatprep.subr.mxu0 0.0
    %3434 = vmatpush1.msra.mxu0 0.0
    %3435 = vmatprep.subr.mxu0 0.0
    %3436 = vmatpush1.msra.mxu0 0.0
    %3437 = vmatprep.subr.mxu0 0.0
    %3438 = vmatpush1.msra.mxu0 0.0
    %3439 = vmatprep.subr.mxu0 0.0
    %3440 = vmatpush1.msra.mxu0 0.0
    %3441 = vmatprep.subr.mxu0 0.0
    %3442 = vmatpush1.msra.mxu0 0.0
    %3443 = vmatprep.subr.mxu0 0.0
    %3444 = vmatpush1.msra.mxu0 0.0
    %3445 = vmatprep.subr.mxu0 0.0
    %3446 = vmatpush1.msra.mxu0 0.0
    %3447 = vmatprep.subr.mxu0 0.0
    %3448 = vmatpush1.msra.mxu0 0.0
    %3449 = vmatprep.subr.mxu0 0.0
    %3450 = vmatpush1.msra.mxu0 0.0
    %3451 = vmatprep.subr.mxu0 0.0
    %3452 = vmatpush1.msra.mxu0 0.0
    %3453 = vmatprep.subr.mxu0 0.0
    %3454 = vmatpush1.msra.mxu0 0.0
    %3455 = vmatprep.subr.mxu0 0.0
    %3456 = vmatpush1.msra.mxu0 0.0
    %3457 = vmatprep.subr.mxu0 0.0
    %3458 = vmatpush1.msra.mxu0 0.0
    %3459 = vmatprep.subr.mxu0 0.0
    %3460 = vmatpush1.msra.mxu0 0.0
    %3461 = vmatprep.subr.mxu0 0.0
    %3462 = vmatpush1.msra.mxu0 0.0
    %3463 = vmatprep.subr.mxu0 0.0
    %3464 = vmatpush1.msra.mxu0 0.0
    %3465 = vmatprep.subr.mxu0 0.0
    %3466 = vmatpush1.msra.mxu0 0.0
    %3467 = vmatprep.subr.mxu0 0.0
    %3468 = vmatpush1.msra.mxu0 0.0
    %3469 = vmatprep.subr.mxu0 0.0
    %3470 = vmatpush1.msra.mxu0 0.0
    %3471 = vmatprep.subr.mxu0 0.0
    %3472 = vmatpush1.msra.mxu0 0.0
    %3473 = vmatprep.subr.mxu0 0.0
    %3474 = vmatpush1.msra.mxu0 0.0
    %3475 = vmatprep.subr.mxu0 0.0
    %3476 = vmatpush1.msra.mxu0 0.0
    %3477 = vmatprep.subr.mxu0 0.0
    %3478 = vmatpush1.msra.mxu0 0.0
    %3479 = vmatprep.mubr.f32.mxu0 0.0
    %3480 = vmatmul.mubr.f32.gmra.mrb[0].mxu0 %v3410
    %v3481 = vpop.f32.mrb[0].mxu0
    %v3482 = vadd.f32 %v3408, %v3481
    %v3483 = vpop.f32.mrb[0].mxu0
    %3484 = vmatprep.mubr.f32.mxu0 0.0
    %3485 = vmatmul.mubr.f32.gmra.mrb[0].mxu0 %v3413
    %v3486 = vpop.f32.mrb[0].mxu0
    %v3487 = vadd.f32 %v3408, %v3486
    %v3488 = vpop.f32.mrb[0].mxu0
    %3489 = vdwg.mxu0
    %v3490 = vmax.f32 %v3482, 0.0
    %v3491 = vmax.f32 %v3487, 0.0
    %v3492 = vld [vmem:[%s5] sm:$0xff]
    %v3493 = vld [vmem:[%s5 + $0x8] sm:$0xff]
    %v3494 = vld [vmem:[%s5 + $0x10] sm:$0xff]
    %v3495 = vld [vmem:[%s5 + $0x18] sm:$0xff]
    %v3496 = vld [vmem:[%s5 + $0x20] sm:$0xff]
    %v3497 = vld [vmem:[%s5 + $0x28] sm:$0xff]
    %v3498 = vld [vmem:[%s5 + $0x30] sm:$0xff]
    %v3499 = vld [vmem:[%s5 + $0x38] sm:$0xff]
    %vm3500 = vcmask 523264
    %v3502 = vsel %vm3500, %v3490, 0
    %v3505 = vsel %vm3500, %v3491, 0
    %3507 = vmatprep.subr.mxu0 0.0
    %3508 = vmatpush1.msra.mxu0 %v3492
    %3509 = vmatprep.subr.mxu0 0.0
    %3510 = vmatpush1.msra.mxu0 %v3493
    %3511 = vmatprep.subr.mxu0 0.0
    %3512 = vmatpush1.msra.mxu0 %v3494
    %3513 = vmatprep.subr.mxu0 0.0
    %3514 = vmatpush1.msra.mxu0 %v3495
    %3515 = vmatprep.subr.mxu0 0.0
    %3516 = vmatpush1.msra.mxu0 %v3496
    %3517 = vmatprep.subr.mxu0 0.0
    %3518 = vmatpush1.msra.mxu0 %v3497
    %3519 = vmatprep.subr.mxu0 0.0
    %3520 = vmatpush1.msra.mxu0 %v3498
    %3521 = vmatprep.subr.mxu0 0.0
    %3522 = vmatpush1.msra.mxu0 %v3499
    %3523 = vmatprep.subr.mxu0 0.0
    %3524 = vmatpush1.msra.mxu0 0.0
    %3525 = vmatprep.subr.mxu0 0.0
    %3526 = vmatpush1.msra.mxu0 0.0
    %3527 = vmatprep.subr.mxu0 0.0
    %3528 = vmatpush1.msra.mxu0 0.0
    %3529 = vmatprep.subr.mxu0 0.0
    %3530 = vmatpush1.msra.mxu0 0.0
    %3531 = vmatprep.subr.mxu0 0.0
    %3532 = vmatpush1.msra.mxu0 0.0
    %3533 = vmatprep.subr.mxu0 0.0
    %3534 = vmatpush1.msra.mxu0 0.0
    %3535 = vmatprep.subr.mxu0 0.0
    %3536 = vmatpush1.msra.mxu0 0.0
    %3537 = vmatprep.subr.mxu0 0.0
    %3538 = vmatpush1.msra.mxu0 0.0
    %3539 = vmatprep.subr.mxu0 0.0
    %3540 = vmatpush1.msra.mxu0 0.0
    %3541 = vmatprep.subr.mxu0 0.0
    %3542 = vmatpush1.msra.mxu0 0.0
    %3543 = vmatprep.subr.mxu0 0.0
    %3544 = vmatpush1.msra.mxu0 0.0
    %3545 = vmatprep.subr.mxu0 0.0
    %3546 = vmatpush1.msra.mxu0 0.0
    %3547 = vmatprep.subr.mxu0 0.0
    %3548 = vmatpush1.msra.mxu0 0.0
    %3549 = vmatprep.subr.mxu0 0.0
    %3550 = vmatpush1.msra.mxu0 0.0
    %3551 = vmatprep.subr.mxu0 0.0
    %3552 = vmatpush1.msra.mxu0 0.0
    %3553 = vmatprep.subr.mxu0 0.0
    %3554 = vmatpush1.msra.mxu0 0.0
    %3555 = vmatprep.subr.mxu0 0.0
    %3556 = vmatpush1.msra.mxu0 0.0
    %3557 = vmatprep.subr.mxu0 0.0
    %3558 = vmatpush1.msra.mxu0 0.0
    %3559 = vmatprep.subr.mxu0 0.0
    %3560 = vmatpush1.msra.mxu0 0.0
    %3561 = vmatprep.subr.mxu0 0.0
    %3562 = vmatpush1.msra.mxu0 0.0
    %3563 = vmatprep.subr.mxu0 0.0
    %3564 = vmatpush1.msra.mxu0 0.0
    %3565 = vmatprep.subr.mxu0 0.0
    %3566 = vmatpush1.msra.mxu0 0.0
    %3567 = vmatprep.subr.mxu0 0.0
    %3568 = vmatpush1.msra.mxu0 0.0
    %3569 = vmatprep.subr.mxu0 0.0
    %3570 = vmatpush1.msra.mxu0 0.0
    %3571 = vmatprep.mubr.f32.mxu0 0.0
    %3572 = vmatmul.mubr.f32.gmra.mrb[0].mxu0 %v3502
    %v3573 = vpop.f32.mrb[0].mxu0
    %v3574 = vadd.f32 0.0, %v3573
    %v3575 = vpop.f32.mrb[0].mxu0
    %3576 = vmatprep.mubr.f32.mxu0 0.0
    %3577 = vmatmul.mubr.f32.gmra.mrb[0].mxu0 %v3505
    %v3578 = vpop.f32.mrb[0].mxu0
    %v3579 = vadd.f32 0.0, %v3578
    %v3580 = vpop.f32.mrb[0].mxu0
    %3581 = vdwg.mxu0
    %v3582 = vadd.f32 %v3344, %v3574
    %v3583 = vadd.f32 %v3345, %v3579
    %v3584 = vld [vmem:[%s6 + $0x6] sm:$0x1]
    %v3585 = vlaneseq
    %v3586 = vshrl.u32 %v3585, 7
    %v3587 = vsub.s32 0, %v3586
    %v3588 = vrot.slane %v3584, %v3587
    %v3589 = vadd.f32 %v3582, %v3588
    %v3590 = vadd.f32 %v3583, %v3588
    %3591 = vst.msk [vmem:[#allocation5] sm:$0xff] %vm55, %v3589
    %3592 = vst.msk [vmem:[#allocation5 + $0x8] sm:$0xff] %vm55, %v3590
    // Predicated region
    $region34: #{tpu_custom_call.1} parent=1 // pred_check
      _
    $region35: #{tpu_custom_call.1} parent=1 // pred_check_branch
      %3594 = sbr.rel (0) target = $region37
    $region36: #{tpu_custom_call.1} parent=1 // pred_region
      %s3596 = ssub.s32 256, 256
      %3597 = vsyncadd [#allocation4], %s3596
      %s3598 = sshll.u32 [#allocation5], 4
      %s3599 = int_to_ptr.vmem [resolvable:$true] %s3598
      %3604 = dma.vmem_to_hbm [thread:$0]  %s3599, 256, %s7, [#allocation4], 128, 128, 8
    $region37: #{tpu_custom_call.1} parent=1 // pred_fallthru
      _
    // Predicated region
    $region38: #{tpu_custom_call.1} parent=1 // pred_check
      _
    $region39: #{tpu_custom_call.1} parent=1 // pred_check_branch
      %3606 = sbr.rel (0) target = $region41
    $region40: #{tpu_custom_call.1} parent=1 // pred_region
      %3607 = dma.done [#allocation4], 256
    $region41: #{tpu_custom_call.1} parent=1 // pred_fallthru
      _
    %3608 = vsyncpa [#allocation3], 1
    %3609 = vsyncpa [#allocation4], 1

</llo_original>
